<compile_context>
chip_gen: v6e
topology: v6e:2x2x1
jax: 0.10.0
libtpu: 0.0.40
codegen_flags: <defaults>
</compile_context>

<pallas_src>
import functools

import jax
import jax.numpy as jnp
from jax.experimental import pallas as pl
from jax.experimental.pallas import tpu as pltpu

VMEM_SPEC = pl.BlockSpec(memory_space=pltpu.MemorySpace.VMEM)


# ------------------------------ Pallas kernel -------------------------------

def _fused_predictor_kernel(patches_ref, w0_ref, b0_ref, w1_ref, b1_ref,
                            fcw_ref, fcb_ref, lng_ref, lnb_ref, act_ref,
                            wh_ref, wa_ref, c1_ref, v2_ref, c2_ref,
                            out_ref, a_ref, s_ref,
                            *, batch, w_in, hw_in, h_out, w_out,
                            num_comps, split_hidden):
    f32 = jnp.float32

    # ---- conv0 (3x3, stride 2): one matmul on the XLA-provided patch matrix ----
    # (/255 is folded into w0; rows of `a` are ordered (n, ho, wo), channels last)
    a_ref[...] = jnp.maximum(
        jnp.dot(patches_ref[...], w0_ref[...], preferred_element_type=f32)
        + b0_ref[...], 0.0)

    # ---- conv1 (3x3, stride 1) as 9 shifted-slab matmuls (no im2col, no transpose) ----
    # S[r] = sum_{kh,kw} a[r + kh*W_in + kw] @ W1[kh,kw]  with  r = n*HW_in + ho*W_in + wo
    span = s_ref.shape[0]
    acc = jnp.zeros(s_ref.shape, f32)
    for kh in range(3):
        for kw in range(3):
            shift = kh * w_in + kw
            acc = acc + jnp.dot(a_ref[pl.ds(shift, span), :],
                                w1_ref[kh * 3 + kw],
                                preferred_element_type=f32)
    s_ref[...] = acc

    # ---- conv1 bias + ReLU + flatten + fc, accumulated per spatial position ----
    # (the (N, H_out*W_out*F) flatten is never materialized; fc_w was re-ordered at prep)
    feat_dim = fcb_ref.shape[1]
    b1 = b1_ref[...]
    fc_acc = jnp.zeros((batch, feat_dim), f32)
    for ho in range(h_out):
        for wo in range(w_out):
            rows = s_ref[pl.ds(ho * w_in + wo, batch, stride=hw_in), :]   # (N, F)
            h = jnp.maximum(rows + b1, 0.0)
            fc_acc = fc_acc + jnp.dot(h, fcw_ref[ho * w_out + wo],
                                      preferred_element_type=f32)

    # ---- encoder head: LayerNorm (biased var, eps=1e-5, affine) + tanh ----
    y = fc_acc + fcb_ref[...]
    mean = jnp.mean(y, axis=-1, keepdims=True)
    var = jnp.mean((y - mean) ** 2, axis=-1, keepdims=True)
    y = (y - mean) * jax.lax.rsqrt(var + 1e-5) * lng_ref[...] + lnb_ref[...]
    feat = jnp.tanh(y)

    # ---- ensemble of trunks: Linear(D+1, F) -> ReLU -> Linear(F, D) ----
    # cat([h, action]) folded into feat @ W_h + action * w_a (no lane concat needed)
    act = act_ref[...]
    ns = batch // num_comps if split_hidden else batch
    for k in range(num_comps):
        if split_hidden:
            fk = feat[k * ns:(k + 1) * ns, :]
            ak = act[k * ns:(k + 1) * ns, :]
        else:
            fk, ak = feat, act
        hid = jnp.maximum(
            jnp.dot(fk, wh_ref[k], preferred_element_type=f32)
            + ak * wa_ref[k] + c1_ref[k], 0.0)
        out_ref[k * ns:(k + 1) * ns, :] = (
            jnp.dot(hid, v2_ref[k], preferred_element_type=f32) + c2_ref[k])


# ------------------------------- JAX wrappers --------------------------------

def im2col_rows(x, k, stride):
    # x: (N, C, H, W) -> patches (N*Ho*Wo, C*k*k).
    # Rows ordered (n, ho, wo); columns ordered (c, kh, kw) = torch weight.view(F,-1).
    N, C, H, W = x.shape
    Ho = (H - k) // stride + 1
    Wo = (W - k) // stride + 1
    cols = []
    for kh in range(k):
        for kw in range(k):
            cols.append(x[:, :, kh:kh + stride * Ho:stride, kw:kw + stride * Wo:stride])
    col = jnp.stack(cols, axis=2)              # (N, C, k*k, Ho, Wo)
    col = col.reshape(N, C * k * k, Ho, Wo)
    col = col.transpose(0, 2, 3, 1).reshape(N * Ho * Wo, C * k * k)
    return col, Ho, Wo


def prepare_kernel_params(p, obs_shape, feature_dim, num_filters):
    """One-time host-side re-layout of torch-style parameters for the fused kernel."""
    C, H, W = obs_shape
    Ho0, Wo0 = (H - 3) // 2 + 1, (W - 3) // 2 + 1
    Ho1, Wo1 = Ho0 - 2, Wo0 - 2
    P = Ho1 * Wo1
    F = num_filters
    D = feature_dim                      # encoder output dim == trunk in/out dim
    kp = {
        # conv0: (F, C, 3, 3) -> (C*9, F) with (c,kh,kw) row order; fold the /255 scale.
        "w0mat": (p["conv0_w"].reshape(F, -1).T / 255.0).astype(jnp.float32),
        "b0": p["conv0_b"].reshape(1, F),
        # conv1: (F, F, 3, 3) -> stacked (9, C_in, C_out), j = kh*3 + kw.
        "w1stack": p["conv1_w"].transpose(2, 3, 1, 0).reshape(9, F, F),
        "b1": p["conv1_b"].reshape(1, F),
        # fc: torch NCHW-flatten rows (f*P + p) -> stacked per spatial position (P, F, feat).
        "fcw": p["fc_w"].reshape(F, P, feature_dim).transpose(1, 0, 2),
        "fcb": p["fc_b"].reshape(1, feature_dim),
        "ln_g": p["ln_g"].reshape(1, feature_dim),
        "ln_b": p["ln_b"].reshape(1, feature_dim),
        # trunks: split Linear(D+1, F) into the feature block and the action row.
        "wh": p["t_w1"][:, :D, :],                 # (K, D, F)
        "wa": p["t_w1"][:, D:D + 1, :],            # (K, 1, F)
        "c1": p["t_b1"][:, None, :],               # (K, 1, F)
        "v2": p["t_w2"],                           # (K, F, D)
        "c2": p["t_b2"][:, None, :],               # (K, 1, D)
    }
    return kp


def dqn_cnn_ss_fwd_ensem_forward(obs, action, kp, *, num_comps, split_hidden=False):
    """Fused forward: encoder (2 convs + fc + LN + tanh) + all trunks, one pallas_call."""
    N = obs.shape[0]
    patches, Ho0, Wo0 = im2col_rows(obs.astype(jnp.float32), 3, 2)
    Ho1, Wo1 = Ho0 - 2, Wo0 - 2
    nfilters = kp["w0mat"].shape[1]
    out_dim = kp["v2"].shape[2]
    K = num_comps
    if split_hidden:
        assert N % K == 0, "split_hidden requires batch divisible by num_comps"
        ns = N // K
    else:
        ns = N
    out_rows = K * ns
    # Rows of S needed: r = n*Ho0*Wo0 + ho*Wo0 + wo, ho<Ho1, wo<Wo1.
    span = (N - 1) * Ho0 * Wo0 + (Ho1 - 1) * Wo0 + (Wo1 - 1) + 1

    kernel = functools.partial(
        _fused_predictor_kernel,
        batch=N, w_in=Wo0, hw_in=Ho0 * Wo0, h_out=Ho1, w_out=Wo1,
        num_comps=K, split_hidden=split_hidden)

    return pl.pallas_call(
        kernel,
        out_shape=jax.ShapeDtypeStruct((out_rows, out_dim), jnp.float32),
        in_specs=[VMEM_SPEC] * 15,
        out_specs=VMEM_SPEC,
        scratch_shapes=[
            pltpu.VMEM((N * Ho0 * Wo0, nfilters), jnp.float32),   # conv0 activation
            pltpu.VMEM((span, nfilters), jnp.float32),            # conv1 pre-activation
        ],
    )(patches, kp["w0mat"], kp["b0"], kp["w1stack"], kp["b1"],
      kp["fcw"], kp["fcb"], kp["ln_g"], kp["ln_b"],
      action.astype(jnp.float32),
      kp["wh"], kp["wa"], kp["c1"], kp["v2"], kp["c2"])


# --------------------------- parameters (synthetic) --------------------------

def init_params(key, obs_shape, feature_dim, num_comps, num_filters):
    C, H, W = obs_shape
    Ho0, Wo0 = (H - 3) // 2 + 1, (W - 3) // 2 + 1
    Ho1, Wo1 = Ho0 - 2, Wo0 - 2
    flat = num_filters * Ho1 * Wo1
    D = feature_dim
    ks = jax.random.split(key, 10)
    p = {
        "conv0_w": 0.1 * jax.random.normal(ks[0], (num_filters, C, 3, 3), jnp.float32),
        "conv0_b": 0.01 * jax.random.normal(ks[1], (num_filters,), jnp.float32),
        "conv1_w": 0.1 * jax.random.normal(ks[2], (num_filters, num_filters, 3, 3), jnp.float32),
        "conv1_b": 0.01 * jax.random.normal(ks[3], (num_filters,), jnp.float32),
        "fc_w": 0.05 * jax.random.normal(ks[4], (flat, feature_dim), jnp.float32),
        "fc_b": 0.01 * jax.random.normal(ks[5], (feature_dim,), jnp.float32),
        "ln_g": jnp.ones((feature_dim,), jnp.float32),
        "ln_b": jnp.zeros((feature_dim,), jnp.float32),
        # K trunks: Linear(D+1, feature_dim) -> ReLU -> Linear(feature_dim, D)
        "t_w1": 0.1 * jax.random.normal(ks[6], (num_comps, D + 1, feature_dim), jnp.float32),
        "t_b1": 0.01 * jax.random.normal(ks[7], (num_comps, feature_dim), jnp.float32),
        "t_w2": 0.1 * jax.random.normal(ks[8], (num_comps, feature_dim, D), jnp.float32),
        "t_b2": 0.01 * jax.random.normal(ks[9], (num_comps, D), jnp.float32),
    }
    return p


# --------------------------------- reference ---------------------------------

def reference_forward(obs, action, p, *, num_comps, split_hidden):
    HI = jax.lax.Precision.HIGHEST
    x = obs.astype(jnp.float32) / 255.0
    for i, stride in ((0, 2), (1, 1)):
        w, b = p[f"conv{i}_w"], p[f"conv{i}_b"]
        x = jax.lax.conv_general_dilated(
            x, w, (stride, stride), "VALID",
            dimension_numbers=("NCHW", "OIHW", "NCHW"), precision=HI)
        x = jnp.maximum(x + b.reshape(1, -1, 1, 1), 0.0)
    h = x.reshape(x.shape[0], -1)                           # torch NCHW flatten
    y = jnp.dot(h, p["fc_w"], precision=HI) + p["fc_b"]
    mean = y.mean(-1, keepdims=True)
    var = ((y - mean) ** 2).mean(-1, keepdims=True)
    y = (y - mean) / jnp.sqrt(var + 1e-5) * p["ln_g"] + p["ln_b"]
    feat = jnp.tanh(y)
    joint = jnp.concatenate([feat, action.astype(jnp.float32)], axis=-1)
    K = num_comps
    ns = joint.shape[0] // K
    outs = []
    for k in range(K):
        jk = joint[k * ns:(k + 1) * ns] if split_hidden else joint
        h1 = jnp.maximum(jnp.dot(jk, p["t_w1"][k], precision=HI) + p["t_b1"][k], 0.0)
        outs.append(jnp.dot(h1, p["t_w2"][k], precision=HI) + p["t_b2"][k])
    return jnp.concatenate(outs, axis=0)


# ------------------------------------ main ------------------------------------

if __name__ == "__main__":
    obs_shape = (4, 16, 16)      # (C, H, W)  -> conv: 16 -> 7 -> 5
    feature_dim = 32
    num_filters = 32
    num_comps = 2
    batch = 4

    key = jax.random.PRNGKey(0)
    k_obs, k_act, k_par = jax.random.split(key, 3)
    obs = jax.random.uniform(k_obs, (batch,) + obs_shape, jnp.float32,
                             minval=0.0, maxval=255.0)
    action = jax.random.randint(k_act, (batch, 1), 0, 6).astype(jnp.float32)

    params = init_params(k_par, obs_shape, feature_dim, num_comps, num_filters)
    kparams = prepare_kernel_params(params, obs_shape, feature_dim, num_filters)

    # default path (split_hidden=False): output (num_comps * batch, feature_dim)
    out = dqn_cnn_ss_fwd_ensem_forward(obs, action, kparams,
                                       num_comps=num_comps, split_hidden=False)
    jax.block_until_ready(out)
    ref = reference_forward(obs, action, params,
                            num_comps=num_comps, split_hidden=False)
    assert out.shape == (num_comps * batch, feature_dim)
    assert jnp.allclose(out, ref, rtol=2e-3, atol=2e-3)

    # split_hidden=True path: output (batch, feature_dim)
    out_s = dqn_cnn_ss_fwd_ensem_forward(obs, action, kparams,
                                         num_comps=num_comps, split_hidden=True)
    jax.block_until_ready(out_s)
    ref_s = reference_forward(obs, action, params,
                              num_comps=num_comps, split_hidden=True)
    assert out_s.shape == (batch, feature_dim)
    assert jnp.allclose(out_s, ref_s, rtol=2e-3, atol=2e-3)

    print("KERNEL_OK")
</pallas_src>

<mosaic_0001>
module attributes {stable_mosaic.version = 11 : i64} {
  func.func @_fused_predictor_kernel(%arg0: memref<196x36xf32, #tpu.memory_space<vmem>>, %arg1: memref<36x32xf32, #tpu.memory_space<vmem>>, %arg2: memref<1x32xf32, #tpu.memory_space<vmem>>, %arg3: memref<9x32x32xf32, #tpu.memory_space<vmem>>, %arg4: memref<1x32xf32, #tpu.memory_space<vmem>>, %arg5: memref<25x32x32xf32, #tpu.memory_space<vmem>>, %arg6: memref<1x32xf32, #tpu.memory_space<vmem>>, %arg7: memref<1x32xf32, #tpu.memory_space<vmem>>, %arg8: memref<1x32xf32, #tpu.memory_space<vmem>>, %arg9: memref<4x1xf32, #tpu.memory_space<vmem>>, %arg10: memref<2x32x32xf32, #tpu.memory_space<vmem>>, %arg11: memref<2x1x32xf32, #tpu.memory_space<vmem>>, %arg12: memref<2x1x32xf32, #tpu.memory_space<vmem>>, %arg13: memref<2x32x32xf32, #tpu.memory_space<vmem>>, %arg14: memref<2x1x32xf32, #tpu.memory_space<vmem>>, %arg15: memref<8x32xf32, #tpu.memory_space<vmem>>, %arg16: memref<196x32xf32, #tpu.memory_space<vmem>>, %arg17: memref<180x32xf32, #tpu.memory_space<vmem>>) attributes {dimension_semantics = [], scalar_prefetch = 0 : i64, scratch_operands = 2 : i64, tpu.core_type = #tpu.core_type<tc>} {
    %c0 = arith.constant 0 : index
    %c0_0 = arith.constant 0 : index
    %0 = vector.load %arg0[%c0, %c0_0] : memref<196x36xf32, #tpu.memory_space<vmem>>, vector<196x36xf32>
    %c0_1 = arith.constant 0 : index
    %c0_2 = arith.constant 0 : index
    %1 = vector.load %arg1[%c0_1, %c0_2] : memref<36x32xf32, #tpu.memory_space<vmem>>, vector<36x32xf32>
    %cst = arith.constant dense<0.000000e+00> : vector<196x32xf32>
    %2 = tpu.matmul %0, %1, %cst {dimension_numbers = #tpu.dot_dimension_numbers<[1], [0], [0], [1], [0, 0, 1, 1], [], []>} : vector<196x36xf32>, vector<36x32xf32>, vector<196x32xf32> -> vector<196x32xf32>
    %c0_3 = arith.constant 0 : index
    %c0_4 = arith.constant 0 : index
    %3 = vector.load %arg2[%c0_3, %c0_4] : memref<1x32xf32, #tpu.memory_space<vmem>>, vector<1x32xf32>
    %4 = vector.broadcast %3 : vector<1x32xf32> to vector<196x32xf32>
    %5 = arith.addf %2, %4 : vector<196x32xf32>
    %cst_5 = arith.constant 0.000000e+00 : f32
    %6 = vector.broadcast %cst_5 : f32 to vector<196x32xf32>
    %7 = arith.maximumf %5, %6 : vector<196x32xf32>
    %c0_6 = arith.constant 0 : index
    %c0_7 = arith.constant 0 : index
    %8 = vector.load %arg16[%c0_6, %c0_7] : memref<196x32xf32, #tpu.memory_space<vmem>>, vector<196x32xf32>
    tpu.vector_store %arg16[%c0_6, %c0_7], %7 {strides = array<i32>} : memref<196x32xf32, #tpu.memory_space<vmem>>, vector<196x32xf32>,
    %cst_8 = arith.constant 0.000000e+00 : f32
    %9 = vector.broadcast %cst_8 : f32 to vector<180x32xf32>
    %c0_9 = arith.constant 0 : index
    %c0_10 = arith.constant 0 : index
    %10 = vector.load %arg16[%c0_9, %c0_10] : memref<196x32xf32, #tpu.memory_space<vmem>>, vector<180x32xf32>
    %c0_11 = arith.constant 0 : index
    %c0_12 = arith.constant 0 : index
    %c0_13 = arith.constant 0 : index
    %11 = vector.load %arg3[%c0_11, %c0_12, %c0_13] : memref<9x32x32xf32, #tpu.memory_space<vmem>>, vector<1x32x32xf32>
    %12 = vector.shape_cast %11 : vector<1x32x32xf32> to vector<32x32xf32>
    %cst_14 = arith.constant dense<0.000000e+00> : vector<180x32xf32>
    %13 = tpu.matmul %10, %12, %cst_14 {dimension_numbers = #tpu.dot_dimension_numbers<[1], [0], [0], [1], [0, 0, 1, 1], [], []>} : vector<180x32xf32>, vector<32x32xf32>, vector<180x32xf32> -> vector<180x32xf32>
    %14 = arith.addf %9, %13 : vector<180x32xf32>
    %c1 = arith.constant 1 : index
    %c0_15 = arith.constant 0 : index
    %15 = vector.load %arg16[%c1, %c0_15] : memref<196x32xf32, #tpu.memory_space<vmem>>, vector<180x32xf32>
    %c1_16 = arith.constant 1 : index
    %c0_17 = arith.constant 0 : index
    %c0_18 = arith.constant 0 : index
    %16 = vector.load %arg3[%c1_16, %c0_17, %c0_18] : memref<9x32x32xf32, #tpu.memory_space<vmem>>, vector<1x32x32xf32>
    %17 = vector.shape_cast %16 : vector<1x32x32xf32> to vector<32x32xf32>
    %cst_19 = arith.constant dense<0.000000e+00> : vector<180x32xf32>
    %18 = tpu.matmul %15, %17, %cst_19 {dimension_numbers = #tpu.dot_dimension_numbers<[1], [0], [0], [1], [0, 0, 1, 1], [], []>} : vector<180x32xf32>, vector<32x32xf32>, vector<180x32xf32> -> vector<180x32xf32>
    %19 = arith.addf %14, %18 : vector<180x32xf32>
    %c2 = arith.constant 2 : index
    %c0_20 = arith.constant 0 : index
    %20 = vector.load %arg16[%c2, %c0_20] : memref<196x32xf32, #tpu.memory_space<vmem>>, vector<180x32xf32>
    %c2_21 = arith.constant 2 : index
    %c0_22 = arith.constant 0 : index
    %c0_23 = arith.constant 0 : index
    %21 = vector.load %arg3[%c2_21, %c0_22, %c0_23] : memref<9x32x32xf32, #tpu.memory_space<vmem>>, vector<1x32x32xf32>
    %22 = vector.shape_cast %21 : vector<1x32x32xf32> to vector<32x32xf32>
    %cst_24 = arith.constant dense<0.000000e+00> : vector<180x32xf32>
    %23 = tpu.matmul %20, %22, %cst_24 {dimension_numbers = #tpu.dot_dimension_numbers<[1], [0], [0], [1], [0, 0, 1, 1], [], []>} : vector<180x32xf32>, vector<32x32xf32>, vector<180x32xf32> -> vector<180x32xf32>
    %24 = arith.addf %19, %23 : vector<180x32xf32>
    %c7 = arith.constant 7 : index
    %c0_25 = arith.constant 0 : index
    %25 = vector.load %arg16[%c7, %c0_25] : memref<196x32xf32, #tpu.memory_space<vmem>>, vector<180x32xf32>
    %c3 = arith.constant 3 : index
    %c0_26 = arith.constant 0 : index
    %c0_27 = arith.constant 0 : index
    %26 = vector.load %arg3[%c3, %c0_26, %c0_27] : memref<9x32x32xf32, #tpu.memory_space<vmem>>, vector<1x32x32xf32>
    %27 = vector.shape_cast %26 : vector<1x32x32xf32> to vector<32x32xf32>
    %cst_28 = arith.constant dense<0.000000e+00> : vector<180x32xf32>
    %28 = tpu.matmul %25, %27, %cst_28 {dimension_numbers = #tpu.dot_dimension_numbers<[1], [0], [0], [1], [0, 0, 1, 1], [], []>} : vector<180x32xf32>, vector<32x32xf32>, vector<180x32xf32> -> vector<180x32xf32>
    %29 = arith.addf %24, %28 : vector<180x32xf32>
    %c8 = arith.constant 8 : index
    %c0_29 = arith.constant 0 : index
    %30 = vector.load %arg16[%c8, %c0_29] : memref<196x32xf32, #tpu.memory_space<vmem>>, vector<180x32xf32>
    %c4 = arith.constant 4 : index
    %c0_30 = arith.constant 0 : index
    %c0_31 = arith.constant 0 : index
    %31 = vector.load %arg3[%c4, %c0_30, %c0_31] : memref<9x32x32xf32, #tpu.memory_space<vmem>>, vector<1x32x32xf32>
    %32 = vector.shape_cast %31 : vector<1x32x32xf32> to vector<32x32xf32>
    %cst_32 = arith.constant dense<0.000000e+00> : vector<180x32xf32>
    %33 = tpu.matmul %30, %32, %cst_32 {dimension_numbers = #tpu.dot_dimension_numbers<[1], [0], [0], [1], [0, 0, 1, 1], [], []>} : vector<180x32xf32>, vector<32x32xf32>, vector<180x32xf32> -> vector<180x32xf32>
    %34 = arith.addf %29, %33 : vector<180x32xf32>
    %c9 = arith.constant 9 : index
    %c0_33 = arith.constant 0 : index
    %35 = vector.load %arg16[%c9, %c0_33] : memref<196x32xf32, #tpu.memory_space<vmem>>, vector<180x32xf32>
    %c5 = arith.constant 5 : index
    %c0_34 = arith.constant 0 : index
    %c0_35 = arith.constant 0 : index
    %36 = vector.load %arg3[%c5, %c0_34, %c0_35] : memref<9x32x32xf32, #tpu.memory_space<vmem>>, vector<1x32x32xf32>
    %37 = vector.shape_cast %36 : vector<1x32x32xf32> to vector<32x32xf32>
    %cst_36 = arith.constant dense<0.000000e+00> : vector<180x32xf32>
    %38 = tpu.matmul %35, %37, %cst_36 {dimension_numbers = #tpu.dot_dimension_numbers<[1], [0], [0], [1], [0, 0, 1, 1], [], []>} : vector<180x32xf32>, vector<32x32xf32>, vector<180x32xf32> -> vector<180x32xf32>
    %39 = arith.addf %34, %38 : vector<180x32xf32>
    %c14 = arith.constant 14 : index
    %c0_37 = arith.constant 0 : index
    %40 = vector.load %arg16[%c14, %c0_37] : memref<196x32xf32, #tpu.memory_space<vmem>>, vector<180x32xf32>
    %c6 = arith.constant 6 : index
    %c0_38 = arith.constant 0 : index
    %c0_39 = arith.constant 0 : index
    %41 = vector.load %arg3[%c6, %c0_38, %c0_39] : memref<9x32x32xf32, #tpu.memory_space<vmem>>, vector<1x32x32xf32>
    %42 = vector.shape_cast %41 : vector<1x32x32xf32> to vector<32x32xf32>
    %cst_40 = arith.constant dense<0.000000e+00> : vector<180x32xf32>
    %43 = tpu.matmul %40, %42, %cst_40 {dimension_numbers = #tpu.dot_dimension_numbers<[1], [0], [0], [1], [0, 0, 1, 1], [], []>} : vector<180x32xf32>, vector<32x32xf32>, vector<180x32xf32> -> vector<180x32xf32>
    %44 = arith.addf %39, %43 : vector<180x32xf32>
    %c15 = arith.constant 15 : index
    %c0_41 = arith.constant 0 : index
    %45 = vector.load %arg16[%c15, %c0_41] : memref<196x32xf32, #tpu.memory_space<vmem>>, vector<180x32xf32>
    %c7_42 = arith.constant 7 : index
    %c0_43 = arith.constant 0 : index
    %c0_44 = arith.constant 0 : index
    %46 = vector.load %arg3[%c7_42, %c0_43, %c0_44] : memref<9x32x32xf32, #tpu.memory_space<vmem>>, vector<1x32x32xf32>
    %47 = vector.shape_cast %46 : vector<1x32x32xf32> to vector<32x32xf32>
    %cst_45 = arith.constant dense<0.000000e+00> : vector<180x32xf32>
    %48 = tpu.matmul %45, %47, %cst_45 {dimension_numbers = #tpu.dot_dimension_numbers<[1], [0], [0], [1], [0, 0, 1, 1], [], []>} : vector<180x32xf32>, vector<32x32xf32>, vector<180x32xf32> -> vector<180x32xf32>
    %49 = arith.addf %44, %48 : vector<180x32xf32>
    %c16 = arith.constant 16 : index
    %c0_46 = arith.constant 0 : index
    %50 = vector.load %arg16[%c16, %c0_46] : memref<196x32xf32, #tpu.memory_space<vmem>>, vector<180x32xf32>
    %c8_47 = arith.constant 8 : index
    %c0_48 = arith.constant 0 : index
    %c0_49 = arith.constant 0 : index
    %51 = vector.load %arg3[%c8_47, %c0_48, %c0_49] : memref<9x32x32xf32, #tpu.memory_space<vmem>>, vector<1x32x32xf32>
    %52 = vector.shape_cast %51 : vector<1x32x32xf32> to vector<32x32xf32>
    %cst_50 = arith.constant dense<0.000000e+00> : vector<180x32xf32>
    %53 = tpu.matmul %50, %52, %cst_50 {dimension_numbers = #tpu.dot_dimension_numbers<[1], [0], [0], [1], [0, 0, 1, 1], [], []>} : vector<180x32xf32>, vector<32x32xf32>, vector<180x32xf32> -> vector<180x32xf32>
    %54 = arith.addf %49, %53 : vector<180x32xf32>
    %c0_51 = arith.constant 0 : index
    %c0_52 = arith.constant 0 : index
    %55 = vector.load %arg17[%c0_51, %c0_52] : memref<180x32xf32, #tpu.memory_space<vmem>>, vector<180x32xf32>
    tpu.vector_store %arg17[%c0_51, %c0_52], %54 {strides = array<i32>} : memref<180x32xf32, #tpu.memory_space<vmem>>, vector<180x32xf32>,
    %c0_53 = arith.constant 0 : index
    %c0_54 = arith.constant 0 : index
    %56 = vector.load %arg4[%c0_53, %c0_54] : memref<1x32xf32, #tpu.memory_space<vmem>>, vector<1x32xf32>
    %cst_55 = arith.constant 0.000000e+00 : f32
    %57 = vector.broadcast %cst_55 : f32 to vector<4x32xf32>
    %c0_56 = arith.constant 0 : index
    %c0_57 = arith.constant 0 : index
    %58 = tpu.strided_load %arg17[%c0_56, %c0_57] {strides = array<i32: 49, 1>} : memref<180x32xf32, #tpu.memory_space<vmem>>, vector<4x32xf32>
    %59 = vector.broadcast %56 : vector<1x32xf32> to vector<4x32xf32>
    %60 = arith.addf %58, %59 : vector<4x32xf32>
    %cst_58 = arith.constant 0.000000e+00 : f32
    %61 = vector.broadcast %cst_58 : f32 to vector<4x32xf32>
    %62 = arith.maximumf %60, %61 : vector<4x32xf32>
    %c0_59 = arith.constant 0 : index
    %c0_60 = arith.constant 0 : index
    %c0_61 = arith.constant 0 : index
    %63 = vector.load %arg5[%c0_59, %c0_60, %c0_61] : memref<25x32x32xf32, #tpu.memory_space<vmem>>, vector<1x32x32xf32>
    %64 = vector.shape_cast %63 : vector<1x32x32xf32> to vector<32x32xf32>
    %cst_62 = arith.constant dense<0.000000e+00> : vector<4x32xf32>
    %65 = tpu.matmul %62, %64, %cst_62 {dimension_numbers = #tpu.dot_dimension_numbers<[1], [0], [0], [1], [0, 0, 1, 1], [], []>} : vector<4x32xf32>, vector<32x32xf32>, vector<4x32xf32> -> vector<4x32xf32>
    %66 = arith.addf %57, %65 : vector<4x32xf32>
    %c1_63 = arith.constant 1 : index
    %c0_64 = arith.constant 0 : index
    %67 = tpu.strided_load %arg17[%c1_63, %c0_64] {strides = array<i32: 49, 1>} : memref<180x32xf32, #tpu.memory_space<vmem>>, vector<4x32xf32>
    %68 = vector.broadcast %56 : vector<1x32xf32> to vector<4x32xf32>
    %69 = arith.addf %67, %68 : vector<4x32xf32>
    %cst_65 = arith.constant 0.000000e+00 : f32
    %70 = vector.broadcast %cst_65 : f32 to vector<4x32xf32>
    %71 = arith.maximumf %69, %70 : vector<4x32xf32>
    %c1_66 = arith.constant 1 : index
    %c0_67 = arith.constant 0 : index
    %c0_68 = arith.constant 0 : index
    %72 = vector.load %arg5[%c1_66, %c0_67, %c0_68] : memref<25x32x32xf32, #tpu.memory_space<vmem>>, vector<1x32x32xf32>
    %73 = vector.shape_cast %72 : vector<1x32x32xf32> to vector<32x32xf32>
    %cst_69 = arith.constant dense<0.000000e+00> : vector<4x32xf32>
    %74 = tpu.matmul %71, %73, %cst_69 {dimension_numbers = #tpu.dot_dimension_numbers<[1], [0], [0], [1], [0, 0, 1, 1], [], []>} : vector<4x32xf32>, vector<32x32xf32>, vector<4x32xf32> -> vector<4x32xf32>
    %75 = arith.addf %66, %74 : vector<4x32xf32>
    %c2_70 = arith.constant 2 : index
    %c0_71 = arith.constant 0 : index
    %76 = tpu.strided_load %arg17[%c2_70, %c0_71] {strides = array<i32: 49, 1>} : memref<180x32xf32, #tpu.memory_space<vmem>>, vector<4x32xf32>
    %77 = vector.broadcast %56 : vector<1x32xf32> to vector<4x32xf32>
    %78 = arith.addf %76, %77 : vector<4x32xf32>
    %cst_72 = arith.constant 0.000000e+00 : f32
    %79 = vector.broadcast %cst_72 : f32 to vector<4x32xf32>
    %80 = arith.maximumf %78, %79 : vector<4x32xf32>
    %c2_73 = arith.constant 2 : index
    %c0_74 = arith.constant 0 : index
    %c0_75 = arith.constant 0 : index
    %81 = vector.load %arg5[%c2_73, %c0_74, %c0_75] : memref<25x32x32xf32, #tpu.memory_space<vmem>>, vector<1x32x32xf32>
    %82 = vector.shape_cast %81 : vector<1x32x32xf32> to vector<32x32xf32>
    %cst_76 = arith.constant dense<0.000000e+00> : vector<4x32xf32>
    %83 = tpu.matmul %80, %82, %cst_76 {dimension_numbers = #tpu.dot_dimension_numbers<[1], [0], [0], [1], [0, 0, 1, 1], [], []>} : vector<4x32xf32>, vector<32x32xf32>, vector<4x32xf32> -> vector<4x32xf32>
    %84 = arith.addf %75, %83 : vector<4x32xf32>
    %c3_77 = arith.constant 3 : index
    %c0_78 = arith.constant 0 : index
    %85 = tpu.strided_load %arg17[%c3_77, %c0_78] {strides = array<i32: 49, 1>} : memref<180x32xf32, #tpu.memory_space<vmem>>, vector<4x32xf32>
    %86 = vector.broadcast %56 : vector<1x32xf32> to vector<4x32xf32>
    %87 = arith.addf %85, %86 : vector<4x32xf32>
    %cst_79 = arith.constant 0.000000e+00 : f32
    %88 = vector.broadcast %cst_79 : f32 to vector<4x32xf32>
    %89 = arith.maximumf %87, %88 : vector<4x32xf32>
    %c3_80 = arith.constant 3 : index
    %c0_81 = arith.constant 0 : index
    %c0_82 = arith.constant 0 : index
    %90 = vector.load %arg5[%c3_80, %c0_81, %c0_82] : memref<25x32x32xf32, #tpu.memory_space<vmem>>, vector<1x32x32xf32>
    %91 = vector.shape_cast %90 : vector<1x32x32xf32> to vector<32x32xf32>
    %cst_83 = arith.constant dense<0.000000e+00> : vector<4x32xf32>
    %92 = tpu.matmul %89, %91, %cst_83 {dimension_numbers = #tpu.dot_dimension_numbers<[1], [0], [0], [1], [0, 0, 1, 1], [], []>} : vector<4x32xf32>, vector<32x32xf32>, vector<4x32xf32> -> vector<4x32xf32>
    %93 = arith.addf %84, %92 : vector<4x32xf32>
    %c4_84 = arith.constant 4 : index
    %c0_85 = arith.constant 0 : index
    %94 = tpu.strided_load %arg17[%c4_84, %c0_85] {strides = array<i32: 49, 1>} : memref<180x32xf32, #tpu.memory_space<vmem>>, vector<4x32xf32>
    %95 = vector.broadcast %56 : vector<1x32xf32> to vector<4x32xf32>
    %96 = arith.addf %94, %95 : vector<4x32xf32>
    %cst_86 = arith.constant 0.000000e+00 : f32
    %97 = vector.broadcast %cst_86 : f32 to vector<4x32xf32>
    %98 = arith.maximumf %96, %97 : vector<4x32xf32>
    %c4_87 = arith.constant 4 : index
    %c0_88 = arith.constant 0 : index
    %c0_89 = arith.constant 0 : index
    %99 = vector.load %arg5[%c4_87, %c0_88, %c0_89] : memref<25x32x32xf32, #tpu.memory_space<vmem>>, vector<1x32x32xf32>
    %100 = vector.shape_cast %99 : vector<1x32x32xf32> to vector<32x32xf32>
    %cst_90 = arith.constant dense<0.000000e+00> : vector<4x32xf32>
    %101 = tpu.matmul %98, %100, %cst_90 {dimension_numbers = #tpu.dot_dimension_numbers<[1], [0], [0], [1], [0, 0, 1, 1], [], []>} : vector<4x32xf32>, vector<32x32xf32>, vector<4x32xf32> -> vector<4x32xf32>
    %102 = arith.addf %93, %101 : vector<4x32xf32>
    %c7_91 = arith.constant 7 : index
    %c0_92 = arith.constant 0 : index
    %103 = tpu.strided_load %arg17[%c7_91, %c0_92] {strides = array<i32: 49, 1>} : memref<180x32xf32, #tpu.memory_space<vmem>>, vector<4x32xf32>
    %104 = vector.broadcast %56 : vector<1x32xf32> to vector<4x32xf32>
    %105 = arith.addf %103, %104 : vector<4x32xf32>
    %cst_93 = arith.constant 0.000000e+00 : f32
    %106 = vector.broadcast %cst_93 : f32 to vector<4x32xf32>
    %107 = arith.maximumf %105, %106 : vector<4x32xf32>
    %c5_94 = arith.constant 5 : index
    %c0_95 = arith.constant 0 : index
    %c0_96 = arith.constant 0 : index
    %108 = vector.load %arg5[%c5_94, %c0_95, %c0_96] : memref<25x32x32xf32, #tpu.memory_space<vmem>>, vector<1x32x32xf32>
    %109 = vector.shape_cast %108 : vector<1x32x32xf32> to vector<32x32xf32>
    %cst_97 = arith.constant dense<0.000000e+00> : vector<4x32xf32>
    %110 = tpu.matmul %107, %109, %cst_97 {dimension_numbers = #tpu.dot_dimension_numbers<[1], [0], [0], [1], [0, 0, 1, 1], [], []>} : vector<4x32xf32>, vector<32x32xf32>, vector<4x32xf32> -> vector<4x32xf32>
    %111 = arith.addf %102, %110 : vector<4x32xf32>
    %c8_98 = arith.constant 8 : index
    %c0_99 = arith.constant 0 : index
    %112 = tpu.strided_load %arg17[%c8_98, %c0_99] {strides = array<i32: 49, 1>} : memref<180x32xf32, #tpu.memory_space<vmem>>, vector<4x32xf32>
    %113 = vector.broadcast %56 : vector<1x32xf32> to vector<4x32xf32>
    %114 = arith.addf %112, %113 : vector<4x32xf32>
    %cst_100 = arith.constant 0.000000e+00 : f32
    %115 = vector.broadcast %cst_100 : f32 to vector<4x32xf32>
    %116 = arith.maximumf %114, %115 : vector<4x32xf32>
    %c6_101 = arith.constant 6 : index
    %c0_102 = arith.constant 0 : index
    %c0_103 = arith.constant 0 : index
    %117 = vector.load %arg5[%c6_101, %c0_102, %c0_103] : memref<25x32x32xf32, #tpu.memory_space<vmem>>, vector<1x32x32xf32>
    %118 = vector.shape_cast %117 : vector<1x32x32xf32> to vector<32x32xf32>
    %cst_104 = arith.constant dense<0.000000e+00> : vector<4x32xf32>
    %119 = tpu.matmul %116, %118, %cst_104 {dimension_numbers = #tpu.dot_dimension_numbers<[1], [0], [0], [1], [0, 0, 1, 1], [], []>} : vector<4x32xf32>, vector<32x32xf32>, vector<4x32xf32> -> vector<4x32xf32>
    %120 = arith.addf %111, %119 : vector<4x32xf32>
    %c9_105 = arith.constant 9 : index
    %c0_106 = arith.constant 0 : index
    %121 = tpu.strided_load %arg17[%c9_105, %c0_106] {strides = array<i32: 49, 1>} : memref<180x32xf32, #tpu.memory_space<vmem>>, vector<4x32xf32>
    %122 = vector.broadcast %56 : vector<1x32xf32> to vector<4x32xf32>
    %123 = arith.addf %121, %122 : vector<4x32xf32>
    %cst_107 = arith.constant 0.000000e+00 : f32
    %124 = vector.broadcast %cst_107 : f32 to vector<4x32xf32>
    %125 = arith.maximumf %123, %124 : vector<4x32xf32>
    %c7_108 = arith.constant 7 : index
    %c0_109 = arith.constant 0 : index
    %c0_110 = arith.constant 0 : index
    %126 = vector.load %arg5[%c7_108, %c0_109, %c0_110] : memref<25x32x32xf32, #tpu.memory_space<vmem>>, vector<1x32x32xf32>
    %127 = vector.shape_cast %126 : vector<1x32x32xf32> to vector<32x32xf32>
    %cst_111 = arith.constant dense<0.000000e+00> : vector<4x32xf32>
    %128 = tpu.matmul %125, %127, %cst_111 {dimension_numbers = #tpu.dot_dimension_numbers<[1], [0], [0], [1], [0, 0, 1, 1], [], []>} : vector<4x32xf32>, vector<32x32xf32>, vector<4x32xf32> -> vector<4x32xf32>
    %129 = arith.addf %120, %128 : vector<4x32xf32>
    %c10 = arith.constant 10 : index
    %c0_112 = arith.constant 0 : index
    %130 = tpu.strided_load %arg17[%c10, %c0_112] {strides = array<i32: 49, 1>} : memref<180x32xf32, #tpu.memory_space<vmem>>, vector<4x32xf32>
    %131 = vector.broadcast %56 : vector<1x32xf32> to vector<4x32xf32>
    %132 = arith.addf %130, %131 : vector<4x32xf32>
    %cst_113 = arith.constant 0.000000e+00 : f32
    %133 = vector.broadcast %cst_113 : f32 to vector<4x32xf32>
    %134 = arith.maximumf %132, %133 : vector<4x32xf32>
    %c8_114 = arith.constant 8 : index
    %c0_115 = arith.constant 0 : index
    %c0_116 = arith.constant 0 : index
    %135 = vector.load %arg5[%c8_114, %c0_115, %c0_116] : memref<25x32x32xf32, #tpu.memory_space<vmem>>, vector<1x32x32xf32>
    %136 = vector.shape_cast %135 : vector<1x32x32xf32> to vector<32x32xf32>
    %cst_117 = arith.constant dense<0.000000e+00> : vector<4x32xf32>
    %137 = tpu.matmul %134, %136, %cst_117 {dimension_numbers = #tpu.dot_dimension_numbers<[1], [0], [0], [1], [0, 0, 1, 1], [], []>} : vector<4x32xf32>, vector<32x32xf32>, vector<4x32xf32> -> vector<4x32xf32>
    %138 = arith.addf %129, %137 : vector<4x32xf32>
    %c11 = arith.constant 11 : index
    %c0_118 = arith.constant 0 : index
    %139 = tpu.strided_load %arg17[%c11, %c0_118] {strides = array<i32: 49, 1>} : memref<180x32xf32, #tpu.memory_space<vmem>>, vector<4x32xf32>
    %140 = vector.broadcast %56 : vector<1x32xf32> to vector<4x32xf32>
    %141 = arith.addf %139, %140 : vector<4x32xf32>
    %cst_119 = arith.constant 0.000000e+00 : f32
    %142 = vector.broadcast %cst_119 : f32 to vector<4x32xf32>
    %143 = arith.maximumf %141, %142 : vector<4x32xf32>
    %c9_120 = arith.constant 9 : index
    %c0_121 = arith.constant 0 : index
    %c0_122 = arith.constant 0 : index
    %144 = vector.load %arg5[%c9_120, %c0_121, %c0_122] : memref<25x32x32xf32, #tpu.memory_space<vmem>>, vector<1x32x32xf32>
    %145 = vector.shape_cast %144 : vector<1x32x32xf32> to vector<32x32xf32>
    %cst_123 = arith.constant dense<0.000000e+00> : vector<4x32xf32>
    %146 = tpu.matmul %143, %145, %cst_123 {dimension_numbers = #tpu.dot_dimension_numbers<[1], [0], [0], [1], [0, 0, 1, 1], [], []>} : vector<4x32xf32>, vector<32x32xf32>, vector<4x32xf32> -> vector<4x32xf32>
    %147 = arith.addf %138, %146 : vector<4x32xf32>
    %c14_124 = arith.constant 14 : index
    %c0_125 = arith.constant 0 : index
    %148 = tpu.strided_load %arg17[%c14_124, %c0_125] {strides = array<i32: 49, 1>} : memref<180x32xf32, #tpu.memory_space<vmem>>, vector<4x32xf32>
    %149 = vector.broadcast %56 : vector<1x32xf32> to vector<4x32xf32>
    %150 = arith.addf %148, %149 : vector<4x32xf32>
    %cst_126 = arith.constant 0.000000e+00 : f32
    %151 = vector.broadcast %cst_126 : f32 to vector<4x32xf32>
    %152 = arith.maximumf %150, %151 : vector<4x32xf32>
    %c10_127 = arith.constant 10 : index
    %c0_128 = arith.constant 0 : index
    %c0_129 = arith.constant 0 : index
    %153 = vector.load %arg5[%c10_127, %c0_128, %c0_129] : memref<25x32x32xf32, #tpu.memory_space<vmem>>, vector<1x32x32xf32>
    %154 = vector.shape_cast %153 : vector<1x32x32xf32> to vector<32x32xf32>
    %cst_130 = arith.constant dense<0.000000e+00> : vector<4x32xf32>
    %155 = tpu.matmul %152, %154, %cst_130 {dimension_numbers = #tpu.dot_dimension_numbers<[1], [0], [0], [1], [0, 0, 1, 1], [], []>} : vector<4x32xf32>, vector<32x32xf32>, vector<4x32xf32> -> vector<4x32xf32>
    %156 = arith.addf %147, %155 : vector<4x32xf32>
    %c15_131 = arith.constant 15 : index
    %c0_132 = arith.constant 0 : index
    %157 = tpu.strided_load %arg17[%c15_131, %c0_132] {strides = array<i32: 49, 1>} : memref<180x32xf32, #tpu.memory_space<vmem>>, vector<4x32xf32>
    %158 = vector.broadcast %56 : vector<1x32xf32> to vector<4x32xf32>
    %159 = arith.addf %157, %158 : vector<4x32xf32>
    %cst_133 = arith.constant 0.000000e+00 : f32
    %160 = vector.broadcast %cst_133 : f32 to vector<4x32xf32>
    %161 = arith.maximumf %159, %160 : vector<4x32xf32>
    %c11_134 = arith.constant 11 : index
    %c0_135 = arith.constant 0 : index
    %c0_136 = arith.constant 0 : index
    %162 = vector.load %arg5[%c11_134, %c0_135, %c0_136] : memref<25x32x32xf32, #tpu.memory_space<vmem>>, vector<1x32x32xf32>
    %163 = vector.shape_cast %162 : vector<1x32x32xf32> to vector<32x32xf32>
    %cst_137 = arith.constant dense<0.000000e+00> : vector<4x32xf32>
    %164 = tpu.matmul %161, %163, %cst_137 {dimension_numbers = #tpu.dot_dimension_numbers<[1], [0], [0], [1], [0, 0, 1, 1], [], []>} : vector<4x32xf32>, vector<32x32xf32>, vector<4x32xf32> -> vector<4x32xf32>
    %165 = arith.addf %156, %164 : vector<4x32xf32>
    %c16_138 = arith.constant 16 : index
    %c0_139 = arith.constant 0 : index
    %166 = tpu.strided_load %arg17[%c16_138, %c0_139] {strides = array<i32: 49, 1>} : memref<180x32xf32, #tpu.memory_space<vmem>>, vector<4x32xf32>
    %167 = vector.broadcast %56 : vector<1x32xf32> to vector<4x32xf32>
    %168 = arith.addf %166, %167 : vector<4x32xf32>
    %cst_140 = arith.constant 0.000000e+00 : f32
    %169 = vector.broadcast %cst_140 : f32 to vector<4x32xf32>
    %170 = arith.maximumf %168, %169 : vector<4x32xf32>
    %c12 = arith.constant 12 : index
    %c0_141 = arith.constant 0 : index
    %c0_142 = arith.constant 0 : index
    %171 = vector.load %arg5[%c12, %c0_141, %c0_142] : memref<25x32x32xf32, #tpu.memory_space<vmem>>, vector<1x32x32xf32>
    %172 = vector.shape_cast %171 : vector<1x32x32xf32> to vector<32x32xf32>
    %cst_143 = arith.constant dense<0.000000e+00> : vector<4x32xf32>
    %173 = tpu.matmul %170, %172, %cst_143 {dimension_numbers = #tpu.dot_dimension_numbers<[1], [0], [0], [1], [0, 0, 1, 1], [], []>} : vector<4x32xf32>, vector<32x32xf32>, vector<4x32xf32> -> vector<4x32xf32>
    %174 = arith.addf %165, %173 : vector<4x32xf32>
    %c17 = arith.constant 17 : index
    %c0_144 = arith.constant 0 : index
    %175 = tpu.strided_load %arg17[%c17, %c0_144] {strides = array<i32: 49, 1>} : memref<180x32xf32, #tpu.memory_space<vmem>>, vector<4x32xf32>
    %176 = vector.broadcast %56 : vector<1x32xf32> to vector<4x32xf32>
    %177 = arith.addf %175, %176 : vector<4x32xf32>
    %cst_145 = arith.constant 0.000000e+00 : f32
    %178 = vector.broadcast %cst_145 : f32 to vector<4x32xf32>
    %179 = arith.maximumf %177, %178 : vector<4x32xf32>
    %c13 = arith.constant 13 : index
    %c0_146 = arith.constant 0 : index
    %c0_147 = arith.constant 0 : index
    %180 = vector.load %arg5[%c13, %c0_146, %c0_147] : memref<25x32x32xf32, #tpu.memory_space<vmem>>, vector<1x32x32xf32>
    %181 = vector.shape_cast %180 : vector<1x32x32xf32> to vector<32x32xf32>
    %cst_148 = arith.constant dense<0.000000e+00> : vector<4x32xf32>
    %182 = tpu.matmul %179, %181, %cst_148 {dimension_numbers = #tpu.dot_dimension_numbers<[1], [0], [0], [1], [0, 0, 1, 1], [], []>} : vector<4x32xf32>, vector<32x32xf32>, vector<4x32xf32> -> vector<4x32xf32>
    %183 = arith.addf %174, %182 : vector<4x32xf32>
    %c18 = arith.constant 18 : index
    %c0_149 = arith.constant 0 : index
    %184 = tpu.strided_load %arg17[%c18, %c0_149] {strides = array<i32: 49, 1>} : memref<180x32xf32, #tpu.memory_space<vmem>>, vector<4x32xf32>
    %185 = vector.broadcast %56 : vector<1x32xf32> to vector<4x32xf32>
    %186 = arith.addf %184, %185 : vector<4x32xf32>
    %cst_150 = arith.constant 0.000000e+00 : f32
    %187 = vector.broadcast %cst_150 : f32 to vector<4x32xf32>
    %188 = arith.maximumf %186, %187 : vector<4x32xf32>
    %c14_151 = arith.constant 14 : index
    %c0_152 = arith.constant 0 : index
    %c0_153 = arith.constant 0 : index
    %189 = vector.load %arg5[%c14_151, %c0_152, %c0_153] : memref<25x32x32xf32, #tpu.memory_space<vmem>>, vector<1x32x32xf32>
    %190 = vector.shape_cast %189 : vector<1x32x32xf32> to vector<32x32xf32>
    %cst_154 = arith.constant dense<0.000000e+00> : vector<4x32xf32>
    %191 = tpu.matmul %188, %190, %cst_154 {dimension_numbers = #tpu.dot_dimension_numbers<[1], [0], [0], [1], [0, 0, 1, 1], [], []>} : vector<4x32xf32>, vector<32x32xf32>, vector<4x32xf32> -> vector<4x32xf32>
    %192 = arith.addf %183, %191 : vector<4x32xf32>
    %c21 = arith.constant 21 : index
    %c0_155 = arith.constant 0 : index
    %193 = tpu.strided_load %arg17[%c21, %c0_155] {strides = array<i32: 49, 1>} : memref<180x32xf32, #tpu.memory_space<vmem>>, vector<4x32xf32>
    %194 = vector.broadcast %56 : vector<1x32xf32> to vector<4x32xf32>
    %195 = arith.addf %193, %194 : vector<4x32xf32>
    %cst_156 = arith.constant 0.000000e+00 : f32
    %196 = vector.broadcast %cst_156 : f32 to vector<4x32xf32>
    %197 = arith.maximumf %195, %196 : vector<4x32xf32>
    %c15_157 = arith.constant 15 : index
    %c0_158 = arith.constant 0 : index
    %c0_159 = arith.constant 0 : index
    %198 = vector.load %arg5[%c15_157, %c0_158, %c0_159] : memref<25x32x32xf32, #tpu.memory_space<vmem>>, vector<1x32x32xf32>
    %199 = vector.shape_cast %198 : vector<1x32x32xf32> to vector<32x32xf32>
    %cst_160 = arith.constant dense<0.000000e+00> : vector<4x32xf32>
    %200 = tpu.matmul %197, %199, %cst_160 {dimension_numbers = #tpu.dot_dimension_numbers<[1], [0], [0], [1], [0, 0, 1, 1], [], []>} : vector<4x32xf32>, vector<32x32xf32>, vector<4x32xf32> -> vector<4x32xf32>
    %201 = arith.addf %192, %200 : vector<4x32xf32>
    %c22 = arith.constant 22 : index
    %c0_161 = arith.constant 0 : index
    %202 = tpu.strided_load %arg17[%c22, %c0_161] {strides = array<i32: 49, 1>} : memref<180x32xf32, #tpu.memory_space<vmem>>, vector<4x32xf32>
    %203 = vector.broadcast %56 : vector<1x32xf32> to vector<4x32xf32>
    %204 = arith.addf %202, %203 : vector<4x32xf32>
    %cst_162 = arith.constant 0.000000e+00 : f32
    %205 = vector.broadcast %cst_162 : f32 to vector<4x32xf32>
    %206 = arith.maximumf %204, %205 : vector<4x32xf32>
    %c16_163 = arith.constant 16 : index
    %c0_164 = arith.constant 0 : index
    %c0_165 = arith.constant 0 : index
    %207 = vector.load %arg5[%c16_163, %c0_164, %c0_165] : memref<25x32x32xf32, #tpu.memory_space<vmem>>, vector<1x32x32xf32>
    %208 = vector.shape_cast %207 : vector<1x32x32xf32> to vector<32x32xf32>
    %cst_166 = arith.constant dense<0.000000e+00> : vector<4x32xf32>
    %209 = tpu.matmul %206, %208, %cst_166 {dimension_numbers = #tpu.dot_dimension_numbers<[1], [0], [0], [1], [0, 0, 1, 1], [], []>} : vector<4x32xf32>, vector<32x32xf32>, vector<4x32xf32> -> vector<4x32xf32>
    %210 = arith.addf %201, %209 : vector<4x32xf32>
    %c23 = arith.constant 23 : index
    %c0_167 = arith.constant 0 : index
    %211 = tpu.strided_load %arg17[%c23, %c0_167] {strides = array<i32: 49, 1>} : memref<180x32xf32, #tpu.memory_space<vmem>>, vector<4x32xf32>
    %212 = vector.broadcast %56 : vector<1x32xf32> to vector<4x32xf32>
    %213 = arith.addf %211, %212 : vector<4x32xf32>
    %cst_168 = arith.constant 0.000000e+00 : f32
    %214 = vector.broadcast %cst_168 : f32 to vector<4x32xf32>
    %215 = arith.maximumf %213, %214 : vector<4x32xf32>
    %c17_169 = arith.constant 17 : index
    %c0_170 = arith.constant 0 : index
    %c0_171 = arith.constant 0 : index
    %216 = vector.load %arg5[%c17_169, %c0_170, %c0_171] : memref<25x32x32xf32, #tpu.memory_space<vmem>>, vector<1x32x32xf32>
    %217 = vector.shape_cast %216 : vector<1x32x32xf32> to vector<32x32xf32>
    %cst_172 = arith.constant dense<0.000000e+00> : vector<4x32xf32>
    %218 = tpu.matmul %215, %217, %cst_172 {dimension_numbers = #tpu.dot_dimension_numbers<[1], [0], [0], [1], [0, 0, 1, 1], [], []>} : vector<4x32xf32>, vector<32x32xf32>, vector<4x32xf32> -> vector<4x32xf32>
    %219 = arith.addf %210, %218 : vector<4x32xf32>
    %c24 = arith.constant 24 : index
    %c0_173 = arith.constant 0 : index
    %220 = tpu.strided_load %arg17[%c24, %c0_173] {strides = array<i32: 49, 1>} : memref<180x32xf32, #tpu.memory_space<vmem>>, vector<4x32xf32>
    %221 = vector.broadcast %56 : vector<1x32xf32> to vector<4x32xf32>
    %222 = arith.addf %220, %221 : vector<4x32xf32>
    %cst_174 = arith.constant 0.000000e+00 : f32
    %223 = vector.broadcast %cst_174 : f32 to vector<4x32xf32>
    %224 = arith.maximumf %222, %223 : vector<4x32xf32>
    %c18_175 = arith.constant 18 : index
    %c0_176 = arith.constant 0 : index
    %c0_177 = arith.constant 0 : index
    %225 = vector.load %arg5[%c18_175, %c0_176, %c0_177] : memref<25x32x32xf32, #tpu.memory_space<vmem>>, vector<1x32x32xf32>
    %226 = vector.shape_cast %225 : vector<1x32x32xf32> to vector<32x32xf32>
    %cst_178 = arith.constant dense<0.000000e+00> : vector<4x32xf32>
    %227 = tpu.matmul %224, %226, %cst_178 {dimension_numbers = #tpu.dot_dimension_numbers<[1], [0], [0], [1], [0, 0, 1, 1], [], []>} : vector<4x32xf32>, vector<32x32xf32>, vector<4x32xf32> -> vector<4x32xf32>
    %228 = arith.addf %219, %227 : vector<4x32xf32>
    %c25 = arith.constant 25 : index
    %c0_179 = arith.constant 0 : index
    %229 = tpu.strided_load %arg17[%c25, %c0_179] {strides = array<i32: 49, 1>} : memref<180x32xf32, #tpu.memory_space<vmem>>, vector<4x32xf32>
    %230 = vector.broadcast %56 : vector<1x32xf32> to vector<4x32xf32>
    %231 = arith.addf %229, %230 : vector<4x32xf32>
    %cst_180 = arith.constant 0.000000e+00 : f32
    %232 = vector.broadcast %cst_180 : f32 to vector<4x32xf32>
    %233 = arith.maximumf %231, %232 : vector<4x32xf32>
    %c19 = arith.constant 19 : index
    %c0_181 = arith.constant 0 : index
    %c0_182 = arith.constant 0 : index
    %234 = vector.load %arg5[%c19, %c0_181, %c0_182] : memref<25x32x32xf32, #tpu.memory_space<vmem>>, vector<1x32x32xf32>
    %235 = vector.shape_cast %234 : vector<1x32x32xf32> to vector<32x32xf32>
    %cst_183 = arith.constant dense<0.000000e+00> : vector<4x32xf32>
    %236 = tpu.matmul %233, %235, %cst_183 {dimension_numbers = #tpu.dot_dimension_numbers<[1], [0], [0], [1], [0, 0, 1, 1], [], []>} : vector<4x32xf32>, vector<32x32xf32>, vector<4x32xf32> -> vector<4x32xf32>
    %237 = arith.addf %228, %236 : vector<4x32xf32>
    %c28 = arith.constant 28 : index
    %c0_184 = arith.constant 0 : index
    %238 = tpu.strided_load %arg17[%c28, %c0_184] {strides = array<i32: 49, 1>} : memref<180x32xf32, #tpu.memory_space<vmem>>, vector<4x32xf32>
    %239 = vector.broadcast %56 : vector<1x32xf32> to vector<4x32xf32>
    %240 = arith.addf %238, %239 : vector<4x32xf32>
    %cst_185 = arith.constant 0.000000e+00 : f32
    %241 = vector.broadcast %cst_185 : f32 to vector<4x32xf32>
    %242 = arith.maximumf %240, %241 : vector<4x32xf32>
    %c20 = arith.constant 20 : index
    %c0_186 = arith.constant 0 : index
    %c0_187 = arith.constant 0 : index
    %243 = vector.load %arg5[%c20, %c0_186, %c0_187] : memref<25x32x32xf32, #tpu.memory_space<vmem>>, vector<1x32x32xf32>
    %244 = vector.shape_cast %243 : vector<1x32x32xf32> to vector<32x32xf32>
    %cst_188 = arith.constant dense<0.000000e+00> : vector<4x32xf32>
    %245 = tpu.matmul %242, %244, %cst_188 {dimension_numbers = #tpu.dot_dimension_numbers<[1], [0], [0], [1], [0, 0, 1, 1], [], []>} : vector<4x32xf32>, vector<32x32xf32>, vector<4x32xf32> -> vector<4x32xf32>
    %246 = arith.addf %237, %245 : vector<4x32xf32>
    %c29 = arith.constant 29 : index
    %c0_189 = arith.constant 0 : index
    %247 = tpu.strided_load %arg17[%c29, %c0_189] {strides = array<i32: 49, 1>} : memref<180x32xf32, #tpu.memory_space<vmem>>, vector<4x32xf32>
    %248 = vector.broadcast %56 : vector<1x32xf32> to vector<4x32xf32>
    %249 = arith.addf %247, %248 : vector<4x32xf32>
    %cst_190 = arith.constant 0.000000e+00 : f32
    %250 = vector.broadcast %cst_190 : f32 to vector<4x32xf32>
    %251 = arith.maximumf %249, %250 : vector<4x32xf32>
    %c21_191 = arith.constant 21 : index
    %c0_192 = arith.constant 0 : index
    %c0_193 = arith.constant 0 : index
    %252 = vector.load %arg5[%c21_191, %c0_192, %c0_193] : memref<25x32x32xf32, #tpu.memory_space<vmem>>, vector<1x32x32xf32>
    %253 = vector.shape_cast %252 : vector<1x32x32xf32> to vector<32x32xf32>
    %cst_194 = arith.constant dense<0.000000e+00> : vector<4x32xf32>
    %254 = tpu.matmul %251, %253, %cst_194 {dimension_numbers = #tpu.dot_dimension_numbers<[1], [0], [0], [1], [0, 0, 1, 1], [], []>} : vector<4x32xf32>, vector<32x32xf32>, vector<4x32xf32> -> vector<4x32xf32>
    %255 = arith.addf %246, %254 : vector<4x32xf32>
    %c30 = arith.constant 30 : index
    %c0_195 = arith.constant 0 : index
    %256 = tpu.strided_load %arg17[%c30, %c0_195] {strides = array<i32: 49, 1>} : memref<180x32xf32, #tpu.memory_space<vmem>>, vector<4x32xf32>
    %257 = vector.broadcast %56 : vector<1x32xf32> to vector<4x32xf32>
    %258 = arith.addf %256, %257 : vector<4x32xf32>
    %cst_196 = arith.constant 0.000000e+00 : f32
    %259 = vector.broadcast %cst_196 : f32 to vector<4x32xf32>
    %260 = arith.maximumf %258, %259 : vector<4x32xf32>
    %c22_197 = arith.constant 22 : index
    %c0_198 = arith.constant 0 : index
    %c0_199 = arith.constant 0 : index
    %261 = vector.load %arg5[%c22_197, %c0_198, %c0_199] : memref<25x32x32xf32, #tpu.memory_space<vmem>>, vector<1x32x32xf32>
    %262 = vector.shape_cast %261 : vector<1x32x32xf32> to vector<32x32xf32>
    %cst_200 = arith.constant dense<0.000000e+00> : vector<4x32xf32>
    %263 = tpu.matmul %260, %262, %cst_200 {dimension_numbers = #tpu.dot_dimension_numbers<[1], [0], [0], [1], [0, 0, 1, 1], [], []>} : vector<4x32xf32>, vector<32x32xf32>, vector<4x32xf32> -> vector<4x32xf32>
    %264 = arith.addf %255, %263 : vector<4x32xf32>
    %c31 = arith.constant 31 : index
    %c0_201 = arith.constant 0 : index
    %265 = tpu.strided_load %arg17[%c31, %c0_201] {strides = array<i32: 49, 1>} : memref<180x32xf32, #tpu.memory_space<vmem>>, vector<4x32xf32>
    %266 = vector.broadcast %56 : vector<1x32xf32> to vector<4x32xf32>
    %267 = arith.addf %265, %266 : vector<4x32xf32>
    %cst_202 = arith.constant 0.000000e+00 : f32
    %268 = vector.broadcast %cst_202 : f32 to vector<4x32xf32>
    %269 = arith.maximumf %267, %268 : vector<4x32xf32>
    %c23_203 = arith.constant 23 : index
    %c0_204 = arith.constant 0 : index
    %c0_205 = arith.constant 0 : index
    %270 = vector.load %arg5[%c23_203, %c0_204, %c0_205] : memref<25x32x32xf32, #tpu.memory_space<vmem>>, vector<1x32x32xf32>
    %271 = vector.shape_cast %270 : vector<1x32x32xf32> to vector<32x32xf32>
    %cst_206 = arith.constant dense<0.000000e+00> : vector<4x32xf32>
    %272 = tpu.matmul %269, %271, %cst_206 {dimension_numbers = #tpu.dot_dimension_numbers<[1], [0], [0], [1], [0, 0, 1, 1], [], []>} : vector<4x32xf32>, vector<32x32xf32>, vector<4x32xf32> -> vector<4x32xf32>
    %273 = arith.addf %264, %272 : vector<4x32xf32>
    %c32 = arith.constant 32 : index
    %c0_207 = arith.constant 0 : index
    %274 = tpu.strided_load %arg17[%c32, %c0_207] {strides = array<i32: 49, 1>} : memref<180x32xf32, #tpu.memory_space<vmem>>, vector<4x32xf32>
    %275 = vector.broadcast %56 : vector<1x32xf32> to vector<4x32xf32>
    %276 = arith.addf %274, %275 : vector<4x32xf32>
    %cst_208 = arith.constant 0.000000e+00 : f32
    %277 = vector.broadcast %cst_208 : f32 to vector<4x32xf32>
    %278 = arith.maximumf %276, %277 : vector<4x32xf32>
    %c24_209 = arith.constant 24 : index
    %c0_210 = arith.constant 0 : index
    %c0_211 = arith.constant 0 : index
    %279 = vector.load %arg5[%c24_209, %c0_210, %c0_211] : memref<25x32x32xf32, #tpu.memory_space<vmem>>, vector<1x32x32xf32>
    %280 = vector.shape_cast %279 : vector<1x32x32xf32> to vector<32x32xf32>
    %cst_212 = arith.constant dense<0.000000e+00> : vector<4x32xf32>
    %281 = tpu.matmul %278, %280, %cst_212 {dimension_numbers = #tpu.dot_dimension_numbers<[1], [0], [0], [1], [0, 0, 1, 1], [], []>} : vector<4x32xf32>, vector<32x32xf32>, vector<4x32xf32> -> vector<4x32xf32>
    %282 = arith.addf %273, %281 : vector<4x32xf32>
    %c0_213 = arith.constant 0 : index
    %c0_214 = arith.constant 0 : index
    %283 = vector.load %arg6[%c0_213, %c0_214] : memref<1x32xf32, #tpu.memory_space<vmem>>, vector<1x32xf32>
    %284 = vector.broadcast %283 : vector<1x32xf32> to vector<4x32xf32>
    %285 = arith.addf %282, %284 : vector<4x32xf32>
    %cst_215 = arith.constant dense<0.000000e+00> : vector<4xf32>
    %286 = vector.multi_reduction <add>, %285, %cst_215 [1] : vector<4x32xf32> to vector<4xf32>
    %287 = vector.shape_cast %286 : vector<4xf32> to vector<4x1xf32>
    %cst_216 = arith.constant 3.200000e+01 : f32
    %288 = vector.broadcast %cst_216 : f32 to vector<4x1xf32>
    %289 = arith.divf %287, %288 : vector<4x1xf32>
    %290 = vector.broadcast %289 : vector<4x1xf32> to vector<4x32xf32>
    %291 = arith.subf %285, %290 : vector<4x32xf32>
    %292 = arith.mulf %291, %291 : vector<4x32xf32>
    %cst_217 = arith.constant dense<0.000000e+00> : vector<4xf32>
    %293 = vector.multi_reduction <add>, %292, %cst_217 [1] : vector<4x32xf32> to vector<4xf32>
    %294 = vector.shape_cast %293 : vector<4xf32> to vector<4x1xf32>
    %cst_218 = arith.constant 3.200000e+01 : f32
    %295 = vector.broadcast %cst_218 : f32 to vector<4x1xf32>
    %296 = arith.divf %294, %295 : vector<4x1xf32>
    %297 = vector.broadcast %289 : vector<4x1xf32> to vector<4x32xf32>
    %298 = arith.subf %285, %297 : vector<4x32xf32>
    %cst_219 = arith.constant 9.99999974E-6 : f32
    %299 = vector.broadcast %cst_219 : f32 to vector<4x1xf32>
    %300 = arith.addf %296, %299 : vector<4x1xf32>
    %301 = math.rsqrt %300 : vector<4x1xf32>
    %302 = vector.broadcast %301 : vector<4x1xf32> to vector<4x32xf32>
    %303 = arith.mulf %298, %302 : vector<4x32xf32>
    %c0_220 = arith.constant 0 : index
    %c0_221 = arith.constant 0 : index
    %304 = vector.load %arg7[%c0_220, %c0_221] : memref<1x32xf32, #tpu.memory_space<vmem>>, vector<1x32xf32>
    %305 = vector.broadcast %304 : vector<1x32xf32> to vector<4x32xf32>
    %306 = arith.mulf %303, %305 : vector<4x32xf32>
    %c0_222 = arith.constant 0 : index
    %c0_223 = arith.constant 0 : index
    %307 = vector.load %arg8[%c0_222, %c0_223] : memref<1x32xf32, #tpu.memory_space<vmem>>, vector<1x32xf32>
    %308 = vector.broadcast %307 : vector<1x32xf32> to vector<4x32xf32>
    %309 = arith.addf %306, %308 : vector<4x32xf32>
    %310 = math.tanh %309 : vector<4x32xf32>
    %c0_224 = arith.constant 0 : index
    %c0_225 = arith.constant 0 : index
    %311 = vector.load %arg9[%c0_224, %c0_225] : memref<4x1xf32, #tpu.memory_space<vmem>>, vector<4x1xf32>
    %c0_226 = arith.constant 0 : index
    %c0_227 = arith.constant 0 : index
    %c0_228 = arith.constant 0 : index
    %312 = vector.load %arg10[%c0_226, %c0_227, %c0_228] : memref<2x32x32xf32, #tpu.memory_space<vmem>>, vector<1x32x32xf32>
    %313 = vector.shape_cast %312 : vector<1x32x32xf32> to vector<32x32xf32>
    %cst_229 = arith.constant dense<0.000000e+00> : vector<4x32xf32>
    %314 = tpu.matmul %310, %313, %cst_229 {dimension_numbers = #tpu.dot_dimension_numbers<[1], [0], [0], [1], [0, 0, 1, 1], [], []>} : vector<4x32xf32>, vector<32x32xf32>, vector<4x32xf32> -> vector<4x32xf32>
    %c0_230 = arith.constant 0 : index
    %c0_231 = arith.constant 0 : index
    %c0_232 = arith.constant 0 : index
    %315 = vector.load %arg11[%c0_230, %c0_231, %c0_232] : memref<2x1x32xf32, #tpu.memory_space<vmem>>, vector<1x1x32xf32>
    %316 = vector.shape_cast %315 : vector<1x1x32xf32> to vector<1x32xf32>
    %317 = vector.broadcast %311 : vector<4x1xf32> to vector<4x32xf32>
    %318 = vector.broadcast %316 : vector<1x32xf32> to vector<4x32xf32>
    %319 = arith.mulf %317, %318 : vector<4x32xf32>
    %320 = arith.addf %314, %319 : vector<4x32xf32>
    %c0_233 = arith.constant 0 : index
    %c0_234 = arith.constant 0 : index
    %c0_235 = arith.constant 0 : index
    %321 = vector.load %arg12[%c0_233, %c0_234, %c0_235] : memref<2x1x32xf32, #tpu.memory_space<vmem>>, vector<1x1x32xf32>
    %322 = vector.shape_cast %321 : vector<1x1x32xf32> to vector<1x32xf32>
    %323 = vector.broadcast %322 : vector<1x32xf32> to vector<4x32xf32>
    %324 = arith.addf %320, %323 : vector<4x32xf32>
    %cst_236 = arith.constant 0.000000e+00 : f32
    %325 = vector.broadcast %cst_236 : f32 to vector<4x32xf32>
    %326 = arith.maximumf %324, %325 : vector<4x32xf32>
    %c0_237 = arith.constant 0 : index
    %c0_238 = arith.constant 0 : index
    %c0_239 = arith.constant 0 : index
    %327 = vector.load %arg13[%c0_237, %c0_238, %c0_239] : memref<2x32x32xf32, #tpu.memory_space<vmem>>, vector<1x32x32xf32>
    %328 = vector.shape_cast %327 : vector<1x32x32xf32> to vector<32x32xf32>
    %cst_240 = arith.constant dense<0.000000e+00> : vector<4x32xf32>
    %329 = tpu.matmul %326, %328, %cst_240 {dimension_numbers = #tpu.dot_dimension_numbers<[1], [0], [0], [1], [0, 0, 1, 1], [], []>} : vector<4x32xf32>, vector<32x32xf32>, vector<4x32xf32> -> vector<4x32xf32>
    %c0_241 = arith.constant 0 : index
    %c0_242 = arith.constant 0 : index
    %c0_243 = arith.constant 0 : index
    %330 = vector.load %arg14[%c0_241, %c0_242, %c0_243] : memref<2x1x32xf32, #tpu.memory_space<vmem>>, vector<1x1x32xf32>
    %331 = vector.shape_cast %330 : vector<1x1x32xf32> to vector<1x32xf32>
    %332 = vector.broadcast %331 : vector<1x32xf32> to vector<4x32xf32>
    %333 = arith.addf %329, %332 : vector<4x32xf32>
    %c0_244 = arith.constant 0 : index
    %c0_245 = arith.constant 0 : index
    %334 = vector.load %arg15[%c0_244, %c0_245] : memref<8x32xf32, #tpu.memory_space<vmem>>, vector<4x32xf32>
    tpu.vector_store %arg15[%c0_244, %c0_245], %333 {strides = array<i32>} : memref<8x32xf32, #tpu.memory_space<vmem>>, vector<4x32xf32>,
    %c1_246 = arith.constant 1 : index
    %c0_247 = arith.constant 0 : index
    %c0_248 = arith.constant 0 : index
    %335 = vector.load %arg10[%c1_246, %c0_247, %c0_248] : memref<2x32x32xf32, #tpu.memory_space<vmem>>, vector<1x32x32xf32>
    %336 = vector.shape_cast %335 : vector<1x32x32xf32> to vector<32x32xf32>
    %cst_249 = arith.constant dense<0.000000e+00> : vector<4x32xf32>
    %337 = tpu.matmul %310, %336, %cst_249 {dimension_numbers = #tpu.dot_dimension_numbers<[1], [0], [0], [1], [0, 0, 1, 1], [], []>} : vector<4x32xf32>, vector<32x32xf32>, vector<4x32xf32> -> vector<4x32xf32>
    %c1_250 = arith.constant 1 : index
    %c0_251 = arith.constant 0 : index
    %c0_252 = arith.constant 0 : index
    %338 = vector.load %arg11[%c1_250, %c0_251, %c0_252] : memref<2x1x32xf32, #tpu.memory_space<vmem>>, vector<1x1x32xf32>
    %339 = vector.shape_cast %338 : vector<1x1x32xf32> to vector<1x32xf32>
    %340 = vector.broadcast %311 : vector<4x1xf32> to vector<4x32xf32>
    %341 = vector.broadcast %339 : vector<1x32xf32> to vector<4x32xf32>
    %342 = arith.mulf %340, %341 : vector<4x32xf32>
    %343 = arith.addf %337, %342 : vector<4x32xf32>
    %c1_253 = arith.constant 1 : index
    %c0_254 = arith.constant 0 : index
    %c0_255 = arith.constant 0 : index
    %344 = vector.load %arg12[%c1_253, %c0_254, %c0_255] : memref<2x1x32xf32, #tpu.memory_space<vmem>>, vector<1x1x32xf32>
    %345 = vector.shape_cast %344 : vector<1x1x32xf32> to vector<1x32xf32>
    %346 = vector.broadcast %345 : vector<1x32xf32> to vector<4x32xf32>
    %347 = arith.addf %343, %346 : vector<4x32xf32>
    %cst_256 = arith.constant 0.000000e+00 : f32
    %348 = vector.broadcast %cst_256 : f32 to vector<4x32xf32>
    %349 = arith.maximumf %347, %348 : vector<4x32xf32>
    %c1_257 = arith.constant 1 : index
    %c0_258 = arith.constant 0 : index
    %c0_259 = arith.constant 0 : index
    %350 = vector.load %arg13[%c1_257, %c0_258, %c0_259] : memref<2x32x32xf32, #tpu.memory_space<vmem>>, vector<1x32x32xf32>
    %351 = vector.shape_cast %350 : vector<1x32x32xf32> to vector<32x32xf32>
    %cst_260 = arith.constant dense<0.000000e+00> : vector<4x32xf32>
    %352 = tpu.matmul %349, %351, %cst_260 {dimension_numbers = #tpu.dot_dimension_numbers<[1], [0], [0], [1], [0, 0, 1, 1], [], []>} : vector<4x32xf32>, vector<32x32xf32>, vector<4x32xf32> -> vector<4x32xf32>
    %c1_261 = arith.constant 1 : index
    %c0_262 = arith.constant 0 : index
    %c0_263 = arith.constant 0 : index
    %353 = vector.load %arg14[%c1_261, %c0_262, %c0_263] : memref<2x1x32xf32, #tpu.memory_space<vmem>>, vector<1x1x32xf32>
    %354 = vector.shape_cast %353 : vector<1x1x32xf32> to vector<1x32xf32>
    %355 = vector.broadcast %354 : vector<1x32xf32> to vector<4x32xf32>
    %356 = arith.addf %352, %355 : vector<4x32xf32>
    %c4_264 = arith.constant 4 : index
    %c0_265 = arith.constant 0 : index
    %357 = vector.load %arg15[%c4_264, %c0_265] : memref<8x32xf32, #tpu.memory_space<vmem>>, vector<4x32xf32>
    tpu.vector_store %arg15[%c4_264, %c0_265], %356 {strides = array<i32>} : memref<8x32xf32, #tpu.memory_space<vmem>>, vector<4x32xf32>,
    return
  }
}

</mosaic_0001>

<llo_original>
// kernel: tpu_custom_call.1
$region0: #{tpu_custom_call.1}
  #allocation0 [shape = 'u32[]', space=smem, size = 0x4, offset = 0x4, fixed_abs, tag = 'smem constant byte address 0x4 - core index']
  #allocation1 [shape = 'u32[144,128]{1,0:T(1,128)}', space=vmem, size = 0x12000, scoped, tag = 'internal scratch']
  #allocation2 [shape = 'f32[196,32]{1,0:T(8,128)}', space=vmem, size = 0x19000, scoped, tag = 'scratch operand']
  #allocation3 [shape = 'f32[180,32]{1,0:T(8,128)}', space=vmem, size = 0x17000, scoped, tag = 'scratch operand']
  %s0 = inlined_call_operand.vmem [shape: f32[196,36], index: 0, kind: input, shape index: {}]
  %s1 = inlined_call_operand.vmem [shape: f32[36,32], index: 1, kind: input, shape index: {}]
  %s2 = inlined_call_operand.vmem [shape: f32[1,32], index: 2, kind: input, shape index: {}]
  %s3 = inlined_call_operand.vmem [shape: f32[9,32,32], index: 3, kind: input, shape index: {}]
  %s4 = inlined_call_operand.vmem [shape: f32[1,32], index: 4, kind: input, shape index: {}]
  %s5 = inlined_call_operand.hbm [shape: f32[25,32,32], index: 5, kind: input, shape index: {}]
  %s6 = inlined_call_operand.vmem [shape: f32[1,32], index: 6, kind: input, shape index: {}]
  %s7 = inlined_call_operand.vmem [shape: f32[1,32], index: 7, kind: input, shape index: {}]
  %s8 = inlined_call_operand.vmem [shape: f32[1,32], index: 8, kind: input, shape index: {}]
  %s9 = inlined_call_operand.vmem [shape: f32[4,1], index: 9, kind: input, shape index: {}]
  %s10 = inlined_call_operand.vmem [shape: f32[2,32,32], index: 10, kind: input, shape index: {}]
  %s11 = inlined_call_operand.vmem [shape: f32[2,1,32], index: 11, kind: input, shape index: {}]
  %s12 = inlined_call_operand.vmem [shape: f32[2,1,32], index: 12, kind: input, shape index: {}]
  %s13 = inlined_call_operand.hbm [shape: f32[2,32,32], index: 13, kind: input, shape index: {}]
  %s14 = inlined_call_operand.vmem [shape: f32[2,1,32], index: 14, kind: input, shape index: {}]
  %s15 = inlined_call_operand.hbm [shape: f32[8,32], index: 15, kind: output, shape index: {}]
  %s16 = sld [smem:[#allocation0]]
  $region78: #{tpu_custom_call.1} parent=0
    _
  %s18 = ssub.s32 1, %s16
  %s19 = scalar_select 0, %s18, %s16
  $region1: #{tpu_custom_call.1} parent=0
    #allocation4 [shape = 'u8[409600]{0}', space=vmem, size = 0x64000, scoped, tag = 'input window, operand 5, single buffered']
    #allocation5 [shape = 's32[1]{0}', space=sflag, size = 0x4, scoped, tag = 'scoped memory for tpu_custom_call.1']
    #allocation6 [shape = 's32[1]{0}', space=sflag, size = 0x4, scoped, tag = 'scoped memory for tpu_custom_call.1']
    #allocation7 [shape = 'u8[32768]{0}', space=vmem, size = 0x8000, scoped, tag = 'input window, operand 13, single buffered']
    #allocation8 [shape = 's32[1]{0}', space=sflag, size = 0x4, scoped, tag = 'scoped memory for tpu_custom_call.1']
    #allocation9 [shape = 'u8[4096]{0}', space=vmem, size = 0x1000, scoped, tag = 'output window, operand 0, single buffered']
    %20 = vsyncpa [#allocation5], 0
    %21 = vsyncpa [#allocation8], 0
    %22 = vsyncpa [#allocation6], 0
    // Predicated region
    $region2: #{tpu_custom_call.1} parent=1 // pred_check
      _
    $region3: #{tpu_custom_call.1} parent=1 // pred_check_branch
      %24 = sbr.rel (0) target = $region5
    $region4: #{tpu_custom_call.1} parent=1 // pred_region
      _
    $region5: #{tpu_custom_call.1} parent=1 // pred_fallthru
      _
    // Predicated region
    $region6: #{tpu_custom_call.1} parent=1 // pred_check
      _
    $region7: #{tpu_custom_call.1} parent=1 // pred_check_branch
      %26 = sbr.rel (0) target = $region9
    $region8: #{tpu_custom_call.1} parent=1 // pred_region
      _
    $region9: #{tpu_custom_call.1} parent=1 // pred_fallthru
      _
    // Predicated region
    $region10: #{tpu_custom_call.1} parent=1 // pred_check
      _
    $region11: #{tpu_custom_call.1} parent=1 // pred_check_branch
      %28 = sbr.rel (0) target = $region13
    $region12: #{tpu_custom_call.1} parent=1 // pred_region
      _
    $region13: #{tpu_custom_call.1} parent=1 // pred_fallthru
      _
    // Predicated region
    $region14: #{tpu_custom_call.1} parent=1 // pred_check
      _
    $region15: #{tpu_custom_call.1} parent=1 // pred_check_branch
      %30 = sbr.rel (0) target = $region17
    $region16: #{tpu_custom_call.1} parent=1 // pred_region
      _
    $region17: #{tpu_custom_call.1} parent=1 // pred_fallthru
      _
    // Predicated region
    $region18: #{tpu_custom_call.1} parent=1 // pred_check
      _
    $region19: #{tpu_custom_call.1} parent=1 // pred_check_branch
      %32 = sbr.rel (0) target = $region21
    $region20: #{tpu_custom_call.1} parent=1 // pred_region
      _
    $region21: #{tpu_custom_call.1} parent=1 // pred_fallthru
      _
    // Predicated region
    $region22: #{tpu_custom_call.1} parent=1 // pred_check
      _
    $region23: #{tpu_custom_call.1} parent=1 // pred_check_branch
      %34 = sbr.rel (0) target = $region25
    $region24: #{tpu_custom_call.1} parent=1 // pred_region
      %s36 = ssub.s32 12800, 12800
      %37 = vsyncadd [#allocation5], %s36
      %s38 = sshll.u32 [#allocation4], 4
      %s39 = int_to_ptr.vmem [resolvable:$true] %s38
      %44 = dma.hbm_to_vmem [thread:$0]  %s5, 12800, %s39, [#allocation5], 128, 128, 8
    $region25: #{tpu_custom_call.1} parent=1 // pred_fallthru
      _
    // Predicated region
    $region26: #{tpu_custom_call.1} parent=1 // pred_check
      _
    $region27: #{tpu_custom_call.1} parent=1 // pred_check_branch
      %46 = sbr.rel (0) target = $region29
    $region28: #{tpu_custom_call.1} parent=1 // pred_region
      _
    $region29: #{tpu_custom_call.1} parent=1 // pred_fallthru
      _
    // Predicated region
    $region30: #{tpu_custom_call.1} parent=1 // pred_check
      _
    $region31: #{tpu_custom_call.1} parent=1 // pred_check_branch
      %48 = sbr.rel (0) target = $region33
    $region32: #{tpu_custom_call.1} parent=1 // pred_region
      _
    $region33: #{tpu_custom_call.1} parent=1 // pred_fallthru
      _
    // Predicated region
    $region34: #{tpu_custom_call.1} parent=1 // pred_check
      _
    $region35: #{tpu_custom_call.1} parent=1 // pred_check_branch
      %50 = sbr.rel (0) target = $region37
    $region36: #{tpu_custom_call.1} parent=1 // pred_region
      _
    $region37: #{tpu_custom_call.1} parent=1 // pred_fallthru
      _
    // Predicated region
    $region38: #{tpu_custom_call.1} parent=1 // pred_check
      _
    $region39: #{tpu_custom_call.1} parent=1 // pred_check_branch
      %52 = sbr.rel (0) target = $region41
    $region40: #{tpu_custom_call.1} parent=1 // pred_region
      _
    $region41: #{tpu_custom_call.1} parent=1 // pred_fallthru
      _
    // Predicated region
    $region42: #{tpu_custom_call.1} parent=1 // pred_check
      _
    $region43: #{tpu_custom_call.1} parent=1 // pred_check_branch
      %54 = sbr.rel (0) target = $region45
    $region44: #{tpu_custom_call.1} parent=1 // pred_region
      _
    $region45: #{tpu_custom_call.1} parent=1 // pred_fallthru
      _
    // Predicated region
    $region46: #{tpu_custom_call.1} parent=1 // pred_check
      _
    $region47: #{tpu_custom_call.1} parent=1 // pred_check_branch
      %56 = sbr.rel (0) target = $region49
    $region48: #{tpu_custom_call.1} parent=1 // pred_region
      _
    $region49: #{tpu_custom_call.1} parent=1 // pred_fallthru
      _
    // Predicated region
    $region50: #{tpu_custom_call.1} parent=1 // pred_check
      _
    $region51: #{tpu_custom_call.1} parent=1 // pred_check_branch
      %58 = sbr.rel (0) target = $region53
    $region52: #{tpu_custom_call.1} parent=1 // pred_region
      _
    $region53: #{tpu_custom_call.1} parent=1 // pred_fallthru
      _
    // Predicated region
    $region54: #{tpu_custom_call.1} parent=1 // pred_check
      _
    $region55: #{tpu_custom_call.1} parent=1 // pred_check_branch
      %60 = sbr.rel (0) target = $region57
    $region56: #{tpu_custom_call.1} parent=1 // pred_region
      %s62 = ssub.s32 1024, 1024
      %63 = vsyncadd [#allocation8], %s62
      %s64 = sshll.u32 [#allocation7], 4
      %s65 = int_to_ptr.vmem [resolvable:$true] %s64
      %70 = dma.hbm_to_vmem [thread:$0]  %s13, 1024, %s65, [#allocation8], 128, 128, 8
    $region57: #{tpu_custom_call.1} parent=1 // pred_fallthru
      _
    // Predicated region
    $region58: #{tpu_custom_call.1} parent=1 // pred_check
      _
    $region59: #{tpu_custom_call.1} parent=1 // pred_check_branch
      %72 = sbr.rel (0) target = $region61
    $region60: #{tpu_custom_call.1} parent=1 // pred_region
      _
    $region61: #{tpu_custom_call.1} parent=1 // pred_fallthru
      _
    // Predicated region
    $region62: #{tpu_custom_call.1} parent=1 // pred_check
      _
    $region63: #{tpu_custom_call.1} parent=1 // pred_check_branch
      %74 = sbr.rel (0) target = $region65
    $region64: #{tpu_custom_call.1} parent=1 // pred_region
      %75 = dma.done [#allocation5], 12800
    $region65: #{tpu_custom_call.1} parent=1 // pred_fallthru
      _
    // Predicated region
    $region66: #{tpu_custom_call.1} parent=1 // pred_check
      _
    $region67: #{tpu_custom_call.1} parent=1 // pred_check_branch
      %77 = sbr.rel (0) target = $region69
    $region68: #{tpu_custom_call.1} parent=1 // pred_region
      %78 = dma.done [#allocation8], 1024
    $region69: #{tpu_custom_call.1} parent=1 // pred_fallthru
      _
    %v79 = vld [vmem:[%s0] sm:$0xff]
    %v80 = vld [vmem:[%s0 + $0x8] sm:$0xff]
    %v81 = vld [vmem:[%s0 + $0x10] sm:$0xff]
    %v82 = vld [vmem:[%s0 + $0x18] sm:$0xff]
    %v83 = vld [vmem:[%s0 + $0x20] sm:$0xff]
    %v84 = vld [vmem:[%s0 + $0x28] sm:$0xff]
    %v85 = vld [vmem:[%s0 + $0x30] sm:$0xff]
    %v86 = vld [vmem:[%s0 + $0x38] sm:$0xff]
    %v87 = vld [vmem:[%s0 + $0x40] sm:$0xff]
    %v88 = vld [vmem:[%s0 + $0x48] sm:$0xff]
    %v89 = vld [vmem:[%s0 + $0x50] sm:$0xff]
    %v90 = vld [vmem:[%s0 + $0x58] sm:$0xff]
    %v91 = vld [vmem:[%s0 + $0x60] sm:$0xff]
    %v92 = vld [vmem:[%s0 + $0x68] sm:$0xff]
    %v93 = vld [vmem:[%s0 + $0x70] sm:$0xff]
    %v94 = vld [vmem:[%s0 + $0x78] sm:$0xff]
    %v95 = vld [vmem:[%s0 + $0x80] sm:$0xff]
    %v96 = vld [vmem:[%s0 + $0x88] sm:$0xff]
    %v97 = vld [vmem:[%s0 + $0x90] sm:$0xff]
    %v98 = vld [vmem:[%s0 + $0x98] sm:$0xff]
    %v99 = vld [vmem:[%s0 + $0xa0] sm:$0xff]
    %v100 = vld [vmem:[%s0 + $0xa8] sm:$0xff]
    %v101 = vld [vmem:[%s0 + $0xb0] sm:$0xff]
    %v102 = vld [vmem:[%s0 + $0xb8] sm:$0xff]
    %v103 = vld [vmem:[%s0 + $0xc0] sm:$0xf]
    %v104 = vld [vmem:[%s1] sm:$0xff]
    %v105 = vld [vmem:[%s1 + $0x8] sm:$0xff]
    %v106 = vld [vmem:[%s1 + $0x10] sm:$0xff]
    %v107 = vld [vmem:[%s1 + $0x18] sm:$0xff]
    %v108 = vld [vmem:[%s1 + $0x20] sm:$0xf]
    %v109 = vld [vmem:[%s2] sm:$0x1]
    %v111 = vlaneseq
    %v112 = vshrl.u32 %v111, 7
    %v113 = vsub.s32 0, %v112
    %v114 = vrot.slane %v109, %v113
    %vm116 = vcmask 293888
    %v118 = vsel %vm116, %v79, 0
    %v121 = vsel %vm116, %v80, 0
    %v124 = vsel %vm116, %v81, 0
    %v127 = vsel %vm116, %v82, 0
    %v130 = vsel %vm116, %v83, 0
    %v133 = vsel %vm116, %v84, 0
    %v136 = vsel %vm116, %v85, 0
    %v139 = vsel %vm116, %v86, 0
    %v142 = vsel %vm116, %v87, 0
    %v145 = vsel %vm116, %v88, 0
    %v148 = vsel %vm116, %v89, 0
    %v151 = vsel %vm116, %v90, 0
    %v154 = vsel %vm116, %v91, 0
    %v157 = vsel %vm116, %v92, 0
    %v160 = vsel %vm116, %v93, 0
    %v163 = vsel %vm116, %v94, 0
    %v166 = vsel %vm116, %v95, 0
    %v169 = vsel %vm116, %v96, 0
    %v172 = vsel %vm116, %v97, 0
    %v175 = vsel %vm116, %v98, 0
    %v178 = vsel %vm116, %v99, 0
    %v181 = vsel %vm116, %v100, 0
    %v184 = vsel %vm116, %v101, 0
    %v187 = vsel %vm116, %v102, 0
    %v190 = vsel %vm116, %v103, 0
    %vm192 = vcmask 1043456
    %v194 = vsel %vm192, %v108, 0
    %196 = vmatprep.subr.mxu0 0.0
    %197 = vmatpush1.msra.mxu0 0.0
    %198 = vmatprep.subr.mxu0 0.0
    %199 = vmatpush1.msra.mxu0 0.0
    %200 = vmatprep.subr.mxu0 0.0
    %201 = vmatpush1.msra.mxu0 0.0
    %202 = vmatprep.subr.mxu0 0.0
    %203 = vmatpush1.msra.mxu0 0.0
    %204 = vmatprep.subr.mxu0 0.0
    %205 = vmatpush1.msra.mxu0 0.0
    %206 = vmatprep.subr.mxu0 0.0
    %207 = vmatpush1.msra.mxu0 0.0
    %208 = vmatprep.subr.mxu0 0.0
    %209 = vmatpush1.msra.mxu0 0.0
    %210 = vmatprep.subr.mxu0 0.0
    %211 = vmatpush1.msra.mxu0 0.0
    %212 = vmatprep.subr.mxu0 0.0
    %213 = vmatpush1.msra.mxu0 0.0
    %214 = vmatprep.subr.mxu0 0.0
    %215 = vmatpush1.msra.mxu0 0.0
    %216 = vmatprep.subr.mxu0 0.0
    %217 = vmatpush1.msra.mxu0 0.0
    %218 = vmatprep.subr.mxu0 0.0
    %219 = vmatpush1.msra.mxu0 %v194
    %220 = vmatprep.subr.mxu0 0.0
    %221 = vmatpush1.msra.mxu0 %v107
    %222 = vmatprep.subr.mxu0 0.0
    %223 = vmatpush1.msra.mxu0 %v106
    %224 = vmatprep.subr.mxu0 0.0
    %225 = vmatpush1.msra.mxu0 %v105
    %226 = vmatprep.subr.mxu0 0.0
    %227 = vmatpush1.msra.mxu0 %v104
    %228 = vmatprep.subr.mxu0 0.0
    %229 = vmatpush2.msra.mxu0 0.0
    %230 = vmatprep.subr.mxu0 0.0
    %231 = vmatpush2.msra.mxu0 0.0
    %232 = vmatprep.subr.mxu0 0.0
    %233 = vmatpush2.msra.mxu0 0.0
    %234 = vmatprep.subr.mxu0 0.0
    %235 = vmatpush2.msra.mxu0 0.0
    %236 = vmatprep.subr.mxu0 0.0
    %237 = vmatpush2.msra.mxu0 0.0
    %238 = vmatprep.subr.mxu0 0.0
    %239 = vmatpush2.msra.mxu0 0.0
    %240 = vmatprep.subr.mxu0 0.0
    %241 = vmatpush2.msra.mxu0 0.0
    %242 = vmatprep.subr.mxu0 0.0
    %243 = vmatpush2.msra.mxu0 0.0
    %244 = vmatprep.subr.mxu0 0.0
    %245 = vmatpush2.msra.mxu0 0.0
    %246 = vmatprep.subr.mxu0 0.0
    %247 = vmatpush2.msra.mxu0 0.0
    %248 = vmatprep.subr.mxu0 0.0
    %249 = vmatpush2.msra.mxu0 0.0
    %250 = vmatprep.subr.mxu0 0.0
    %251 = vmatpush2.msra.mxu0 0.0
    %252 = vmatprep.subr.mxu0 0.0
    %253 = vmatpush2.msra.mxu0 0.0
    %254 = vmatprep.subr.mxu0 0.0
    %255 = vmatpush2.msra.mxu0 0.0
    %256 = vmatprep.subr.mxu0 0.0
    %257 = vmatpush2.msra.mxu0 0.0
    %258 = vmatprep.subr.mxu0 0.0
    %259 = vmatpush2.msra.mxu0 0.0
    %260 = vmatprep.mubr.f32.mxu0 0.0
    %261 = vmatmul.mubr.f32.gmra.mxu0 %v118
    %v262 = vpop.f32.mrf.mxu0
    %v263 = vadd.f32 %v114, %v262
    %v264 = vpop.f32.mrf.mxu0
    %265 = vmatprep.mubr.f32.mxu0 0.0
    %266 = vmatmul.mubr.f32.gmra.mxu0 %v121
    %v267 = vpop.f32.mrf.mxu0
    %v268 = vadd.f32 %v114, %v267
    %v269 = vpop.f32.mrf.mxu0
    %270 = vmatprep.mubr.f32.mxu0 0.0
    %271 = vmatmul.mubr.f32.gmra.mxu0 %v124
    %v272 = vpop.f32.mrf.mxu0
    %v273 = vadd.f32 %v114, %v272
    %v274 = vpop.f32.mrf.mxu0
    %275 = vmatprep.mubr.f32.mxu0 0.0
    %276 = vmatmul.mubr.f32.gmra.mxu0 %v127
    %v277 = vpop.f32.mrf.mxu0
    %v278 = vadd.f32 %v114, %v277
    %v279 = vpop.f32.mrf.mxu0
    %280 = vmatprep.mubr.f32.mxu0 0.0
    %281 = vmatmul.mubr.f32.gmra.mxu0 %v130
    %v282 = vpop.f32.mrf.mxu0
    %v283 = vadd.f32 %v114, %v282
    %v284 = vpop.f32.mrf.mxu0
    %285 = vmatprep.mubr.f32.mxu0 0.0
    %286 = vmatmul.mubr.f32.gmra.mxu0 %v133
    %v287 = vpop.f32.mrf.mxu0
    %v288 = vadd.f32 %v114, %v287
    %v289 = vpop.f32.mrf.mxu0
    %290 = vmatprep.mubr.f32.mxu0 0.0
    %291 = vmatmul.mubr.f32.gmra.mxu0 %v136
    %v292 = vpop.f32.mrf.mxu0
    %v293 = vadd.f32 %v114, %v292
    %v294 = vpop.f32.mrf.mxu0
    %295 = vmatprep.mubr.f32.mxu0 0.0
    %296 = vmatmul.mubr.f32.gmra.mxu0 %v139
    %v297 = vpop.f32.mrf.mxu0
    %v298 = vadd.f32 %v114, %v297
    %v299 = vpop.f32.mrf.mxu0
    %300 = vmatprep.mubr.f32.mxu0 0.0
    %301 = vmatmul.mubr.f32.gmra.mxu0 %v142
    %v302 = vpop.f32.mrf.mxu0
    %v303 = vadd.f32 %v114, %v302
    %v304 = vpop.f32.mrf.mxu0
    %305 = vmatprep.mubr.f32.mxu0 0.0
    %306 = vmatmul.mubr.f32.gmra.mxu0 %v145
    %v307 = vpop.f32.mrf.mxu0
    %v308 = vadd.f32 %v114, %v307
    %v309 = vpop.f32.mrf.mxu0
    %310 = vmatprep.mubr.f32.mxu0 0.0
    %311 = vmatmul.mubr.f32.gmra.mxu0 %v148
    %v312 = vpop.f32.mrf.mxu0
    %v313 = vadd.f32 %v114, %v312
    %v314 = vpop.f32.mrf.mxu0
    %315 = vmatprep.mubr.f32.mxu0 0.0
    %316 = vmatmul.mubr.f32.gmra.mxu0 %v151
    %v317 = vpop.f32.mrf.mxu0
    %v318 = vadd.f32 %v114, %v317
    %v319 = vpop.f32.mrf.mxu0
    %320 = vmatprep.mubr.f32.mxu0 0.0
    %321 = vmatmul.mubr.f32.gmra.mxu0 %v154
    %v322 = vpop.f32.mrf.mxu0
    %v323 = vadd.f32 %v114, %v322
    %v324 = vpop.f32.mrf.mxu0
    %325 = vmatprep.mubr.f32.mxu0 0.0
    %326 = vmatmul.mubr.f32.gmra.mxu0 %v157
    %v327 = vpop.f32.mrf.mxu0
    %v328 = vadd.f32 %v114, %v327
    %v329 = vpop.f32.mrf.mxu0
    %330 = vmatprep.mubr.f32.mxu0 0.0
    %331 = vmatmul.mubr.f32.gmra.mxu0 %v160
    %v332 = vpop.f32.mrf.mxu0
    %v333 = vadd.f32 %v114, %v332
    %v334 = vpop.f32.mrf.mxu0
    %335 = vmatprep.mubr.f32.mxu0 0.0
    %336 = vmatmul.mubr.f32.gmra.mxu0 %v163
    %v337 = vpop.f32.mrf.mxu0
    %v338 = vadd.f32 %v114, %v337
    %v339 = vpop.f32.mrf.mxu0
    %340 = vmatprep.mubr.f32.mxu0 0.0
    %341 = vmatmul.mubr.f32.gmra.mxu0 %v166
    %v342 = vpop.f32.mrf.mxu0
    %v343 = vadd.f32 %v114, %v342
    %v344 = vpop.f32.mrf.mxu0
    %345 = vmatprep.mubr.f32.mxu0 0.0
    %346 = vmatmul.mubr.f32.gmra.mxu0 %v169
    %v347 = vpop.f32.mrf.mxu0
    %v348 = vadd.f32 %v114, %v347
    %v349 = vpop.f32.mrf.mxu0
    %350 = vmatprep.mubr.f32.mxu0 0.0
    %351 = vmatmul.mubr.f32.gmra.mxu0 %v172
    %v352 = vpop.f32.mrf.mxu0
    %v353 = vadd.f32 %v114, %v352
    %v354 = vpop.f32.mrf.mxu0
    %355 = vmatprep.mubr.f32.mxu0 0.0
    %356 = vmatmul.mubr.f32.gmra.mxu0 %v175
    %v357 = vpop.f32.mrf.mxu0
    %v358 = vadd.f32 %v114, %v357
    %v359 = vpop.f32.mrf.mxu0
    %360 = vmatprep.mubr.f32.mxu0 0.0
    %361 = vmatmul.mubr.f32.gmra.mxu0 %v178
    %v362 = vpop.f32.mrf.mxu0
    %v363 = vadd.f32 %v114, %v362
    %v364 = vpop.f32.mrf.mxu0
    %365 = vmatprep.mubr.f32.mxu0 0.0
    %366 = vmatmul.mubr.f32.gmra.mxu0 %v181
    %v367 = vpop.f32.mrf.mxu0
    %v368 = vadd.f32 %v114, %v367
    %v369 = vpop.f32.mrf.mxu0
    %370 = vmatprep.mubr.f32.mxu0 0.0
    %371 = vmatmul.mubr.f32.gmra.mxu0 %v184
    %v372 = vpop.f32.mrf.mxu0
    %v373 = vadd.f32 %v114, %v372
    %v374 = vpop.f32.mrf.mxu0
    %375 = vmatprep.mubr.f32.mxu0 0.0
    %376 = vmatmul.mubr.f32.gmra.mxu0 %v187
    %v377 = vpop.f32.mrf.mxu0
    %v378 = vadd.f32 %v114, %v377
    %v379 = vpop.f32.mrf.mxu0
    %380 = vmatprep.mubr.f32.mxu0 0.0
    %381 = vmatmul.mubr.f32.gmra.mxu0 %v190
    %v382 = vpop.f32.mrf.mxu0
    %v383 = vadd.f32 %v114, %v382
    %v384 = vpop.f32.mrf.mxu0
    %385 = vdwg.mxu0
    %v386 = vmax.f32 %v263, 0.0
    %v387 = vmax.f32 %v268, 0.0
    %v388 = vmax.f32 %v273, 0.0
    %v389 = vmax.f32 %v278, 0.0
    %v390 = vmax.f32 %v283, 0.0
    %v391 = vmax.f32 %v288, 0.0
    %v392 = vmax.f32 %v293, 0.0
    %v393 = vmax.f32 %v298, 0.0
    %v394 = vmax.f32 %v303, 0.0
    %v395 = vmax.f32 %v308, 0.0
    %v396 = vmax.f32 %v313, 0.0
    %v397 = vmax.f32 %v318, 0.0
    %v398 = vmax.f32 %v323, 0.0
    %v399 = vmax.f32 %v328, 0.0
    %v400 = vmax.f32 %v333, 0.0
    %v401 = vmax.f32 %v338, 0.0
    %v402 = vmax.f32 %v343, 0.0
    %v403 = vmax.f32 %v348, 0.0
    %v404 = vmax.f32 %v353, 0.0
    %v405 = vmax.f32 %v358, 0.0
    %v406 = vmax.f32 %v363, 0.0
    %v407 = vmax.f32 %v368, 0.0
    %v408 = vmax.f32 %v373, 0.0
    %v409 = vmax.f32 %v378, 0.0
    %v410 = vmax.f32 %v383, 0.0
    %vm411 = vcmask 261120
    %412 = vst.msk [vmem:[#allocation2] sm:$0xff] %vm411, %v386
    %413 = vst.msk [vmem:[#allocation2 + $0x8] sm:$0xff] %vm411, %v387
    %414 = vst.msk [vmem:[#allocation2 + $0x10] sm:$0xff] %vm411, %v388
    %415 = vst.msk [vmem:[#allocation2 + $0x18] sm:$0xff] %vm411, %v389
    %416 = vst.msk [vmem:[#allocation2 + $0x20] sm:$0xff] %vm411, %v390
    %417 = vst.msk [vmem:[#allocation2 + $0x28] sm:$0xff] %vm411, %v391
    %418 = vst.msk [vmem:[#allocation2 + $0x30] sm:$0xff] %vm411, %v392
    %419 = vst.msk [vmem:[#allocation2 + $0x38] sm:$0xff] %vm411, %v393
    %420 = vst.msk [vmem:[#allocation2 + $0x40] sm:$0xff] %vm411, %v394
    %421 = vst.msk [vmem:[#allocation2 + $0x48] sm:$0xff] %vm411, %v395
    %422 = vst.msk [vmem:[#allocation2 + $0x50] sm:$0xff] %vm411, %v396
    %423 = vst.msk [vmem:[#allocation2 + $0x58] sm:$0xff] %vm411, %v397
    %424 = vst.msk [vmem:[#allocation2 + $0x60] sm:$0xff] %vm411, %v398
    %425 = vst.msk [vmem:[#allocation2 + $0x68] sm:$0xff] %vm411, %v399
    %426 = vst.msk [vmem:[#allocation2 + $0x70] sm:$0xff] %vm411, %v400
    %427 = vst.msk [vmem:[#allocation2 + $0x78] sm:$0xff] %vm411, %v401
    %428 = vst.msk [vmem:[#allocation2 + $0x80] sm:$0xff] %vm411, %v402
    %429 = vst.msk [vmem:[#allocation2 + $0x88] sm:$0xff] %vm411, %v403
    %430 = vst.msk [vmem:[#allocation2 + $0x90] sm:$0xff] %vm411, %v404
    %431 = vst.msk [vmem:[#allocation2 + $0x98] sm:$0xff] %vm411, %v405
    %432 = vst.msk [vmem:[#allocation2 + $0xa0] sm:$0xff] %vm411, %v406
    %433 = vst.msk [vmem:[#allocation2 + $0xa8] sm:$0xff] %vm411, %v407
    %434 = vst.msk [vmem:[#allocation2 + $0xb0] sm:$0xff] %vm411, %v408
    %435 = vst.msk [vmem:[#allocation2 + $0xb8] sm:$0xff] %vm411, %v409
    %vm436 = vcmask 257024
    %437 = vst.msk [vmem:[#allocation2 + $0xc0] sm:$0xf] %vm436, %v410
    %v438 = vld [vmem:[#allocation2] sm:$0xff]
    %v439 = vld [vmem:[#allocation2 + $0x8] sm:$0xff]
    %v440 = vld [vmem:[#allocation2 + $0x10] sm:$0xff]
    %v441 = vld [vmem:[#allocation2 + $0x18] sm:$0xff]
    %v442 = vld [vmem:[#allocation2 + $0x20] sm:$0xff]
    %v443 = vld [vmem:[#allocation2 + $0x28] sm:$0xff]
    %v444 = vld [vmem:[#allocation2 + $0x30] sm:$0xff]
    %v445 = vld [vmem:[#allocation2 + $0x38] sm:$0xff]
    %v446 = vld [vmem:[#allocation2 + $0x40] sm:$0xff]
    %v447 = vld [vmem:[#allocation2 + $0x48] sm:$0xff]
    %v448 = vld [vmem:[#allocation2 + $0x50] sm:$0xff]
    %v449 = vld [vmem:[#allocation2 + $0x58] sm:$0xff]
    %v450 = vld [vmem:[#allocation2 + $0x60] sm:$0xff]
    %v451 = vld [vmem:[#allocation2 + $0x68] sm:$0xff]
    %v452 = vld [vmem:[#allocation2 + $0x70] sm:$0xff]
    %v453 = vld [vmem:[#allocation2 + $0x78] sm:$0xff]
    %v454 = vld [vmem:[#allocation2 + $0x80] sm:$0xff]
    %v455 = vld [vmem:[#allocation2 + $0x88] sm:$0xff]
    %v456 = vld [vmem:[#allocation2 + $0x90] sm:$0xff]
    %v457 = vld [vmem:[#allocation2 + $0x98] sm:$0xff]
    %v458 = vld [vmem:[#allocation2 + $0xa0] sm:$0xff]
    %v459 = vld [vmem:[#allocation2 + $0xa8] sm:$0xff]
    %v460 = vld [vmem:[#allocation2 + $0xb0] sm:$0xf]
    %v461 = vld [vmem:[%s3] sm:$0xff]
    %v462 = vld [vmem:[%s3 + $0x8] sm:$0xff]
    %v463 = vld [vmem:[%s3 + $0x10] sm:$0xff]
    %v464 = vld [vmem:[%s3 + $0x18] sm:$0xff]
    %v465 = vld [vmem:[#allocation2 + $0x1] sm:$0xff]
    %v466 = vld [vmem:[#allocation2 + $0x9] sm:$0xff]
    %v467 = vld [vmem:[#allocation2 + $0x11] sm:$0xff]
    %v468 = vld [vmem:[#allocation2 + $0x19] sm:$0xff]
    %v469 = vld [vmem:[#allocation2 + $0x21] sm:$0xff]
    %v470 = vld [vmem:[#allocation2 + $0x29] sm:$0xff]
    %v471 = vld [vmem:[#allocation2 + $0x31] sm:$0xff]
    %v472 = vld [vmem:[#allocation2 + $0x39] sm:$0xff]
    %v473 = vld [vmem:[#allocation2 + $0x41] sm:$0xff]
    %v474 = vld [vmem:[#allocation2 + $0x49] sm:$0xff]
    %v475 = vld [vmem:[#allocation2 + $0x51] sm:$0xff]
    %v476 = vld [vmem:[#allocation2 + $0x59] sm:$0xff]
    %v477 = vld [vmem:[#allocation2 + $0x61] sm:$0xff]
    %v478 = vld [vmem:[#allocation2 + $0x69] sm:$0xff]
    %v479 = vld [vmem:[#allocation2 + $0x71] sm:$0xff]
    %v480 = vld [vmem:[#allocation2 + $0x79] sm:$0xff]
    %v481 = vld [vmem:[#allocation2 + $0x81] sm:$0xff]
    %v482 = vld [vmem:[#allocation2 + $0x89] sm:$0xff]
    %v483 = vld [vmem:[#allocation2 + $0x91] sm:$0xff]
    %v484 = vld [vmem:[#allocation2 + $0x99] sm:$0xff]
    %v485 = vld [vmem:[#allocation2 + $0xa1] sm:$0xff]
    %v486 = vld [vmem:[#allocation2 + $0xa9] sm:$0xff]
    %v487 = vld [vmem:[#allocation2 + $0xb1] sm:$0xf]
    %s488 = scalar_lea.vmem %s3, 32
    %v489 = vld [vmem:[%s488] sm:$0xff]
    %v490 = vld [vmem:[%s488 + $0x8] sm:$0xff]
    %v491 = vld [vmem:[%s488 + $0x10] sm:$0xff]
    %v492 = vld [vmem:[%s488 + $0x18] sm:$0xff]
    %v494 = vsel %vm411, %v465, 0
    %v497 = vsel %vm411, %v466, 0
    %v500 = vsel %vm411, %v467, 0
    %v503 = vsel %vm411, %v468, 0
    %v506 = vsel %vm411, %v469, 0
    %v509 = vsel %vm411, %v470, 0
    %v512 = vsel %vm411, %v471, 0
    %v515 = vsel %vm411, %v472, 0
    %v518 = vsel %vm411, %v473, 0
    %v521 = vsel %vm411, %v474, 0
    %v524 = vsel %vm411, %v475, 0
    %v527 = vsel %vm411, %v476, 0
    %v530 = vsel %vm411, %v477, 0
    %v533 = vsel %vm411, %v478, 0
    %v536 = vsel %vm411, %v479, 0
    %v539 = vsel %vm411, %v480, 0
    %v542 = vsel %vm411, %v481, 0
    %v545 = vsel %vm411, %v482, 0
    %v548 = vsel %vm411, %v483, 0
    %v551 = vsel %vm411, %v484, 0
    %v554 = vsel %vm411, %v485, 0
    %v557 = vsel %vm411, %v486, 0
    %v560 = vsel %vm411, %v487, 0
    %562 = vmatprep.subr.mxu0 0.0
    %563 = vmatpush1.msra.mxu0 0.0
    %564 = vmatprep.subr.mxu0 0.0
    %565 = vmatpush1.msra.mxu0 0.0
    %566 = vmatprep.subr.mxu0 0.0
    %567 = vmatpush1.msra.mxu0 0.0
    %568 = vmatprep.subr.mxu0 0.0
    %569 = vmatpush1.msra.mxu0 0.0
    %570 = vmatprep.subr.mxu0 0.0
    %571 = vmatpush1.msra.mxu0 0.0
    %572 = vmatprep.subr.mxu0 0.0
    %573 = vmatpush1.msra.mxu0 0.0
    %574 = vmatprep.subr.mxu0 0.0
    %575 = vmatpush1.msra.mxu0 0.0
    %576 = vmatprep.subr.mxu0 0.0
    %577 = vmatpush1.msra.mxu0 0.0
    %578 = vmatprep.subr.mxu0 0.0
    %579 = vmatpush1.msra.mxu0 0.0
    %580 = vmatprep.subr.mxu0 0.0
    %581 = vmatpush1.msra.mxu0 0.0
    %582 = vmatprep.subr.mxu0 0.0
    %583 = vmatpush1.msra.mxu0 0.0
    %584 = vmatprep.subr.mxu0 0.0
    %585 = vmatpush1.msra.mxu0 0.0
    %586 = vmatprep.subr.mxu0 0.0
    %587 = vmatpush1.msra.mxu0 %v492
    %588 = vmatprep.subr.mxu0 0.0
    %589 = vmatpush1.msra.mxu0 %v491
    %590 = vmatprep.subr.mxu0 0.0
    %591 = vmatpush1.msra.mxu0 %v490
    %592 = vmatprep.subr.mxu0 0.0
    %593 = vmatpush1.msra.mxu0 %v489
    %594 = vmatprep.subr.mxu0 0.0
    %595 = vmatpush2.msra.mxu0 0.0
    %596 = vmatprep.subr.mxu0 0.0
    %597 = vmatpush2.msra.mxu0 0.0
    %598 = vmatprep.subr.mxu0 0.0
    %599 = vmatpush2.msra.mxu0 0.0
    %600 = vmatprep.subr.mxu0 0.0
    %601 = vmatpush2.msra.mxu0 0.0
    %602 = vmatprep.subr.mxu0 0.0
    %603 = vmatpush2.msra.mxu0 0.0
    %604 = vmatprep.subr.mxu0 0.0
    %605 = vmatpush2.msra.mxu0 0.0
    %606 = vmatprep.subr.mxu0 0.0
    %607 = vmatpush2.msra.mxu0 0.0
    %608 = vmatprep.subr.mxu0 0.0
    %609 = vmatpush2.msra.mxu0 0.0
    %610 = vmatprep.subr.mxu0 0.0
    %611 = vmatpush2.msra.mxu0 0.0
    %612 = vmatprep.subr.mxu0 0.0
    %613 = vmatpush2.msra.mxu0 0.0
    %614 = vmatprep.subr.mxu0 0.0
    %615 = vmatpush2.msra.mxu0 0.0
    %616 = vmatprep.subr.mxu0 0.0
    %617 = vmatpush2.msra.mxu0 0.0
    %618 = vmatprep.subr.mxu0 0.0
    %619 = vmatpush2.msra.mxu0 0.0
    %620 = vmatprep.subr.mxu0 0.0
    %621 = vmatpush2.msra.mxu0 0.0
    %622 = vmatprep.subr.mxu0 0.0
    %623 = vmatpush2.msra.mxu0 0.0
    %624 = vmatprep.subr.mxu0 0.0
    %625 = vmatpush2.msra.mxu0 0.0
    %626 = vmatprep.mubr.f32.mxu0 0.0
    %627 = vmatmul.mubr.f32.gmra.mxu0 %v494
    %v628 = vpop.f32.mrf.mxu0
    %v629 = vadd.f32 0.0, %v628
    %v630 = vpop.f32.mrf.mxu0
    %631 = vmatprep.mubr.f32.mxu0 0.0
    %632 = vmatmul.mubr.f32.gmra.mxu0 %v497
    %v633 = vpop.f32.mrf.mxu0
    %v634 = vadd.f32 0.0, %v633
    %v635 = vpop.f32.mrf.mxu0
    %636 = vmatprep.mubr.f32.mxu0 0.0
    %637 = vmatmul.mubr.f32.gmra.mxu0 %v500
    %v638 = vpop.f32.mrf.mxu0
    %v639 = vadd.f32 0.0, %v638
    %v640 = vpop.f32.mrf.mxu0
    %641 = vmatprep.mubr.f32.mxu0 0.0
    %642 = vmatmul.mubr.f32.gmra.mxu0 %v503
    %v643 = vpop.f32.mrf.mxu0
    %v644 = vadd.f32 0.0, %v643
    %v645 = vpop.f32.mrf.mxu0
    %646 = vmatprep.mubr.f32.mxu0 0.0
    %647 = vmatmul.mubr.f32.gmra.mxu0 %v506
    %v648 = vpop.f32.mrf.mxu0
    %v649 = vadd.f32 0.0, %v648
    %v650 = vpop.f32.mrf.mxu0
    %651 = vmatprep.mubr.f32.mxu0 0.0
    %652 = vmatmul.mubr.f32.gmra.mxu0 %v509
    %v653 = vpop.f32.mrf.mxu0
    %v654 = vadd.f32 0.0, %v653
    %v655 = vpop.f32.mrf.mxu0
    %656 = vmatprep.mubr.f32.mxu0 0.0
    %657 = vmatmul.mubr.f32.gmra.mxu0 %v512
    %v658 = vpop.f32.mrf.mxu0
    %v659 = vadd.f32 0.0, %v658
    %v660 = vpop.f32.mrf.mxu0
    %661 = vmatprep.mubr.f32.mxu0 0.0
    %662 = vmatmul.mubr.f32.gmra.mxu0 %v515
    %v663 = vpop.f32.mrf.mxu0
    %v664 = vadd.f32 0.0, %v663
    %v665 = vpop.f32.mrf.mxu0
    %666 = vmatprep.mubr.f32.mxu0 0.0
    %667 = vmatmul.mubr.f32.gmra.mxu0 %v518
    %v668 = vpop.f32.mrf.mxu0
    %v669 = vadd.f32 0.0, %v668
    %v670 = vpop.f32.mrf.mxu0
    %671 = vmatprep.mubr.f32.mxu0 0.0
    %672 = vmatmul.mubr.f32.gmra.mxu0 %v521
    %v673 = vpop.f32.mrf.mxu0
    %v674 = vadd.f32 0.0, %v673
    %v675 = vpop.f32.mrf.mxu0
    %676 = vmatprep.mubr.f32.mxu0 0.0
    %677 = vmatmul.mubr.f32.gmra.mxu0 %v524
    %v678 = vpop.f32.mrf.mxu0
    %v679 = vadd.f32 0.0, %v678
    %v680 = vpop.f32.mrf.mxu0
    %681 = vmatprep.mubr.f32.mxu0 0.0
    %682 = vmatmul.mubr.f32.gmra.mxu0 %v527
    %v683 = vpop.f32.mrf.mxu0
    %v684 = vadd.f32 0.0, %v683
    %v685 = vpop.f32.mrf.mxu0
    %686 = vmatprep.mubr.f32.mxu0 0.0
    %687 = vmatmul.mubr.f32.gmra.mxu0 %v530
    %v688 = vpop.f32.mrf.mxu0
    %v689 = vadd.f32 0.0, %v688
    %v690 = vpop.f32.mrf.mxu0
    %691 = vmatprep.mubr.f32.mxu0 0.0
    %692 = vmatmul.mubr.f32.gmra.mxu0 %v533
    %v693 = vpop.f32.mrf.mxu0
    %v694 = vadd.f32 0.0, %v693
    %v695 = vpop.f32.mrf.mxu0
    %696 = vmatprep.mubr.f32.mxu0 0.0
    %697 = vmatmul.mubr.f32.gmra.mxu0 %v536
    %v698 = vpop.f32.mrf.mxu0
    %v699 = vadd.f32 0.0, %v698
    %v700 = vpop.f32.mrf.mxu0
    %701 = vmatprep.mubr.f32.mxu0 0.0
    %702 = vmatmul.mubr.f32.gmra.mxu0 %v539
    %v703 = vpop.f32.mrf.mxu0
    %v704 = vadd.f32 0.0, %v703
    %v705 = vpop.f32.mrf.mxu0
    %706 = vmatprep.mubr.f32.mxu0 0.0
    %707 = vmatmul.mubr.f32.gmra.mxu0 %v542
    %v708 = vpop.f32.mrf.mxu0
    %v709 = vadd.f32 0.0, %v708
    %v710 = vpop.f32.mrf.mxu0
    %711 = vmatprep.mubr.f32.mxu0 0.0
    %712 = vmatmul.mubr.f32.gmra.mxu0 %v545
    %v713 = vpop.f32.mrf.mxu0
    %v714 = vadd.f32 0.0, %v713
    %v715 = vpop.f32.mrf.mxu0
    %716 = vmatprep.mubr.f32.mxu0 0.0
    %717 = vmatmul.mubr.f32.gmra.mxu0 %v548
    %v718 = vpop.f32.mrf.mxu0
    %v719 = vadd.f32 0.0, %v718
    %v720 = vpop.f32.mrf.mxu0
    %721 = vmatprep.mubr.f32.mxu0 0.0
    %722 = vmatmul.mubr.f32.gmra.mxu0 %v551
    %v723 = vpop.f32.mrf.mxu0
    %v724 = vadd.f32 0.0, %v723
    %v725 = vpop.f32.mrf.mxu0
    %726 = vmatprep.mubr.f32.mxu0 0.0
    %727 = vmatmul.mubr.f32.gmra.mxu0 %v554
    %v728 = vpop.f32.mrf.mxu0
    %v729 = vadd.f32 0.0, %v728
    %v730 = vpop.f32.mrf.mxu0
    %731 = vmatprep.mubr.f32.mxu0 0.0
    %732 = vmatmul.mubr.f32.gmra.mxu0 %v557
    %v733 = vpop.f32.mrf.mxu0
    %v734 = vadd.f32 0.0, %v733
    %v735 = vpop.f32.mrf.mxu0
    %736 = vmatprep.mubr.f32.mxu0 0.0
    %737 = vmatmul.mubr.f32.gmra.mxu0 %v560
    %v738 = vpop.f32.mrf.mxu0
    %v739 = vadd.f32 0.0, %v738
    %v740 = vpop.f32.mrf.mxu0
    %741 = vdwg.mxu0
    %v743 = vsel %vm411, %v438, 0
    %v746 = vsel %vm411, %v439, 0
    %v749 = vsel %vm411, %v440, 0
    %v752 = vsel %vm411, %v441, 0
    %v755 = vsel %vm411, %v442, 0
    %v758 = vsel %vm411, %v443, 0
    %v761 = vsel %vm411, %v444, 0
    %v764 = vsel %vm411, %v445, 0
    %v767 = vsel %vm411, %v446, 0
    %v770 = vsel %vm411, %v447, 0
    %v773 = vsel %vm411, %v448, 0
    %v776 = vsel %vm411, %v449, 0
    %v779 = vsel %vm411, %v450, 0
    %v782 = vsel %vm411, %v451, 0
    %v785 = vsel %vm411, %v452, 0
    %v788 = vsel %vm411, %v453, 0
    %v791 = vsel %vm411, %v454, 0
    %v794 = vsel %vm411, %v455, 0
    %v797 = vsel %vm411, %v456, 0
    %v800 = vsel %vm411, %v457, 0
    %v803 = vsel %vm411, %v458, 0
    %v806 = vsel %vm411, %v459, 0
    %v809 = vsel %vm411, %v460, 0
    %811 = vmatprep.subr.mxu0 0.0
    %812 = vmatpush1.msra.mxu0 0.0
    %813 = vmatprep.subr.mxu0 0.0
    %814 = vmatpush1.msra.mxu0 0.0
    %815 = vmatprep.subr.mxu0 0.0
    %816 = vmatpush1.msra.mxu0 0.0
    %817 = vmatprep.subr.mxu0 0.0
    %818 = vmatpush1.msra.mxu0 0.0
    %819 = vmatprep.subr.mxu0 0.0
    %820 = vmatpush1.msra.mxu0 0.0
    %821 = vmatprep.subr.mxu0 0.0
    %822 = vmatpush1.msra.mxu0 0.0
    %823 = vmatprep.subr.mxu0 0.0
    %824 = vmatpush1.msra.mxu0 0.0
    %825 = vmatprep.subr.mxu0 0.0
    %826 = vmatpush1.msra.mxu0 0.0
    %827 = vmatprep.subr.mxu0 0.0
    %828 = vmatpush1.msra.mxu0 0.0
    %829 = vmatprep.subr.mxu0 0.0
    %830 = vmatpush1.msra.mxu0 0.0
    %831 = vmatprep.subr.mxu0 0.0
    %832 = vmatpush1.msra.mxu0 0.0
    %833 = vmatprep.subr.mxu0 0.0
    %834 = vmatpush1.msra.mxu0 0.0
    %835 = vmatprep.subr.mxu0 0.0
    %836 = vmatpush1.msra.mxu0 %v464
    %837 = vmatprep.subr.mxu0 0.0
    %838 = vmatpush1.msra.mxu0 %v463
    %839 = vmatprep.subr.mxu0 0.0
    %840 = vmatpush1.msra.mxu0 %v462
    %841 = vmatprep.subr.mxu0 0.0
    %842 = vmatpush1.msra.mxu0 %v461
    %843 = vmatprep.subr.mxu0 0.0
    %844 = vmatpush2.msra.mxu0 0.0
    %845 = vmatprep.subr.mxu0 0.0
    %846 = vmatpush2.msra.mxu0 0.0
    %847 = vmatprep.subr.mxu0 0.0
    %848 = vmatpush2.msra.mxu0 0.0
    %849 = vmatprep.subr.mxu0 0.0
    %850 = vmatpush2.msra.mxu0 0.0
    %851 = vmatprep.subr.mxu0 0.0
    %852 = vmatpush2.msra.mxu0 0.0
    %853 = vmatprep.subr.mxu0 0.0
    %854 = vmatpush2.msra.mxu0 0.0
    %855 = vmatprep.subr.mxu0 0.0
    %856 = vmatpush2.msra.mxu0 0.0
    %857 = vmatprep.subr.mxu0 0.0
    %858 = vmatpush2.msra.mxu0 0.0
    %859 = vmatprep.subr.mxu0 0.0
    %860 = vmatpush2.msra.mxu0 0.0
    %861 = vmatprep.subr.mxu0 0.0
    %862 = vmatpush2.msra.mxu0 0.0
    %863 = vmatprep.subr.mxu0 0.0
    %864 = vmatpush2.msra.mxu0 0.0
    %865 = vmatprep.subr.mxu0 0.0
    %866 = vmatpush2.msra.mxu0 0.0
    %867 = vmatprep.subr.mxu0 0.0
    %868 = vmatpush2.msra.mxu0 0.0
    %869 = vmatprep.subr.mxu0 0.0
    %870 = vmatpush2.msra.mxu0 0.0
    %871 = vmatprep.subr.mxu0 0.0
    %872 = vmatpush2.msra.mxu0 0.0
    %873 = vmatprep.subr.mxu0 0.0
    %874 = vmatpush2.msra.mxu0 0.0
    %875 = vmatprep.mubr.f32.mxu0 0.0
    %876 = vmatmul.mubr.f32.gmra.mxu0 %v743
    %v877 = vpop.f32.mrf.mxu0
    %v878 = vadd.f32 %v629, %v877
    %v879 = vpop.f32.mrf.mxu0
    %880 = vmatprep.mubr.f32.mxu0 0.0
    %881 = vmatmul.mubr.f32.gmra.mxu0 %v746
    %v882 = vpop.f32.mrf.mxu0
    %v883 = vadd.f32 %v634, %v882
    %v884 = vpop.f32.mrf.mxu0
    %885 = vmatprep.mubr.f32.mxu0 0.0
    %886 = vmatmul.mubr.f32.gmra.mxu0 %v749
    %v887 = vpop.f32.mrf.mxu0
    %v888 = vadd.f32 %v639, %v887
    %v889 = vpop.f32.mrf.mxu0
    %890 = vmatprep.mubr.f32.mxu0 0.0
    %891 = vmatmul.mubr.f32.gmra.mxu0 %v752
    %v892 = vpop.f32.mrf.mxu0
    %v893 = vadd.f32 %v644, %v892
    %v894 = vpop.f32.mrf.mxu0
    %895 = vmatprep.mubr.f32.mxu0 0.0
    %896 = vmatmul.mubr.f32.gmra.mxu0 %v755
    %v897 = vpop.f32.mrf.mxu0
    %v898 = vadd.f32 %v649, %v897
    %v899 = vpop.f32.mrf.mxu0
    %900 = vmatprep.mubr.f32.mxu0 0.0
    %901 = vmatmul.mubr.f32.gmra.mxu0 %v758
    %v902 = vpop.f32.mrf.mxu0
    %v903 = vadd.f32 %v654, %v902
    %v904 = vpop.f32.mrf.mxu0
    %905 = vmatprep.mubr.f32.mxu0 0.0
    %906 = vmatmul.mubr.f32.gmra.mxu0 %v761
    %v907 = vpop.f32.mrf.mxu0
    %v908 = vadd.f32 %v659, %v907
    %v909 = vpop.f32.mrf.mxu0
    %910 = vmatprep.mubr.f32.mxu0 0.0
    %911 = vmatmul.mubr.f32.gmra.mxu0 %v764
    %v912 = vpop.f32.mrf.mxu0
    %v913 = vadd.f32 %v664, %v912
    %v914 = vpop.f32.mrf.mxu0
    %915 = vmatprep.mubr.f32.mxu0 0.0
    %916 = vmatmul.mubr.f32.gmra.mxu0 %v767
    %v917 = vpop.f32.mrf.mxu0
    %v918 = vadd.f32 %v669, %v917
    %v919 = vpop.f32.mrf.mxu0
    %920 = vmatprep.mubr.f32.mxu0 0.0
    %921 = vmatmul.mubr.f32.gmra.mxu0 %v770
    %v922 = vpop.f32.mrf.mxu0
    %v923 = vadd.f32 %v674, %v922
    %v924 = vpop.f32.mrf.mxu0
    %925 = vmatprep.mubr.f32.mxu0 0.0
    %926 = vmatmul.mubr.f32.gmra.mxu0 %v773
    %v927 = vpop.f32.mrf.mxu0
    %v928 = vadd.f32 %v679, %v927
    %v929 = vpop.f32.mrf.mxu0
    %930 = vmatprep.mubr.f32.mxu0 0.0
    %931 = vmatmul.mubr.f32.gmra.mxu0 %v776
    %v932 = vpop.f32.mrf.mxu0
    %v933 = vadd.f32 %v684, %v932
    %v934 = vpop.f32.mrf.mxu0
    %935 = vmatprep.mubr.f32.mxu0 0.0
    %936 = vmatmul.mubr.f32.gmra.mxu0 %v779
    %v937 = vpop.f32.mrf.mxu0
    %v938 = vadd.f32 %v689, %v937
    %v939 = vpop.f32.mrf.mxu0
    %940 = vmatprep.mubr.f32.mxu0 0.0
    %941 = vmatmul.mubr.f32.gmra.mxu0 %v782
    %v942 = vpop.f32.mrf.mxu0
    %v943 = vadd.f32 %v694, %v942
    %v944 = vpop.f32.mrf.mxu0
    %945 = vmatprep.mubr.f32.mxu0 0.0
    %946 = vmatmul.mubr.f32.gmra.mxu0 %v785
    %v947 = vpop.f32.mrf.mxu0
    %v948 = vadd.f32 %v699, %v947
    %v949 = vpop.f32.mrf.mxu0
    %950 = vmatprep.mubr.f32.mxu0 0.0
    %951 = vmatmul.mubr.f32.gmra.mxu0 %v788
    %v952 = vpop.f32.mrf.mxu0
    %v953 = vadd.f32 %v704, %v952
    %v954 = vpop.f32.mrf.mxu0
    %955 = vmatprep.mubr.f32.mxu0 0.0
    %956 = vmatmul.mubr.f32.gmra.mxu0 %v791
    %v957 = vpop.f32.mrf.mxu0
    %v958 = vadd.f32 %v709, %v957
    %v959 = vpop.f32.mrf.mxu0
    %960 = vmatprep.mubr.f32.mxu0 0.0
    %961 = vmatmul.mubr.f32.gmra.mxu0 %v794
    %v962 = vpop.f32.mrf.mxu0
    %v963 = vadd.f32 %v714, %v962
    %v964 = vpop.f32.mrf.mxu0
    %965 = vmatprep.mubr.f32.mxu0 0.0
    %966 = vmatmul.mubr.f32.gmra.mxu0 %v797
    %v967 = vpop.f32.mrf.mxu0
    %v968 = vadd.f32 %v719, %v967
    %v969 = vpop.f32.mrf.mxu0
    %970 = vmatprep.mubr.f32.mxu0 0.0
    %971 = vmatmul.mubr.f32.gmra.mxu0 %v800
    %v972 = vpop.f32.mrf.mxu0
    %v973 = vadd.f32 %v724, %v972
    %v974 = vpop.f32.mrf.mxu0
    %975 = vmatprep.mubr.f32.mxu0 0.0
    %976 = vmatmul.mubr.f32.gmra.mxu0 %v803
    %v977 = vpop.f32.mrf.mxu0
    %v978 = vadd.f32 %v729, %v977
    %v979 = vpop.f32.mrf.mxu0
    %980 = vmatprep.mubr.f32.mxu0 0.0
    %981 = vmatmul.mubr.f32.gmra.mxu0 %v806
    %v982 = vpop.f32.mrf.mxu0
    %v983 = vadd.f32 %v734, %v982
    %v984 = vpop.f32.mrf.mxu0
    %985 = vmatprep.mubr.f32.mxu0 0.0
    %986 = vmatmul.mubr.f32.gmra.mxu0 %v809
    %v987 = vpop.f32.mrf.mxu0
    %v988 = vadd.f32 %v739, %v987
    %v989 = vpop.f32.mrf.mxu0
    %990 = vdwg.mxu0
    %v991 = vld [vmem:[#allocation2 + $0x2] sm:$0xff]
    %v992 = vld [vmem:[#allocation2 + $0xa] sm:$0xff]
    %v993 = vld [vmem:[#allocation2 + $0x12] sm:$0xff]
    %v994 = vld [vmem:[#allocation2 + $0x1a] sm:$0xff]
    %v995 = vld [vmem:[#allocation2 + $0x22] sm:$0xff]
    %v996 = vld [vmem:[#allocation2 + $0x2a] sm:$0xff]
    %v997 = vld [vmem:[#allocation2 + $0x32] sm:$0xff]
    %v998 = vld [vmem:[#allocation2 + $0x3a] sm:$0xff]
    %v999 = vld [vmem:[#allocation2 + $0x42] sm:$0xff]
    %v1000 = vld [vmem:[#allocation2 + $0x4a] sm:$0xff]
    %v1001 = vld [vmem:[#allocation2 + $0x52] sm:$0xff]
    %v1002 = vld [vmem:[#allocation2 + $0x5a] sm:$0xff]
    %v1003 = vld [vmem:[#allocation2 + $0x62] sm:$0xff]
    %v1004 = vld [vmem:[#allocation2 + $0x6a] sm:$0xff]
    %v1005 = vld [vmem:[#allocation2 + $0x72] sm:$0xff]
    %v1006 = vld [vmem:[#allocation2 + $0x7a] sm:$0xff]
    %v1007 = vld [vmem:[#allocation2 + $0x82] sm:$0xff]
    %v1008 = vld [vmem:[#allocation2 + $0x8a] sm:$0xff]
    %v1009 = vld [vmem:[#allocation2 + $0x92] sm:$0xff]
    %v1010 = vld [vmem:[#allocation2 + $0x9a] sm:$0xff]
    %v1011 = vld [vmem:[#allocation2 + $0xa2] sm:$0xff]
    %v1012 = vld [vmem:[#allocation2 + $0xaa] sm:$0xff]
    %v1013 = vld [vmem:[#allocation2 + $0xb2] sm:$0xf]
    %s1014 = scalar_lea.vmem %s3, 64
    %v1015 = vld [vmem:[%s1014] sm:$0xff]
    %v1016 = vld [vmem:[%s1014 + $0x8] sm:$0xff]
    %v1017 = vld [vmem:[%s1014 + $0x10] sm:$0xff]
    %v1018 = vld [vmem:[%s1014 + $0x18] sm:$0xff]
    %v1020 = vsel %vm411, %v991, 0
    %v1023 = vsel %vm411, %v992, 0
    %v1026 = vsel %vm411, %v993, 0
    %v1029 = vsel %vm411, %v994, 0
    %v1032 = vsel %vm411, %v995, 0
    %v1035 = vsel %vm411, %v996, 0
    %v1038 = vsel %vm411, %v997, 0
    %v1041 = vsel %vm411, %v998, 0
    %v1044 = vsel %vm411, %v999, 0
    %v1047 = vsel %vm411, %v1000, 0
    %v1050 = vsel %vm411, %v1001, 0
    %v1053 = vsel %vm411, %v1002, 0
    %v1056 = vsel %vm411, %v1003, 0
    %v1059 = vsel %vm411, %v1004, 0
    %v1062 = vsel %vm411, %v1005, 0
    %v1065 = vsel %vm411, %v1006, 0
    %v1068 = vsel %vm411, %v1007, 0
    %v1071 = vsel %vm411, %v1008, 0
    %v1074 = vsel %vm411, %v1009, 0
    %v1077 = vsel %vm411, %v1010, 0
    %v1080 = vsel %vm411, %v1011, 0
    %v1083 = vsel %vm411, %v1012, 0
    %v1086 = vsel %vm411, %v1013, 0
    %1088 = vmatprep.subr.mxu0 0.0
    %1089 = vmatpush1.msra.mxu0 0.0
    %1090 = vmatprep.subr.mxu0 0.0
    %1091 = vmatpush1.msra.mxu0 0.0
    %1092 = vmatprep.subr.mxu0 0.0
    %1093 = vmatpush1.msra.mxu0 0.0
    %1094 = vmatprep.subr.mxu0 0.0
    %1095 = vmatpush1.msra.mxu0 0.0
    %1096 = vmatprep.subr.mxu0 0.0
    %1097 = vmatpush1.msra.mxu0 0.0
    %1098 = vmatprep.subr.mxu0 0.0
    %1099 = vmatpush1.msra.mxu0 0.0
    %1100 = vmatprep.subr.mxu0 0.0
    %1101 = vmatpush1.msra.mxu0 0.0
    %1102 = vmatprep.subr.mxu0 0.0
    %1103 = vmatpush1.msra.mxu0 0.0
    %1104 = vmatprep.subr.mxu0 0.0
    %1105 = vmatpush1.msra.mxu0 0.0
    %1106 = vmatprep.subr.mxu0 0.0
    %1107 = vmatpush1.msra.mxu0 0.0
    %1108 = vmatprep.subr.mxu0 0.0
    %1109 = vmatpush1.msra.mxu0 0.0
    %1110 = vmatprep.subr.mxu0 0.0
    %1111 = vmatpush1.msra.mxu0 0.0
    %1112 = vmatprep.subr.mxu0 0.0
    %1113 = vmatpush1.msra.mxu0 %v1018
    %1114 = vmatprep.subr.mxu0 0.0
    %1115 = vmatpush1.msra.mxu0 %v1017
    %1116 = vmatprep.subr.mxu0 0.0
    %1117 = vmatpush1.msra.mxu0 %v1016
    %1118 = vmatprep.subr.mxu0 0.0
    %1119 = vmatpush1.msra.mxu0 %v1015
    %1120 = vmatprep.subr.mxu0 0.0
    %1121 = vmatpush2.msra.mxu0 0.0
    %1122 = vmatprep.subr.mxu0 0.0
    %1123 = vmatpush2.msra.mxu0 0.0
    %1124 = vmatprep.subr.mxu0 0.0
    %1125 = vmatpush2.msra.mxu0 0.0
    %1126 = vmatprep.subr.mxu0 0.0
    %1127 = vmatpush2.msra.mxu0 0.0
    %1128 = vmatprep.subr.mxu0 0.0
    %1129 = vmatpush2.msra.mxu0 0.0
    %1130 = vmatprep.subr.mxu0 0.0
    %1131 = vmatpush2.msra.mxu0 0.0
    %1132 = vmatprep.subr.mxu0 0.0
    %1133 = vmatpush2.msra.mxu0 0.0
    %1134 = vmatprep.subr.mxu0 0.0
    %1135 = vmatpush2.msra.mxu0 0.0
    %1136 = vmatprep.subr.mxu0 0.0
    %1137 = vmatpush2.msra.mxu0 0.0
    %1138 = vmatprep.subr.mxu0 0.0
    %1139 = vmatpush2.msra.mxu0 0.0
    %1140 = vmatprep.subr.mxu0 0.0
    %1141 = vmatpush2.msra.mxu0 0.0
    %1142 = vmatprep.subr.mxu0 0.0
    %1143 = vmatpush2.msra.mxu0 0.0
    %1144 = vmatprep.subr.mxu0 0.0
    %1145 = vmatpush2.msra.mxu0 0.0
    %1146 = vmatprep.subr.mxu0 0.0
    %1147 = vmatpush2.msra.mxu0 0.0
    %1148 = vmatprep.subr.mxu0 0.0
    %1149 = vmatpush2.msra.mxu0 0.0
    %1150 = vmatprep.subr.mxu0 0.0
    %1151 = vmatpush2.msra.mxu0 0.0
    %1152 = vmatprep.mubr.f32.mxu0 0.0
    %1153 = vmatmul.mubr.f32.gmra.mxu0 %v1020
    %v1154 = vpop.f32.mrf.mxu0
    %v1155 = vadd.f32 0.0, %v1154
    %v1156 = vpop.f32.mrf.mxu0
    %1157 = vmatprep.mubr.f32.mxu0 0.0
    %1158 = vmatmul.mubr.f32.gmra.mxu0 %v1023
    %v1159 = vpop.f32.mrf.mxu0
    %v1160 = vadd.f32 0.0, %v1159
    %v1161 = vpop.f32.mrf.mxu0
    %1162 = vmatprep.mubr.f32.mxu0 0.0
    %1163 = vmatmul.mubr.f32.gmra.mxu0 %v1026
    %v1164 = vpop.f32.mrf.mxu0
    %v1165 = vadd.f32 0.0, %v1164
    %v1166 = vpop.f32.mrf.mxu0
    %1167 = vmatprep.mubr.f32.mxu0 0.0
    %1168 = vmatmul.mubr.f32.gmra.mxu0 %v1029
    %v1169 = vpop.f32.mrf.mxu0
    %v1170 = vadd.f32 0.0, %v1169
    %v1171 = vpop.f32.mrf.mxu0
    %1172 = vmatprep.mubr.f32.mxu0 0.0
    %1173 = vmatmul.mubr.f32.gmra.mxu0 %v1032
    %v1174 = vpop.f32.mrf.mxu0
    %v1175 = vadd.f32 0.0, %v1174
    %v1176 = vpop.f32.mrf.mxu0
    %1177 = vmatprep.mubr.f32.mxu0 0.0
    %1178 = vmatmul.mubr.f32.gmra.mxu0 %v1035
    %v1179 = vpop.f32.mrf.mxu0
    %v1180 = vadd.f32 0.0, %v1179
    %v1181 = vpop.f32.mrf.mxu0
    %1182 = vmatprep.mubr.f32.mxu0 0.0
    %1183 = vmatmul.mubr.f32.gmra.mxu0 %v1038
    %v1184 = vpop.f32.mrf.mxu0
    %v1185 = vadd.f32 0.0, %v1184
    %v1186 = vpop.f32.mrf.mxu0
    %1187 = vmatprep.mubr.f32.mxu0 0.0
    %1188 = vmatmul.mubr.f32.gmra.mxu0 %v1041
    %v1189 = vpop.f32.mrf.mxu0
    %v1190 = vadd.f32 0.0, %v1189
    %v1191 = vpop.f32.mrf.mxu0
    %1192 = vmatprep.mubr.f32.mxu0 0.0
    %1193 = vmatmul.mubr.f32.gmra.mxu0 %v1044
    %v1194 = vpop.f32.mrf.mxu0
    %v1195 = vadd.f32 0.0, %v1194
    %v1196 = vpop.f32.mrf.mxu0
    %1197 = vmatprep.mubr.f32.mxu0 0.0
    %1198 = vmatmul.mubr.f32.gmra.mxu0 %v1047
    %v1199 = vpop.f32.mrf.mxu0
    %v1200 = vadd.f32 0.0, %v1199
    %v1201 = vpop.f32.mrf.mxu0
    %1202 = vmatprep.mubr.f32.mxu0 0.0
    %1203 = vmatmul.mubr.f32.gmra.mxu0 %v1050
    %v1204 = vpop.f32.mrf.mxu0
    %v1205 = vadd.f32 0.0, %v1204
    %v1206 = vpop.f32.mrf.mxu0
    %1207 = vmatprep.mubr.f32.mxu0 0.0
    %1208 = vmatmul.mubr.f32.gmra.mxu0 %v1053
    %v1209 = vpop.f32.mrf.mxu0
    %v1210 = vadd.f32 0.0, %v1209
    %v1211 = vpop.f32.mrf.mxu0
    %1212 = vmatprep.mubr.f32.mxu0 0.0
    %1213 = vmatmul.mubr.f32.gmra.mxu0 %v1056
    %v1214 = vpop.f32.mrf.mxu0
    %v1215 = vadd.f32 0.0, %v1214
    %v1216 = vpop.f32.mrf.mxu0
    %1217 = vmatprep.mubr.f32.mxu0 0.0
    %1218 = vmatmul.mubr.f32.gmra.mxu0 %v1059
    %v1219 = vpop.f32.mrf.mxu0
    %v1220 = vadd.f32 0.0, %v1219
    %v1221 = vpop.f32.mrf.mxu0
    %1222 = vmatprep.mubr.f32.mxu0 0.0
    %1223 = vmatmul.mubr.f32.gmra.mxu0 %v1062
    %v1224 = vpop.f32.mrf.mxu0
    %v1225 = vadd.f32 0.0, %v1224
    %v1226 = vpop.f32.mrf.mxu0
    %1227 = vmatprep.mubr.f32.mxu0 0.0
    %1228 = vmatmul.mubr.f32.gmra.mxu0 %v1065
    %v1229 = vpop.f32.mrf.mxu0
    %v1230 = vadd.f32 0.0, %v1229
    %v1231 = vpop.f32.mrf.mxu0
    %1232 = vmatprep.mubr.f32.mxu0 0.0
    %1233 = vmatmul.mubr.f32.gmra.mxu0 %v1068
    %v1234 = vpop.f32.mrf.mxu0
    %v1235 = vadd.f32 0.0, %v1234
    %v1236 = vpop.f32.mrf.mxu0
    %1237 = vmatprep.mubr.f32.mxu0 0.0
    %1238 = vmatmul.mubr.f32.gmra.mxu0 %v1071
    %v1239 = vpop.f32.mrf.mxu0
    %v1240 = vadd.f32 0.0, %v1239
    %v1241 = vpop.f32.mrf.mxu0
    %1242 = vmatprep.mubr.f32.mxu0 0.0
    %1243 = vmatmul.mubr.f32.gmra.mxu0 %v1074
    %v1244 = vpop.f32.mrf.mxu0
    %v1245 = vadd.f32 0.0, %v1244
    %v1246 = vpop.f32.mrf.mxu0
    %1247 = vmatprep.mubr.f32.mxu0 0.0
    %1248 = vmatmul.mubr.f32.gmra.mxu0 %v1077
    %v1249 = vpop.f32.mrf.mxu0
    %v1250 = vadd.f32 0.0, %v1249
    %v1251 = vpop.f32.mrf.mxu0
    %1252 = vmatprep.mubr.f32.mxu0 0.0
    %1253 = vmatmul.mubr.f32.gmra.mxu0 %v1080
    %v1254 = vpop.f32.mrf.mxu0
    %v1255 = vadd.f32 0.0, %v1254
    %v1256 = vpop.f32.mrf.mxu0
    %1257 = vmatprep.mubr.f32.mxu0 0.0
    %1258 = vmatmul.mubr.f32.gmra.mxu0 %v1083
    %v1259 = vpop.f32.mrf.mxu0
    %v1260 = vadd.f32 0.0, %v1259
    %v1261 = vpop.f32.mrf.mxu0
    %1262 = vmatprep.mubr.f32.mxu0 0.0
    %1263 = vmatmul.mubr.f32.gmra.mxu0 %v1086
    %v1264 = vpop.f32.mrf.mxu0
    %v1265 = vadd.f32 0.0, %v1264
    %v1266 = vpop.f32.mrf.mxu0
    %1267 = vdwg.mxu0
    %v1268 = vadd.f32 %v878, %v1155
    %v1269 = vadd.f32 %v883, %v1160
    %v1270 = vadd.f32 %v888, %v1165
    %v1271 = vadd.f32 %v893, %v1170
    %v1272 = vadd.f32 %v898, %v1175
    %v1273 = vadd.f32 %v903, %v1180
    %v1274 = vadd.f32 %v908, %v1185
    %v1275 = vadd.f32 %v913, %v1190
    %v1276 = vadd.f32 %v918, %v1195
    %v1277 = vadd.f32 %v923, %v1200
    %v1278 = vadd.f32 %v928, %v1205
    %v1279 = vadd.f32 %v933, %v1210
    %v1280 = vadd.f32 %v938, %v1215
    %v1281 = vadd.f32 %v943, %v1220
    %v1282 = vadd.f32 %v948, %v1225
    %v1283 = vadd.f32 %v953, %v1230
    %v1284 = vadd.f32 %v958, %v1235
    %v1285 = vadd.f32 %v963, %v1240
    %v1286 = vadd.f32 %v968, %v1245
    %v1287 = vadd.f32 %v973, %v1250
    %v1288 = vadd.f32 %v978, %v1255
    %v1289 = vadd.f32 %v983, %v1260
    %v1290 = vadd.f32 %v988, %v1265
    %v1291 = vld [vmem:[#allocation2 + $0x7] sm:$0xff]
    %v1292 = vld [vmem:[#allocation2 + $0xf] sm:$0xff]
    %v1293 = vld [vmem:[#allocation2 + $0x17] sm:$0xff]
    %v1294 = vld [vmem:[#allocation2 + $0x1f] sm:$0xff]
    %v1295 = vld [vmem:[#allocation2 + $0x27] sm:$0xff]
    %v1296 = vld [vmem:[#allocation2 + $0x2f] sm:$0xff]
    %v1297 = vld [vmem:[#allocation2 + $0x37] sm:$0xff]
    %v1298 = vld [vmem:[#allocation2 + $0x3f] sm:$0xff]
    %v1299 = vld [vmem:[#allocation2 + $0x47] sm:$0xff]
    %v1300 = vld [vmem:[#allocation2 + $0x4f] sm:$0xff]
    %v1301 = vld [vmem:[#allocation2 + $0x57] sm:$0xff]
    %v1302 = vld [vmem:[#allocation2 + $0x5f] sm:$0xff]
    %v1303 = vld [vmem:[#allocation2 + $0x67] sm:$0xff]
    %v1304 = vld [vmem:[#allocation2 + $0x6f] sm:$0xff]
    %v1305 = vld [vmem:[#allocation2 + $0x77] sm:$0xff]
    %v1306 = vld [vmem:[#allocation2 + $0x7f] sm:$0xff]
    %v1307 = vld [vmem:[#allocation2 + $0x87] sm:$0xff]
    %v1308 = vld [vmem:[#allocation2 + $0x8f] sm:$0xff]
    %v1309 = vld [vmem:[#allocation2 + $0x97] sm:$0xff]
    %v1310 = vld [vmem:[#allocation2 + $0x9f] sm:$0xff]
    %v1311 = vld [vmem:[#allocation2 + $0xa7] sm:$0xff]
    %v1312 = vld [vmem:[#allocation2 + $0xaf] sm:$0xff]
    %v1313 = vld [vmem:[#allocation2 + $0xb7] sm:$0xf]
    %s1314 = scalar_lea.vmem %s3, 96
    %v1315 = vld [vmem:[%s1314] sm:$0xff]
    %v1316 = vld [vmem:[%s1314 + $0x8] sm:$0xff]
    %v1317 = vld [vmem:[%s1314 + $0x10] sm:$0xff]
    %v1318 = vld [vmem:[%s1314 + $0x18] sm:$0xff]
    %v1320 = vsel %vm411, %v1291, 0
    %v1323 = vsel %vm411, %v1292, 0
    %v1326 = vsel %vm411, %v1293, 0
    %v1329 = vsel %vm411, %v1294, 0
    %v1332 = vsel %vm411, %v1295, 0
    %v1335 = vsel %vm411, %v1296, 0
    %v1338 = vsel %vm411, %v1297, 0
    %v1341 = vsel %vm411, %v1298, 0
    %v1344 = vsel %vm411, %v1299, 0
    %v1347 = vsel %vm411, %v1300, 0
    %v1350 = vsel %vm411, %v1301, 0
    %v1353 = vsel %vm411, %v1302, 0
    %v1356 = vsel %vm411, %v1303, 0
    %v1359 = vsel %vm411, %v1304, 0
    %v1362 = vsel %vm411, %v1305, 0
    %v1365 = vsel %vm411, %v1306, 0
    %v1368 = vsel %vm411, %v1307, 0
    %v1371 = vsel %vm411, %v1308, 0
    %v1374 = vsel %vm411, %v1309, 0
    %v1377 = vsel %vm411, %v1310, 0
    %v1380 = vsel %vm411, %v1311, 0
    %v1383 = vsel %vm411, %v1312, 0
    %v1386 = vsel %vm411, %v1313, 0
    %1388 = vmatprep.subr.mxu0 0.0
    %1389 = vmatpush1.msra.mxu0 0.0
    %1390 = vmatprep.subr.mxu0 0.0
    %1391 = vmatpush1.msra.mxu0 0.0
    %1392 = vmatprep.subr.mxu0 0.0
    %1393 = vmatpush1.msra.mxu0 0.0
    %1394 = vmatprep.subr.mxu0 0.0
    %1395 = vmatpush1.msra.mxu0 0.0
    %1396 = vmatprep.subr.mxu0 0.0
    %1397 = vmatpush1.msra.mxu0 0.0
    %1398 = vmatprep.subr.mxu0 0.0
    %1399 = vmatpush1.msra.mxu0 0.0
    %1400 = vmatprep.subr.mxu0 0.0
    %1401 = vmatpush1.msra.mxu0 0.0
    %1402 = vmatprep.subr.mxu0 0.0
    %1403 = vmatpush1.msra.mxu0 0.0
    %1404 = vmatprep.subr.mxu0 0.0
    %1405 = vmatpush1.msra.mxu0 0.0
    %1406 = vmatprep.subr.mxu0 0.0
    %1407 = vmatpush1.msra.mxu0 0.0
    %1408 = vmatprep.subr.mxu0 0.0
    %1409 = vmatpush1.msra.mxu0 0.0
    %1410 = vmatprep.subr.mxu0 0.0
    %1411 = vmatpush1.msra.mxu0 0.0
    %1412 = vmatprep.subr.mxu0 0.0
    %1413 = vmatpush1.msra.mxu0 %v1318
    %1414 = vmatprep.subr.mxu0 0.0
    %1415 = vmatpush1.msra.mxu0 %v1317
    %1416 = vmatprep.subr.mxu0 0.0
    %1417 = vmatpush1.msra.mxu0 %v1316
    %1418 = vmatprep.subr.mxu0 0.0
    %1419 = vmatpush1.msra.mxu0 %v1315
    %1420 = vmatprep.subr.mxu0 0.0
    %1421 = vmatpush2.msra.mxu0 0.0
    %1422 = vmatprep.subr.mxu0 0.0
    %1423 = vmatpush2.msra.mxu0 0.0
    %1424 = vmatprep.subr.mxu0 0.0
    %1425 = vmatpush2.msra.mxu0 0.0
    %1426 = vmatprep.subr.mxu0 0.0
    %1427 = vmatpush2.msra.mxu0 0.0
    %1428 = vmatprep.subr.mxu0 0.0
    %1429 = vmatpush2.msra.mxu0 0.0
    %1430 = vmatprep.subr.mxu0 0.0
    %1431 = vmatpush2.msra.mxu0 0.0
    %1432 = vmatprep.subr.mxu0 0.0
    %1433 = vmatpush2.msra.mxu0 0.0
    %1434 = vmatprep.subr.mxu0 0.0
    %1435 = vmatpush2.msra.mxu0 0.0
    %1436 = vmatprep.subr.mxu0 0.0
    %1437 = vmatpush2.msra.mxu0 0.0
    %1438 = vmatprep.subr.mxu0 0.0
    %1439 = vmatpush2.msra.mxu0 0.0
    %1440 = vmatprep.subr.mxu0 0.0
    %1441 = vmatpush2.msra.mxu0 0.0
    %1442 = vmatprep.subr.mxu0 0.0
    %1443 = vmatpush2.msra.mxu0 0.0
    %1444 = vmatprep.subr.mxu0 0.0
    %1445 = vmatpush2.msra.mxu0 0.0
    %1446 = vmatprep.subr.mxu0 0.0
    %1447 = vmatpush2.msra.mxu0 0.0
    %1448 = vmatprep.subr.mxu0 0.0
    %1449 = vmatpush2.msra.mxu0 0.0
    %1450 = vmatprep.subr.mxu0 0.0
    %1451 = vmatpush2.msra.mxu0 0.0
    %1452 = vmatprep.mubr.f32.mxu0 0.0
    %1453 = vmatmul.mubr.f32.gmra.mxu0 %v1320
    %v1454 = vpop.f32.mrf.mxu0
    %v1455 = vadd.f32 0.0, %v1454
    %v1456 = vpop.f32.mrf.mxu0
    %1457 = vmatprep.mubr.f32.mxu0 0.0
    %1458 = vmatmul.mubr.f32.gmra.mxu0 %v1323
    %v1459 = vpop.f32.mrf.mxu0
    %v1460 = vadd.f32 0.0, %v1459
    %v1461 = vpop.f32.mrf.mxu0
    %1462 = vmatprep.mubr.f32.mxu0 0.0
    %1463 = vmatmul.mubr.f32.gmra.mxu0 %v1326
    %v1464 = vpop.f32.mrf.mxu0
    %v1465 = vadd.f32 0.0, %v1464
    %v1466 = vpop.f32.mrf.mxu0
    %1467 = vmatprep.mubr.f32.mxu0 0.0
    %1468 = vmatmul.mubr.f32.gmra.mxu0 %v1329
    %v1469 = vpop.f32.mrf.mxu0
    %v1470 = vadd.f32 0.0, %v1469
    %v1471 = vpop.f32.mrf.mxu0
    %1472 = vmatprep.mubr.f32.mxu0 0.0
    %1473 = vmatmul.mubr.f32.gmra.mxu0 %v1332
    %v1474 = vpop.f32.mrf.mxu0
    %v1475 = vadd.f32 0.0, %v1474
    %v1476 = vpop.f32.mrf.mxu0
    %1477 = vmatprep.mubr.f32.mxu0 0.0
    %1478 = vmatmul.mubr.f32.gmra.mxu0 %v1335
    %v1479 = vpop.f32.mrf.mxu0
    %v1480 = vadd.f32 0.0, %v1479
    %v1481 = vpop.f32.mrf.mxu0
    %1482 = vmatprep.mubr.f32.mxu0 0.0
    %1483 = vmatmul.mubr.f32.gmra.mxu0 %v1338
    %v1484 = vpop.f32.mrf.mxu0
    %v1485 = vadd.f32 0.0, %v1484
    %v1486 = vpop.f32.mrf.mxu0
    %1487 = vmatprep.mubr.f32.mxu0 0.0
    %1488 = vmatmul.mubr.f32.gmra.mxu0 %v1341
    %v1489 = vpop.f32.mrf.mxu0
    %v1490 = vadd.f32 0.0, %v1489
    %v1491 = vpop.f32.mrf.mxu0
    %1492 = vmatprep.mubr.f32.mxu0 0.0
    %1493 = vmatmul.mubr.f32.gmra.mxu0 %v1344
    %v1494 = vpop.f32.mrf.mxu0
    %v1495 = vadd.f32 0.0, %v1494
    %v1496 = vpop.f32.mrf.mxu0
    %1497 = vmatprep.mubr.f32.mxu0 0.0
    %1498 = vmatmul.mubr.f32.gmra.mxu0 %v1347
    %v1499 = vpop.f32.mrf.mxu0
    %v1500 = vadd.f32 0.0, %v1499
    %v1501 = vpop.f32.mrf.mxu0
    %1502 = vmatprep.mubr.f32.mxu0 0.0
    %1503 = vmatmul.mubr.f32.gmra.mxu0 %v1350
    %v1504 = vpop.f32.mrf.mxu0
    %v1505 = vadd.f32 0.0, %v1504
    %v1506 = vpop.f32.mrf.mxu0
    %1507 = vmatprep.mubr.f32.mxu0 0.0
    %1508 = vmatmul.mubr.f32.gmra.mxu0 %v1353
    %v1509 = vpop.f32.mrf.mxu0
    %v1510 = vadd.f32 0.0, %v1509
    %v1511 = vpop.f32.mrf.mxu0
    %1512 = vmatprep.mubr.f32.mxu0 0.0
    %1513 = vmatmul.mubr.f32.gmra.mxu0 %v1356
    %v1514 = vpop.f32.mrf.mxu0
    %v1515 = vadd.f32 0.0, %v1514
    %v1516 = vpop.f32.mrf.mxu0
    %1517 = vmatprep.mubr.f32.mxu0 0.0
    %1518 = vmatmul.mubr.f32.gmra.mxu0 %v1359
    %v1519 = vpop.f32.mrf.mxu0
    %v1520 = vadd.f32 0.0, %v1519
    %v1521 = vpop.f32.mrf.mxu0
    %1522 = vmatprep.mubr.f32.mxu0 0.0
    %1523 = vmatmul.mubr.f32.gmra.mxu0 %v1362
    %v1524 = vpop.f32.mrf.mxu0
    %v1525 = vadd.f32 0.0, %v1524
    %v1526 = vpop.f32.mrf.mxu0
    %1527 = vmatprep.mubr.f32.mxu0 0.0
    %1528 = vmatmul.mubr.f32.gmra.mxu0 %v1365
    %v1529 = vpop.f32.mrf.mxu0
    %v1530 = vadd.f32 0.0, %v1529
    %v1531 = vpop.f32.mrf.mxu0
    %1532 = vmatprep.mubr.f32.mxu0 0.0
    %1533 = vmatmul.mubr.f32.gmra.mxu0 %v1368
    %v1534 = vpop.f32.mrf.mxu0
    %v1535 = vadd.f32 0.0, %v1534
    %v1536 = vpop.f32.mrf.mxu0
    %1537 = vmatprep.mubr.f32.mxu0 0.0
    %1538 = vmatmul.mubr.f32.gmra.mxu0 %v1371
    %v1539 = vpop.f32.mrf.mxu0
    %v1540 = vadd.f32 0.0, %v1539
    %v1541 = vpop.f32.mrf.mxu0
    %1542 = vmatprep.mubr.f32.mxu0 0.0
    %1543 = vmatmul.mubr.f32.gmra.mxu0 %v1374
    %v1544 = vpop.f32.mrf.mxu0
    %v1545 = vadd.f32 0.0, %v1544
    %v1546 = vpop.f32.mrf.mxu0
    %1547 = vmatprep.mubr.f32.mxu0 0.0
    %1548 = vmatmul.mubr.f32.gmra.mxu0 %v1377
    %v1549 = vpop.f32.mrf.mxu0
    %v1550 = vadd.f32 0.0, %v1549
    %v1551 = vpop.f32.mrf.mxu0
    %1552 = vmatprep.mubr.f32.mxu0 0.0
    %1553 = vmatmul.mubr.f32.gmra.mxu0 %v1380
    %v1554 = vpop.f32.mrf.mxu0
    %v1555 = vadd.f32 0.0, %v1554
    %v1556 = vpop.f32.mrf.mxu0
    %1557 = vmatprep.mubr.f32.mxu0 0.0
    %1558 = vmatmul.mubr.f32.gmra.mxu0 %v1383
    %v1559 = vpop.f32.mrf.mxu0
    %v1560 = vadd.f32 0.0, %v1559
    %v1561 = vpop.f32.mrf.mxu0
    %1562 = vmatprep.mubr.f32.mxu0 0.0
    %1563 = vmatmul.mubr.f32.gmra.mxu0 %v1386
    %v1564 = vpop.f32.mrf.mxu0
    %v1565 = vadd.f32 0.0, %v1564
    %v1566 = vpop.f32.mrf.mxu0
    %1567 = vdwg.mxu0
    %v1568 = vadd.f32 %v1268, %v1455
    %v1569 = vadd.f32 %v1269, %v1460
    %v1570 = vadd.f32 %v1270, %v1465
    %v1571 = vadd.f32 %v1271, %v1470
    %v1572 = vadd.f32 %v1272, %v1475
    %v1573 = vadd.f32 %v1273, %v1480
    %v1574 = vadd.f32 %v1274, %v1485
    %v1575 = vadd.f32 %v1275, %v1490
    %v1576 = vadd.f32 %v1276, %v1495
    %v1577 = vadd.f32 %v1277, %v1500
    %v1578 = vadd.f32 %v1278, %v1505
    %v1579 = vadd.f32 %v1279, %v1510
    %v1580 = vadd.f32 %v1280, %v1515
    %v1581 = vadd.f32 %v1281, %v1520
    %v1582 = vadd.f32 %v1282, %v1525
    %v1583 = vadd.f32 %v1283, %v1530
    %v1584 = vadd.f32 %v1284, %v1535
    %v1585 = vadd.f32 %v1285, %v1540
    %v1586 = vadd.f32 %v1286, %v1545
    %v1587 = vadd.f32 %v1287, %v1550
    %v1588 = vadd.f32 %v1288, %v1555
    %v1589 = vadd.f32 %v1289, %v1560
    %v1590 = vadd.f32 %v1290, %v1565
    %v1591 = vld [vmem:[#allocation2 + $0x8] sm:$0xff]
    %v1592 = vld [vmem:[#allocation2 + $0x10] sm:$0xff]
    %v1593 = vld [vmem:[#allocation2 + $0x18] sm:$0xff]
    %v1594 = vld [vmem:[#allocation2 + $0x20] sm:$0xff]
    %v1595 = vld [vmem:[#allocation2 + $0x28] sm:$0xff]
    %v1596 = vld [vmem:[#allocation2 + $0x30] sm:$0xff]
    %v1597 = vld [vmem:[#allocation2 + $0x38] sm:$0xff]
    %v1598 = vld [vmem:[#allocation2 + $0x40] sm:$0xff]
    %v1599 = vld [vmem:[#allocation2 + $0x48] sm:$0xff]
    %v1600 = vld [vmem:[#allocation2 + $0x50] sm:$0xff]
    %v1601 = vld [vmem:[#allocation2 + $0x58] sm:$0xff]
    %v1602 = vld [vmem:[#allocation2 + $0x60] sm:$0xff]
    %v1603 = vld [vmem:[#allocation2 + $0x68] sm:$0xff]
    %v1604 = vld [vmem:[#allocation2 + $0x70] sm:$0xff]
    %v1605 = vld [vmem:[#allocation2 + $0x78] sm:$0xff]
    %v1606 = vld [vmem:[#allocation2 + $0x80] sm:$0xff]
    %v1607 = vld [vmem:[#allocation2 + $0x88] sm:$0xff]
    %v1608 = vld [vmem:[#allocation2 + $0x90] sm:$0xff]
    %v1609 = vld [vmem:[#allocation2 + $0x98] sm:$0xff]
    %v1610 = vld [vmem:[#allocation2 + $0xa0] sm:$0xff]
    %v1611 = vld [vmem:[#allocation2 + $0xa8] sm:$0xff]
    %v1612 = vld [vmem:[#allocation2 + $0xb0] sm:$0xff]
    %v1613 = vld [vmem:[#allocation2 + $0xb8] sm:$0xf]
    %s1614 = scalar_lea.vmem %s3, 128
    %v1615 = vld [vmem:[%s1614] sm:$0xff]
    %v1616 = vld [vmem:[%s1614 + $0x8] sm:$0xff]
    %v1617 = vld [vmem:[%s1614 + $0x10] sm:$0xff]
    %v1618 = vld [vmem:[%s1614 + $0x18] sm:$0xff]
    %v1620 = vsel %vm411, %v1591, 0
    %v1623 = vsel %vm411, %v1592, 0
    %v1626 = vsel %vm411, %v1593, 0
    %v1629 = vsel %vm411, %v1594, 0
    %v1632 = vsel %vm411, %v1595, 0
    %v1635 = vsel %vm411, %v1596, 0
    %v1638 = vsel %vm411, %v1597, 0
    %v1641 = vsel %vm411, %v1598, 0
    %v1644 = vsel %vm411, %v1599, 0
    %v1647 = vsel %vm411, %v1600, 0
    %v1650 = vsel %vm411, %v1601, 0
    %v1653 = vsel %vm411, %v1602, 0
    %v1656 = vsel %vm411, %v1603, 0
    %v1659 = vsel %vm411, %v1604, 0
    %v1662 = vsel %vm411, %v1605, 0
    %v1665 = vsel %vm411, %v1606, 0
    %v1668 = vsel %vm411, %v1607, 0
    %v1671 = vsel %vm411, %v1608, 0
    %v1674 = vsel %vm411, %v1609, 0
    %v1677 = vsel %vm411, %v1610, 0
    %v1680 = vsel %vm411, %v1611, 0
    %v1683 = vsel %vm411, %v1612, 0
    %v1686 = vsel %vm411, %v1613, 0
    %1688 = vmatprep.subr.mxu0 0.0
    %1689 = vmatpush1.msra.mxu0 0.0
    %1690 = vmatprep.subr.mxu0 0.0
    %1691 = vmatpush1.msra.mxu0 0.0
    %1692 = vmatprep.subr.mxu0 0.0
    %1693 = vmatpush1.msra.mxu0 0.0
    %1694 = vmatprep.subr.mxu0 0.0
    %1695 = vmatpush1.msra.mxu0 0.0
    %1696 = vmatprep.subr.mxu0 0.0
    %1697 = vmatpush1.msra.mxu0 0.0
    %1698 = vmatprep.subr.mxu0 0.0
    %1699 = vmatpush1.msra.mxu0 0.0
    %1700 = vmatprep.subr.mxu0 0.0
    %1701 = vmatpush1.msra.mxu0 0.0
    %1702 = vmatprep.subr.mxu0 0.0
    %1703 = vmatpush1.msra.mxu0 0.0
    %1704 = vmatprep.subr.mxu0 0.0
    %1705 = vmatpush1.msra.mxu0 0.0
    %1706 = vmatprep.subr.mxu0 0.0
    %1707 = vmatpush1.msra.mxu0 0.0
    %1708 = vmatprep.subr.mxu0 0.0
    %1709 = vmatpush1.msra.mxu0 0.0
    %1710 = vmatprep.subr.mxu0 0.0
    %1711 = vmatpush1.msra.mxu0 0.0
    %1712 = vmatprep.subr.mxu0 0.0
    %1713 = vmatpush1.msra.mxu0 %v1618
    %1714 = vmatprep.subr.mxu0 0.0
    %1715 = vmatpush1.msra.mxu0 %v1617
    %1716 = vmatprep.subr.mxu0 0.0
    %1717 = vmatpush1.msra.mxu0 %v1616
    %1718 = vmatprep.subr.mxu0 0.0
    %1719 = vmatpush1.msra.mxu0 %v1615
    %1720 = vmatprep.subr.mxu0 0.0
    %1721 = vmatpush2.msra.mxu0 0.0
    %1722 = vmatprep.subr.mxu0 0.0
    %1723 = vmatpush2.msra.mxu0 0.0
    %1724 = vmatprep.subr.mxu0 0.0
    %1725 = vmatpush2.msra.mxu0 0.0
    %1726 = vmatprep.subr.mxu0 0.0
    %1727 = vmatpush2.msra.mxu0 0.0
    %1728 = vmatprep.subr.mxu0 0.0
    %1729 = vmatpush2.msra.mxu0 0.0
    %1730 = vmatprep.subr.mxu0 0.0
    %1731 = vmatpush2.msra.mxu0 0.0
    %1732 = vmatprep.subr.mxu0 0.0
    %1733 = vmatpush2.msra.mxu0 0.0
    %1734 = vmatprep.subr.mxu0 0.0
    %1735 = vmatpush2.msra.mxu0 0.0
    %1736 = vmatprep.subr.mxu0 0.0
    %1737 = vmatpush2.msra.mxu0 0.0
    %1738 = vmatprep.subr.mxu0 0.0
    %1739 = vmatpush2.msra.mxu0 0.0
    %1740 = vmatprep.subr.mxu0 0.0
    %1741 = vmatpush2.msra.mxu0 0.0
    %1742 = vmatprep.subr.mxu0 0.0
    %1743 = vmatpush2.msra.mxu0 0.0
    %1744 = vmatprep.subr.mxu0 0.0
    %1745 = vmatpush2.msra.mxu0 0.0
    %1746 = vmatprep.subr.mxu0 0.0
    %1747 = vmatpush2.msra.mxu0 0.0
    %1748 = vmatprep.subr.mxu0 0.0
    %1749 = vmatpush2.msra.mxu0 0.0
    %1750 = vmatprep.subr.mxu0 0.0
    %1751 = vmatpush2.msra.mxu0 0.0
    %1752 = vmatprep.mubr.f32.mxu0 0.0
    %1753 = vmatmul.mubr.f32.gmra.mxu0 %v1620
    %v1754 = vpop.f32.mrf.mxu0
    %v1755 = vadd.f32 0.0, %v1754
    %v1756 = vpop.f32.mrf.mxu0
    %1757 = vmatprep.mubr.f32.mxu0 0.0
    %1758 = vmatmul.mubr.f32.gmra.mxu0 %v1623
    %v1759 = vpop.f32.mrf.mxu0
    %v1760 = vadd.f32 0.0, %v1759
    %v1761 = vpop.f32.mrf.mxu0
    %1762 = vmatprep.mubr.f32.mxu0 0.0
    %1763 = vmatmul.mubr.f32.gmra.mxu0 %v1626
    %v1764 = vpop.f32.mrf.mxu0
    %v1765 = vadd.f32 0.0, %v1764
    %v1766 = vpop.f32.mrf.mxu0
    %1767 = vmatprep.mubr.f32.mxu0 0.0
    %1768 = vmatmul.mubr.f32.gmra.mxu0 %v1629
    %v1769 = vpop.f32.mrf.mxu0
    %v1770 = vadd.f32 0.0, %v1769
    %v1771 = vpop.f32.mrf.mxu0
    %1772 = vmatprep.mubr.f32.mxu0 0.0
    %1773 = vmatmul.mubr.f32.gmra.mxu0 %v1632
    %v1774 = vpop.f32.mrf.mxu0
    %v1775 = vadd.f32 0.0, %v1774
    %v1776 = vpop.f32.mrf.mxu0
    %1777 = vmatprep.mubr.f32.mxu0 0.0
    %1778 = vmatmul.mubr.f32.gmra.mxu0 %v1635
    %v1779 = vpop.f32.mrf.mxu0
    %v1780 = vadd.f32 0.0, %v1779
    %v1781 = vpop.f32.mrf.mxu0
    %1782 = vmatprep.mubr.f32.mxu0 0.0
    %1783 = vmatmul.mubr.f32.gmra.mxu0 %v1638
    %v1784 = vpop.f32.mrf.mxu0
    %v1785 = vadd.f32 0.0, %v1784
    %v1786 = vpop.f32.mrf.mxu0
    %1787 = vmatprep.mubr.f32.mxu0 0.0
    %1788 = vmatmul.mubr.f32.gmra.mxu0 %v1641
    %v1789 = vpop.f32.mrf.mxu0
    %v1790 = vadd.f32 0.0, %v1789
    %v1791 = vpop.f32.mrf.mxu0
    %1792 = vmatprep.mubr.f32.mxu0 0.0
    %1793 = vmatmul.mubr.f32.gmra.mxu0 %v1644
    %v1794 = vpop.f32.mrf.mxu0
    %v1795 = vadd.f32 0.0, %v1794
    %v1796 = vpop.f32.mrf.mxu0
    %1797 = vmatprep.mubr.f32.mxu0 0.0
    %1798 = vmatmul.mubr.f32.gmra.mxu0 %v1647
    %v1799 = vpop.f32.mrf.mxu0
    %v1800 = vadd.f32 0.0, %v1799
    %v1801 = vpop.f32.mrf.mxu0
    %1802 = vmatprep.mubr.f32.mxu0 0.0
    %1803 = vmatmul.mubr.f32.gmra.mxu0 %v1650
    %v1804 = vpop.f32.mrf.mxu0
    %v1805 = vadd.f32 0.0, %v1804
    %v1806 = vpop.f32.mrf.mxu0
    %1807 = vmatprep.mubr.f32.mxu0 0.0
    %1808 = vmatmul.mubr.f32.gmra.mxu0 %v1653
    %v1809 = vpop.f32.mrf.mxu0
    %v1810 = vadd.f32 0.0, %v1809
    %v1811 = vpop.f32.mrf.mxu0
    %1812 = vmatprep.mubr.f32.mxu0 0.0
    %1813 = vmatmul.mubr.f32.gmra.mxu0 %v1656
    %v1814 = vpop.f32.mrf.mxu0
    %v1815 = vadd.f32 0.0, %v1814
    %v1816 = vpop.f32.mrf.mxu0
    %1817 = vmatprep.mubr.f32.mxu0 0.0
    %1818 = vmatmul.mubr.f32.gmra.mxu0 %v1659
    %v1819 = vpop.f32.mrf.mxu0
    %v1820 = vadd.f32 0.0, %v1819
    %v1821 = vpop.f32.mrf.mxu0
    %1822 = vmatprep.mubr.f32.mxu0 0.0
    %1823 = vmatmul.mubr.f32.gmra.mxu0 %v1662
    %v1824 = vpop.f32.mrf.mxu0
    %v1825 = vadd.f32 0.0, %v1824
    %v1826 = vpop.f32.mrf.mxu0
    %1827 = vmatprep.mubr.f32.mxu0 0.0
    %1828 = vmatmul.mubr.f32.gmra.mxu0 %v1665
    %v1829 = vpop.f32.mrf.mxu0
    %v1830 = vadd.f32 0.0, %v1829
    %v1831 = vpop.f32.mrf.mxu0
    %1832 = vmatprep.mubr.f32.mxu0 0.0
    %1833 = vmatmul.mubr.f32.gmra.mxu0 %v1668
    %v1834 = vpop.f32.mrf.mxu0
    %v1835 = vadd.f32 0.0, %v1834
    %v1836 = vpop.f32.mrf.mxu0
    %1837 = vmatprep.mubr.f32.mxu0 0.0
    %1838 = vmatmul.mubr.f32.gmra.mxu0 %v1671
    %v1839 = vpop.f32.mrf.mxu0
    %v1840 = vadd.f32 0.0, %v1839
    %v1841 = vpop.f32.mrf.mxu0
    %1842 = vmatprep.mubr.f32.mxu0 0.0
    %1843 = vmatmul.mubr.f32.gmra.mxu0 %v1674
    %v1844 = vpop.f32.mrf.mxu0
    %v1845 = vadd.f32 0.0, %v1844
    %v1846 = vpop.f32.mrf.mxu0
    %1847 = vmatprep.mubr.f32.mxu0 0.0
    %1848 = vmatmul.mubr.f32.gmra.mxu0 %v1677
    %v1849 = vpop.f32.mrf.mxu0
    %v1850 = vadd.f32 0.0, %v1849
    %v1851 = vpop.f32.mrf.mxu0
    %1852 = vmatprep.mubr.f32.mxu0 0.0
    %1853 = vmatmul.mubr.f32.gmra.mxu0 %v1680
    %v1854 = vpop.f32.mrf.mxu0
    %v1855 = vadd.f32 0.0, %v1854
    %v1856 = vpop.f32.mrf.mxu0
    %1857 = vmatprep.mubr.f32.mxu0 0.0
    %1858 = vmatmul.mubr.f32.gmra.mxu0 %v1683
    %v1859 = vpop.f32.mrf.mxu0
    %v1860 = vadd.f32 0.0, %v1859
    %v1861 = vpop.f32.mrf.mxu0
    %1862 = vmatprep.mubr.f32.mxu0 0.0
    %1863 = vmatmul.mubr.f32.gmra.mxu0 %v1686
    %v1864 = vpop.f32.mrf.mxu0
    %v1865 = vadd.f32 0.0, %v1864
    %v1866 = vpop.f32.mrf.mxu0
    %1867 = vdwg.mxu0
    %v1868 = vadd.f32 %v1568, %v1755
    %v1869 = vadd.f32 %v1569, %v1760
    %v1870 = vadd.f32 %v1570, %v1765
    %v1871 = vadd.f32 %v1571, %v1770
    %v1872 = vadd.f32 %v1572, %v1775
    %v1873 = vadd.f32 %v1573, %v1780
    %v1874 = vadd.f32 %v1574, %v1785
    %v1875 = vadd.f32 %v1575, %v1790
    %v1876 = vadd.f32 %v1576, %v1795
    %v1877 = vadd.f32 %v1577, %v1800
    %v1878 = vadd.f32 %v1578, %v1805
    %v1879 = vadd.f32 %v1579, %v1810
    %v1880 = vadd.f32 %v1580, %v1815
    %v1881 = vadd.f32 %v1581, %v1820
    %v1882 = vadd.f32 %v1582, %v1825
    %v1883 = vadd.f32 %v1583, %v1830
    %v1884 = vadd.f32 %v1584, %v1835
    %v1885 = vadd.f32 %v1585, %v1840
    %v1886 = vadd.f32 %v1586, %v1845
    %v1887 = vadd.f32 %v1587, %v1850
    %v1888 = vadd.f32 %v1588, %v1855
    %v1889 = vadd.f32 %v1589, %v1860
    %v1890 = vadd.f32 %v1590, %v1865
    %v1891 = vld [vmem:[#allocation2 + $0x9] sm:$0xff]
    %v1892 = vld [vmem:[#allocation2 + $0x11] sm:$0xff]
    %v1893 = vld [vmem:[#allocation2 + $0x19] sm:$0xff]
    %v1894 = vld [vmem:[#allocation2 + $0x21] sm:$0xff]
    %v1895 = vld [vmem:[#allocation2 + $0x29] sm:$0xff]
    %v1896 = vld [vmem:[#allocation2 + $0x31] sm:$0xff]
    %v1897 = vld [vmem:[#allocation2 + $0x39] sm:$0xff]
    %v1898 = vld [vmem:[#allocation2 + $0x41] sm:$0xff]
    %v1899 = vld [vmem:[#allocation2 + $0x49] sm:$0xff]
    %v1900 = vld [vmem:[#allocation2 + $0x51] sm:$0xff]
    %v1901 = vld [vmem:[#allocation2 + $0x59] sm:$0xff]
    %v1902 = vld [vmem:[#allocation2 + $0x61] sm:$0xff]
    %v1903 = vld [vmem:[#allocation2 + $0x69] sm:$0xff]
    %v1904 = vld [vmem:[#allocation2 + $0x71] sm:$0xff]
    %v1905 = vld [vmem:[#allocation2 + $0x79] sm:$0xff]
    %v1906 = vld [vmem:[#allocation2 + $0x81] sm:$0xff]
    %v1907 = vld [vmem:[#allocation2 + $0x89] sm:$0xff]
    %v1908 = vld [vmem:[#allocation2 + $0x91] sm:$0xff]
    %v1909 = vld [vmem:[#allocation2 + $0x99] sm:$0xff]
    %v1910 = vld [vmem:[#allocation2 + $0xa1] sm:$0xff]
    %v1911 = vld [vmem:[#allocation2 + $0xa9] sm:$0xff]
    %v1912 = vld [vmem:[#allocation2 + $0xb1] sm:$0xff]
    %v1913 = vld [vmem:[#allocation2 + $0xb9] sm:$0xf]
    %s1914 = scalar_lea.vmem %s3, 160
    %v1915 = vld [vmem:[%s1914] sm:$0xff]
    %v1916 = vld [vmem:[%s1914 + $0x8] sm:$0xff]
    %v1917 = vld [vmem:[%s1914 + $0x10] sm:$0xff]
    %v1918 = vld [vmem:[%s1914 + $0x18] sm:$0xff]
    %v1920 = vsel %vm411, %v1891, 0
    %v1923 = vsel %vm411, %v1892, 0
    %v1926 = vsel %vm411, %v1893, 0
    %v1929 = vsel %vm411, %v1894, 0
    %v1932 = vsel %vm411, %v1895, 0
    %v1935 = vsel %vm411, %v1896, 0
    %v1938 = vsel %vm411, %v1897, 0
    %v1941 = vsel %vm411, %v1898, 0
    %v1944 = vsel %vm411, %v1899, 0
    %v1947 = vsel %vm411, %v1900, 0
    %v1950 = vsel %vm411, %v1901, 0
    %v1953 = vsel %vm411, %v1902, 0
    %v1956 = vsel %vm411, %v1903, 0
    %v1959 = vsel %vm411, %v1904, 0
    %v1962 = vsel %vm411, %v1905, 0
    %v1965 = vsel %vm411, %v1906, 0
    %v1968 = vsel %vm411, %v1907, 0
    %v1971 = vsel %vm411, %v1908, 0
    %v1974 = vsel %vm411, %v1909, 0
    %v1977 = vsel %vm411, %v1910, 0
    %v1980 = vsel %vm411, %v1911, 0
    %v1983 = vsel %vm411, %v1912, 0
    %v1986 = vsel %vm411, %v1913, 0
    %1988 = vmatprep.subr.mxu0 0.0
    %1989 = vmatpush1.msra.mxu0 0.0
    %1990 = vmatprep.subr.mxu0 0.0
    %1991 = vmatpush1.msra.mxu0 0.0
    %1992 = vmatprep.subr.mxu0 0.0
    %1993 = vmatpush1.msra.mxu0 0.0
    %1994 = vmatprep.subr.mxu0 0.0
    %1995 = vmatpush1.msra.mxu0 0.0
    %1996 = vmatprep.subr.mxu0 0.0
    %1997 = vmatpush1.msra.mxu0 0.0
    %1998 = vmatprep.subr.mxu0 0.0
    %1999 = vmatpush1.msra.mxu0 0.0
    %2000 = vmatprep.subr.mxu0 0.0
    %2001 = vmatpush1.msra.mxu0 0.0
    %2002 = vmatprep.subr.mxu0 0.0
    %2003 = vmatpush1.msra.mxu0 0.0
    %2004 = vmatprep.subr.mxu0 0.0
    %2005 = vmatpush1.msra.mxu0 0.0
    %2006 = vmatprep.subr.mxu0 0.0
    %2007 = vmatpush1.msra.mxu0 0.0
    %2008 = vmatprep.subr.mxu0 0.0
    %2009 = vmatpush1.msra.mxu0 0.0
    %2010 = vmatprep.subr.mxu0 0.0
    %2011 = vmatpush1.msra.mxu0 0.0
    %2012 = vmatprep.subr.mxu0 0.0
    %2013 = vmatpush1.msra.mxu0 %v1918
    %2014 = vmatprep.subr.mxu0 0.0
    %2015 = vmatpush1.msra.mxu0 %v1917
    %2016 = vmatprep.subr.mxu0 0.0
    %2017 = vmatpush1.msra.mxu0 %v1916
    %2018 = vmatprep.subr.mxu0 0.0
    %2019 = vmatpush1.msra.mxu0 %v1915
    %2020 = vmatprep.subr.mxu0 0.0
    %2021 = vmatpush2.msra.mxu0 0.0
    %2022 = vmatprep.subr.mxu0 0.0
    %2023 = vmatpush2.msra.mxu0 0.0
    %2024 = vmatprep.subr.mxu0 0.0
    %2025 = vmatpush2.msra.mxu0 0.0
    %2026 = vmatprep.subr.mxu0 0.0
    %2027 = vmatpush2.msra.mxu0 0.0
    %2028 = vmatprep.subr.mxu0 0.0
    %2029 = vmatpush2.msra.mxu0 0.0
    %2030 = vmatprep.subr.mxu0 0.0
    %2031 = vmatpush2.msra.mxu0 0.0
    %2032 = vmatprep.subr.mxu0 0.0
    %2033 = vmatpush2.msra.mxu0 0.0
    %2034 = vmatprep.subr.mxu0 0.0
    %2035 = vmatpush2.msra.mxu0 0.0
    %2036 = vmatprep.subr.mxu0 0.0
    %2037 = vmatpush2.msra.mxu0 0.0
    %2038 = vmatprep.subr.mxu0 0.0
    %2039 = vmatpush2.msra.mxu0 0.0
    %2040 = vmatprep.subr.mxu0 0.0
    %2041 = vmatpush2.msra.mxu0 0.0
    %2042 = vmatprep.subr.mxu0 0.0
    %2043 = vmatpush2.msra.mxu0 0.0
    %2044 = vmatprep.subr.mxu0 0.0
    %2045 = vmatpush2.msra.mxu0 0.0
    %2046 = vmatprep.subr.mxu0 0.0
    %2047 = vmatpush2.msra.mxu0 0.0
    %2048 = vmatprep.subr.mxu0 0.0
    %2049 = vmatpush2.msra.mxu0 0.0
    %2050 = vmatprep.subr.mxu0 0.0
    %2051 = vmatpush2.msra.mxu0 0.0
    %2052 = vmatprep.mubr.f32.mxu0 0.0
    %2053 = vmatmul.mubr.f32.gmra.mxu0 %v1920
    %v2054 = vpop.f32.mrf.mxu0
    %v2055 = vadd.f32 0.0, %v2054
    %v2056 = vpop.f32.mrf.mxu0
    %2057 = vmatprep.mubr.f32.mxu0 0.0
    %2058 = vmatmul.mubr.f32.gmra.mxu0 %v1923
    %v2059 = vpop.f32.mrf.mxu0
    %v2060 = vadd.f32 0.0, %v2059
    %v2061 = vpop.f32.mrf.mxu0
    %2062 = vmatprep.mubr.f32.mxu0 0.0
    %2063 = vmatmul.mubr.f32.gmra.mxu0 %v1926
    %v2064 = vpop.f32.mrf.mxu0
    %v2065 = vadd.f32 0.0, %v2064
    %v2066 = vpop.f32.mrf.mxu0
    %2067 = vmatprep.mubr.f32.mxu0 0.0
    %2068 = vmatmul.mubr.f32.gmra.mxu0 %v1929
    %v2069 = vpop.f32.mrf.mxu0
    %v2070 = vadd.f32 0.0, %v2069
    %v2071 = vpop.f32.mrf.mxu0
    %2072 = vmatprep.mubr.f32.mxu0 0.0
    %2073 = vmatmul.mubr.f32.gmra.mxu0 %v1932
    %v2074 = vpop.f32.mrf.mxu0
    %v2075 = vadd.f32 0.0, %v2074
    %v2076 = vpop.f32.mrf.mxu0
    %2077 = vmatprep.mubr.f32.mxu0 0.0
    %2078 = vmatmul.mubr.f32.gmra.mxu0 %v1935
    %v2079 = vpop.f32.mrf.mxu0
    %v2080 = vadd.f32 0.0, %v2079
    %v2081 = vpop.f32.mrf.mxu0
    %2082 = vmatprep.mubr.f32.mxu0 0.0
    %2083 = vmatmul.mubr.f32.gmra.mxu0 %v1938
    %v2084 = vpop.f32.mrf.mxu0
    %v2085 = vadd.f32 0.0, %v2084
    %v2086 = vpop.f32.mrf.mxu0
    %2087 = vmatprep.mubr.f32.mxu0 0.0
    %2088 = vmatmul.mubr.f32.gmra.mxu0 %v1941
    %v2089 = vpop.f32.mrf.mxu0
    %v2090 = vadd.f32 0.0, %v2089
    %v2091 = vpop.f32.mrf.mxu0
    %2092 = vmatprep.mubr.f32.mxu0 0.0
    %2093 = vmatmul.mubr.f32.gmra.mxu0 %v1944
    %v2094 = vpop.f32.mrf.mxu0
    %v2095 = vadd.f32 0.0, %v2094
    %v2096 = vpop.f32.mrf.mxu0
    %2097 = vmatprep.mubr.f32.mxu0 0.0
    %2098 = vmatmul.mubr.f32.gmra.mxu0 %v1947
    %v2099 = vpop.f32.mrf.mxu0
    %v2100 = vadd.f32 0.0, %v2099
    %v2101 = vpop.f32.mrf.mxu0
    %2102 = vmatprep.mubr.f32.mxu0 0.0
    %2103 = vmatmul.mubr.f32.gmra.mxu0 %v1950
    %v2104 = vpop.f32.mrf.mxu0
    %v2105 = vadd.f32 0.0, %v2104
    %v2106 = vpop.f32.mrf.mxu0
    %2107 = vmatprep.mubr.f32.mxu0 0.0
    %2108 = vmatmul.mubr.f32.gmra.mxu0 %v1953
    %v2109 = vpop.f32.mrf.mxu0
    %v2110 = vadd.f32 0.0, %v2109
    %v2111 = vpop.f32.mrf.mxu0
    %2112 = vmatprep.mubr.f32.mxu0 0.0
    %2113 = vmatmul.mubr.f32.gmra.mxu0 %v1956
    %v2114 = vpop.f32.mrf.mxu0
    %v2115 = vadd.f32 0.0, %v2114
    %v2116 = vpop.f32.mrf.mxu0
    %2117 = vmatprep.mubr.f32.mxu0 0.0
    %2118 = vmatmul.mubr.f32.gmra.mxu0 %v1959
    %v2119 = vpop.f32.mrf.mxu0
    %v2120 = vadd.f32 0.0, %v2119
    %v2121 = vpop.f32.mrf.mxu0
    %2122 = vmatprep.mubr.f32.mxu0 0.0
    %2123 = vmatmul.mubr.f32.gmra.mxu0 %v1962
    %v2124 = vpop.f32.mrf.mxu0
    %v2125 = vadd.f32 0.0, %v2124
    %v2126 = vpop.f32.mrf.mxu0
    %2127 = vmatprep.mubr.f32.mxu0 0.0
    %2128 = vmatmul.mubr.f32.gmra.mxu0 %v1965
    %v2129 = vpop.f32.mrf.mxu0
    %v2130 = vadd.f32 0.0, %v2129
    %v2131 = vpop.f32.mrf.mxu0
    %2132 = vmatprep.mubr.f32.mxu0 0.0
    %2133 = vmatmul.mubr.f32.gmra.mxu0 %v1968
    %v2134 = vpop.f32.mrf.mxu0
    %v2135 = vadd.f32 0.0, %v2134
    %v2136 = vpop.f32.mrf.mxu0
    %2137 = vmatprep.mubr.f32.mxu0 0.0
    %2138 = vmatmul.mubr.f32.gmra.mxu0 %v1971
    %v2139 = vpop.f32.mrf.mxu0
    %v2140 = vadd.f32 0.0, %v2139
    %v2141 = vpop.f32.mrf.mxu0
    %2142 = vmatprep.mubr.f32.mxu0 0.0
    %2143 = vmatmul.mubr.f32.gmra.mxu0 %v1974
    %v2144 = vpop.f32.mrf.mxu0
    %v2145 = vadd.f32 0.0, %v2144
    %v2146 = vpop.f32.mrf.mxu0
    %2147 = vmatprep.mubr.f32.mxu0 0.0
    %2148 = vmatmul.mubr.f32.gmra.mxu0 %v1977
    %v2149 = vpop.f32.mrf.mxu0
    %v2150 = vadd.f32 0.0, %v2149
    %v2151 = vpop.f32.mrf.mxu0
    %2152 = vmatprep.mubr.f32.mxu0 0.0
    %2153 = vmatmul.mubr.f32.gmra.mxu0 %v1980
    %v2154 = vpop.f32.mrf.mxu0
    %v2155 = vadd.f32 0.0, %v2154
    %v2156 = vpop.f32.mrf.mxu0
    %2157 = vmatprep.mubr.f32.mxu0 0.0
    %2158 = vmatmul.mubr.f32.gmra.mxu0 %v1983
    %v2159 = vpop.f32.mrf.mxu0
    %v2160 = vadd.f32 0.0, %v2159
    %v2161 = vpop.f32.mrf.mxu0
    %2162 = vmatprep.mubr.f32.mxu0 0.0
    %2163 = vmatmul.mubr.f32.gmra.mxu0 %v1986
    %v2164 = vpop.f32.mrf.mxu0
    %v2165 = vadd.f32 0.0, %v2164
    %v2166 = vpop.f32.mrf.mxu0
    %2167 = vdwg.mxu0
    %v2168 = vadd.f32 %v1868, %v2055
    %v2169 = vadd.f32 %v1869, %v2060
    %v2170 = vadd.f32 %v1870, %v2065
    %v2171 = vadd.f32 %v1871, %v2070
    %v2172 = vadd.f32 %v1872, %v2075
    %v2173 = vadd.f32 %v1873, %v2080
    %v2174 = vadd.f32 %v1874, %v2085
    %v2175 = vadd.f32 %v1875, %v2090
    %v2176 = vadd.f32 %v1876, %v2095
    %v2177 = vadd.f32 %v1877, %v2100
    %v2178 = vadd.f32 %v1878, %v2105
    %v2179 = vadd.f32 %v1879, %v2110
    %v2180 = vadd.f32 %v1880, %v2115
    %v2181 = vadd.f32 %v1881, %v2120
    %v2182 = vadd.f32 %v1882, %v2125
    %v2183 = vadd.f32 %v1883, %v2130
    %v2184 = vadd.f32 %v1884, %v2135
    %v2185 = vadd.f32 %v1885, %v2140
    %v2186 = vadd.f32 %v1886, %v2145
    %v2187 = vadd.f32 %v1887, %v2150
    %v2188 = vadd.f32 %v1888, %v2155
    %v2189 = vadd.f32 %v1889, %v2160
    %v2190 = vadd.f32 %v1890, %v2165
    %v2191 = vld [vmem:[#allocation2 + $0xe] sm:$0xff]
    %v2192 = vld [vmem:[#allocation2 + $0x16] sm:$0xff]
    %v2193 = vld [vmem:[#allocation2 + $0x1e] sm:$0xff]
    %v2194 = vld [vmem:[#allocation2 + $0x26] sm:$0xff]
    %v2195 = vld [vmem:[#allocation2 + $0x2e] sm:$0xff]
    %v2196 = vld [vmem:[#allocation2 + $0x36] sm:$0xff]
    %v2197 = vld [vmem:[#allocation2 + $0x3e] sm:$0xff]
    %v2198 = vld [vmem:[#allocation2 + $0x46] sm:$0xff]
    %v2199 = vld [vmem:[#allocation2 + $0x4e] sm:$0xff]
    %v2200 = vld [vmem:[#allocation2 + $0x56] sm:$0xff]
    %v2201 = vld [vmem:[#allocation2 + $0x5e] sm:$0xff]
    %v2202 = vld [vmem:[#allocation2 + $0x66] sm:$0xff]
    %v2203 = vld [vmem:[#allocation2 + $0x6e] sm:$0xff]
    %v2204 = vld [vmem:[#allocation2 + $0x76] sm:$0xff]
    %v2205 = vld [vmem:[#allocation2 + $0x7e] sm:$0xff]
    %v2206 = vld [vmem:[#allocation2 + $0x86] sm:$0xff]
    %v2207 = vld [vmem:[#allocation2 + $0x8e] sm:$0xff]
    %v2208 = vld [vmem:[#allocation2 + $0x96] sm:$0xff]
    %v2209 = vld [vmem:[#allocation2 + $0x9e] sm:$0xff]
    %v2210 = vld [vmem:[#allocation2 + $0xa6] sm:$0xff]
    %v2211 = vld [vmem:[#allocation2 + $0xae] sm:$0xff]
    %v2212 = vld [vmem:[#allocation2 + $0xb6] sm:$0xff]
    %v2213 = vld [vmem:[#allocation2 + $0xbe] sm:$0xf]
    %s2214 = scalar_lea.vmem %s3, 192
    %v2215 = vld [vmem:[%s2214] sm:$0xff]
    %v2216 = vld [vmem:[%s2214 + $0x8] sm:$0xff]
    %v2217 = vld [vmem:[%s2214 + $0x10] sm:$0xff]
    %v2218 = vld [vmem:[%s2214 + $0x18] sm:$0xff]
    %v2220 = vsel %vm411, %v2191, 0
    %v2223 = vsel %vm411, %v2192, 0
    %v2226 = vsel %vm411, %v2193, 0
    %v2229 = vsel %vm411, %v2194, 0
    %v2232 = vsel %vm411, %v2195, 0
    %v2235 = vsel %vm411, %v2196, 0
    %v2238 = vsel %vm411, %v2197, 0
    %v2241 = vsel %vm411, %v2198, 0
    %v2244 = vsel %vm411, %v2199, 0
    %v2247 = vsel %vm411, %v2200, 0
    %v2250 = vsel %vm411, %v2201, 0
    %v2253 = vsel %vm411, %v2202, 0
    %v2256 = vsel %vm411, %v2203, 0
    %v2259 = vsel %vm411, %v2204, 0
    %v2262 = vsel %vm411, %v2205, 0
    %v2265 = vsel %vm411, %v2206, 0
    %v2268 = vsel %vm411, %v2207, 0
    %v2271 = vsel %vm411, %v2208, 0
    %v2274 = vsel %vm411, %v2209, 0
    %v2277 = vsel %vm411, %v2210, 0
    %v2280 = vsel %vm411, %v2211, 0
    %v2283 = vsel %vm411, %v2212, 0
    %v2286 = vsel %vm411, %v2213, 0
    %2288 = vmatprep.subr.mxu0 0.0
    %2289 = vmatpush1.msra.mxu0 0.0
    %2290 = vmatprep.subr.mxu0 0.0
    %2291 = vmatpush1.msra.mxu0 0.0
    %2292 = vmatprep.subr.mxu0 0.0
    %2293 = vmatpush1.msra.mxu0 0.0
    %2294 = vmatprep.subr.mxu0 0.0
    %2295 = vmatpush1.msra.mxu0 0.0
    %2296 = vmatprep.subr.mxu0 0.0
    %2297 = vmatpush1.msra.mxu0 0.0
    %2298 = vmatprep.subr.mxu0 0.0
    %2299 = vmatpush1.msra.mxu0 0.0
    %2300 = vmatprep.subr.mxu0 0.0
    %2301 = vmatpush1.msra.mxu0 0.0
    %2302 = vmatprep.subr.mxu0 0.0
    %2303 = vmatpush1.msra.mxu0 0.0
    %2304 = vmatprep.subr.mxu0 0.0
    %2305 = vmatpush1.msra.mxu0 0.0
    %2306 = vmatprep.subr.mxu0 0.0
    %2307 = vmatpush1.msra.mxu0 0.0
    %2308 = vmatprep.subr.mxu0 0.0
    %2309 = vmatpush1.msra.mxu0 0.0
    %2310 = vmatprep.subr.mxu0 0.0
    %2311 = vmatpush1.msra.mxu0 0.0
    %2312 = vmatprep.subr.mxu0 0.0
    %2313 = vmatpush1.msra.mxu0 %v2218
    %2314 = vmatprep.subr.mxu0 0.0
    %2315 = vmatpush1.msra.mxu0 %v2217
    %2316 = vmatprep.subr.mxu0 0.0
    %2317 = vmatpush1.msra.mxu0 %v2216
    %2318 = vmatprep.subr.mxu0 0.0
    %2319 = vmatpush1.msra.mxu0 %v2215
    %2320 = vmatprep.subr.mxu0 0.0
    %2321 = vmatpush2.msra.mxu0 0.0
    %2322 = vmatprep.subr.mxu0 0.0
    %2323 = vmatpush2.msra.mxu0 0.0
    %2324 = vmatprep.subr.mxu0 0.0
    %2325 = vmatpush2.msra.mxu0 0.0
    %2326 = vmatprep.subr.mxu0 0.0
    %2327 = vmatpush2.msra.mxu0 0.0
    %2328 = vmatprep.subr.mxu0 0.0
    %2329 = vmatpush2.msra.mxu0 0.0
    %2330 = vmatprep.subr.mxu0 0.0
    %2331 = vmatpush2.msra.mxu0 0.0
    %2332 = vmatprep.subr.mxu0 0.0
    %2333 = vmatpush2.msra.mxu0 0.0
    %2334 = vmatprep.subr.mxu0 0.0
    %2335 = vmatpush2.msra.mxu0 0.0
    %2336 = vmatprep.subr.mxu0 0.0
    %2337 = vmatpush2.msra.mxu0 0.0
    %2338 = vmatprep.subr.mxu0 0.0
    %2339 = vmatpush2.msra.mxu0 0.0
    %2340 = vmatprep.subr.mxu0 0.0
    %2341 = vmatpush2.msra.mxu0 0.0
    %2342 = vmatprep.subr.mxu0 0.0
    %2343 = vmatpush2.msra.mxu0 0.0
    %2344 = vmatprep.subr.mxu0 0.0
    %2345 = vmatpush2.msra.mxu0 0.0
    %2346 = vmatprep.subr.mxu0 0.0
    %2347 = vmatpush2.msra.mxu0 0.0
    %2348 = vmatprep.subr.mxu0 0.0
    %2349 = vmatpush2.msra.mxu0 0.0
    %2350 = vmatprep.subr.mxu0 0.0
    %2351 = vmatpush2.msra.mxu0 0.0
    %2352 = vmatprep.mubr.f32.mxu0 0.0
    %2353 = vmatmul.mubr.f32.gmra.mxu0 %v2220
    %v2354 = vpop.f32.mrf.mxu0
    %v2355 = vadd.f32 0.0, %v2354
    %v2356 = vpop.f32.mrf.mxu0
    %2357 = vmatprep.mubr.f32.mxu0 0.0
    %2358 = vmatmul.mubr.f32.gmra.mxu0 %v2223
    %v2359 = vpop.f32.mrf.mxu0
    %v2360 = vadd.f32 0.0, %v2359
    %v2361 = vpop.f32.mrf.mxu0
    %2362 = vmatprep.mubr.f32.mxu0 0.0
    %2363 = vmatmul.mubr.f32.gmra.mxu0 %v2226
    %v2364 = vpop.f32.mrf.mxu0
    %v2365 = vadd.f32 0.0, %v2364
    %v2366 = vpop.f32.mrf.mxu0
    %2367 = vmatprep.mubr.f32.mxu0 0.0
    %2368 = vmatmul.mubr.f32.gmra.mxu0 %v2229
    %v2369 = vpop.f32.mrf.mxu0
    %v2370 = vadd.f32 0.0, %v2369
    %v2371 = vpop.f32.mrf.mxu0
    %2372 = vmatprep.mubr.f32.mxu0 0.0
    %2373 = vmatmul.mubr.f32.gmra.mxu0 %v2232
    %v2374 = vpop.f32.mrf.mxu0
    %v2375 = vadd.f32 0.0, %v2374
    %v2376 = vpop.f32.mrf.mxu0
    %2377 = vmatprep.mubr.f32.mxu0 0.0
    %2378 = vmatmul.mubr.f32.gmra.mxu0 %v2235
    %v2379 = vpop.f32.mrf.mxu0
    %v2380 = vadd.f32 0.0, %v2379
    %v2381 = vpop.f32.mrf.mxu0
    %2382 = vmatprep.mubr.f32.mxu0 0.0
    %2383 = vmatmul.mubr.f32.gmra.mxu0 %v2238
    %v2384 = vpop.f32.mrf.mxu0
    %v2385 = vadd.f32 0.0, %v2384
    %v2386 = vpop.f32.mrf.mxu0
    %2387 = vmatprep.mubr.f32.mxu0 0.0
    %2388 = vmatmul.mubr.f32.gmra.mxu0 %v2241
    %v2389 = vpop.f32.mrf.mxu0
    %v2390 = vadd.f32 0.0, %v2389
    %v2391 = vpop.f32.mrf.mxu0
    %2392 = vmatprep.mubr.f32.mxu0 0.0
    %2393 = vmatmul.mubr.f32.gmra.mxu0 %v2244
    %v2394 = vpop.f32.mrf.mxu0
    %v2395 = vadd.f32 0.0, %v2394
    %v2396 = vpop.f32.mrf.mxu0
    %2397 = vmatprep.mubr.f32.mxu0 0.0
    %2398 = vmatmul.mubr.f32.gmra.mxu0 %v2247
    %v2399 = vpop.f32.mrf.mxu0
    %v2400 = vadd.f32 0.0, %v2399
    %v2401 = vpop.f32.mrf.mxu0
    %2402 = vmatprep.mubr.f32.mxu0 0.0
    %2403 = vmatmul.mubr.f32.gmra.mxu0 %v2250
    %v2404 = vpop.f32.mrf.mxu0
    %v2405 = vadd.f32 0.0, %v2404
    %v2406 = vpop.f32.mrf.mxu0
    %2407 = vmatprep.mubr.f32.mxu0 0.0
    %2408 = vmatmul.mubr.f32.gmra.mxu0 %v2253
    %v2409 = vpop.f32.mrf.mxu0
    %v2410 = vadd.f32 0.0, %v2409
    %v2411 = vpop.f32.mrf.mxu0
    %2412 = vmatprep.mubr.f32.mxu0 0.0
    %2413 = vmatmul.mubr.f32.gmra.mxu0 %v2256
    %v2414 = vpop.f32.mrf.mxu0
    %v2415 = vadd.f32 0.0, %v2414
    %v2416 = vpop.f32.mrf.mxu0
    %2417 = vmatprep.mubr.f32.mxu0 0.0
    %2418 = vmatmul.mubr.f32.gmra.mxu0 %v2259
    %v2419 = vpop.f32.mrf.mxu0
    %v2420 = vadd.f32 0.0, %v2419
    %v2421 = vpop.f32.mrf.mxu0
    %2422 = vmatprep.mubr.f32.mxu0 0.0
    %2423 = vmatmul.mubr.f32.gmra.mxu0 %v2262
    %v2424 = vpop.f32.mrf.mxu0
    %v2425 = vadd.f32 0.0, %v2424
    %v2426 = vpop.f32.mrf.mxu0
    %2427 = vmatprep.mubr.f32.mxu0 0.0
    %2428 = vmatmul.mubr.f32.gmra.mxu0 %v2265
    %v2429 = vpop.f32.mrf.mxu0
    %v2430 = vadd.f32 0.0, %v2429
    %v2431 = vpop.f32.mrf.mxu0
    %2432 = vmatprep.mubr.f32.mxu0 0.0
    %2433 = vmatmul.mubr.f32.gmra.mxu0 %v2268
    %v2434 = vpop.f32.mrf.mxu0
    %v2435 = vadd.f32 0.0, %v2434
    %v2436 = vpop.f32.mrf.mxu0
    %2437 = vmatprep.mubr.f32.mxu0 0.0
    %2438 = vmatmul.mubr.f32.gmra.mxu0 %v2271
    %v2439 = vpop.f32.mrf.mxu0
    %v2440 = vadd.f32 0.0, %v2439
    %v2441 = vpop.f32.mrf.mxu0
    %2442 = vmatprep.mubr.f32.mxu0 0.0
    %2443 = vmatmul.mubr.f32.gmra.mxu0 %v2274
    %v2444 = vpop.f32.mrf.mxu0
    %v2445 = vadd.f32 0.0, %v2444
    %v2446 = vpop.f32.mrf.mxu0
    %2447 = vmatprep.mubr.f32.mxu0 0.0
    %2448 = vmatmul.mubr.f32.gmra.mxu0 %v2277
    %v2449 = vpop.f32.mrf.mxu0
    %v2450 = vadd.f32 0.0, %v2449
    %v2451 = vpop.f32.mrf.mxu0
    %2452 = vmatprep.mubr.f32.mxu0 0.0
    %2453 = vmatmul.mubr.f32.gmra.mxu0 %v2280
    %v2454 = vpop.f32.mrf.mxu0
    %v2455 = vadd.f32 0.0, %v2454
    %v2456 = vpop.f32.mrf.mxu0
    %2457 = vmatprep.mubr.f32.mxu0 0.0
    %2458 = vmatmul.mubr.f32.gmra.mxu0 %v2283
    %v2459 = vpop.f32.mrf.mxu0
    %v2460 = vadd.f32 0.0, %v2459
    %v2461 = vpop.f32.mrf.mxu0
    %2462 = vmatprep.mubr.f32.mxu0 0.0
    %2463 = vmatmul.mubr.f32.gmra.mxu0 %v2286
    %v2464 = vpop.f32.mrf.mxu0
    %v2465 = vadd.f32 0.0, %v2464
    %v2466 = vpop.f32.mrf.mxu0
    %2467 = vdwg.mxu0
    %v2468 = vadd.f32 %v2168, %v2355
    %v2469 = vadd.f32 %v2169, %v2360
    %v2470 = vadd.f32 %v2170, %v2365
    %v2471 = vadd.f32 %v2171, %v2370
    %v2472 = vadd.f32 %v2172, %v2375
    %v2473 = vadd.f32 %v2173, %v2380
    %v2474 = vadd.f32 %v2174, %v2385
    %v2475 = vadd.f32 %v2175, %v2390
    %v2476 = vadd.f32 %v2176, %v2395
    %v2477 = vadd.f32 %v2177, %v2400
    %v2478 = vadd.f32 %v2178, %v2405
    %v2479 = vadd.f32 %v2179, %v2410
    %v2480 = vadd.f32 %v2180, %v2415
    %v2481 = vadd.f32 %v2181, %v2420
    %v2482 = vadd.f32 %v2182, %v2425
    %v2483 = vadd.f32 %v2183, %v2430
    %v2484 = vadd.f32 %v2184, %v2435
    %v2485 = vadd.f32 %v2185, %v2440
    %v2486 = vadd.f32 %v2186, %v2445
    %v2487 = vadd.f32 %v2187, %v2450
    %v2488 = vadd.f32 %v2188, %v2455
    %v2489 = vadd.f32 %v2189, %v2460
    %v2490 = vadd.f32 %v2190, %v2465
    %v2491 = vld [vmem:[#allocation2 + $0xf] sm:$0xff]
    %v2492 = vld [vmem:[#allocation2 + $0x17] sm:$0xff]
    %v2493 = vld [vmem:[#allocation2 + $0x1f] sm:$0xff]
    %v2494 = vld [vmem:[#allocation2 + $0x27] sm:$0xff]
    %v2495 = vld [vmem:[#allocation2 + $0x2f] sm:$0xff]
    %v2496 = vld [vmem:[#allocation2 + $0x37] sm:$0xff]
    %v2497 = vld [vmem:[#allocation2 + $0x3f] sm:$0xff]
    %v2498 = vld [vmem:[#allocation2 + $0x47] sm:$0xff]
    %v2499 = vld [vmem:[#allocation2 + $0x4f] sm:$0xff]
    %v2500 = vld [vmem:[#allocation2 + $0x57] sm:$0xff]
    %v2501 = vld [vmem:[#allocation2 + $0x5f] sm:$0xff]
    %v2502 = vld [vmem:[#allocation2 + $0x67] sm:$0xff]
    %v2503 = vld [vmem:[#allocation2 + $0x6f] sm:$0xff]
    %v2504 = vld [vmem:[#allocation2 + $0x77] sm:$0xff]
    %v2505 = vld [vmem:[#allocation2 + $0x7f] sm:$0xff]
    %v2506 = vld [vmem:[#allocation2 + $0x87] sm:$0xff]
    %v2507 = vld [vmem:[#allocation2 + $0x8f] sm:$0xff]
    %v2508 = vld [vmem:[#allocation2 + $0x97] sm:$0xff]
    %v2509 = vld [vmem:[#allocation2 + $0x9f] sm:$0xff]
    %v2510 = vld [vmem:[#allocation2 + $0xa7] sm:$0xff]
    %v2511 = vld [vmem:[#allocation2 + $0xaf] sm:$0xff]
    %v2512 = vld [vmem:[#allocation2 + $0xb7] sm:$0xff]
    %v2513 = vld [vmem:[#allocation2 + $0xbf] sm:$0xf]
    %s2514 = scalar_lea.vmem %s3, 224
    %v2515 = vld [vmem:[%s2514] sm:$0xff]
    %v2516 = vld [vmem:[%s2514 + $0x8] sm:$0xff]
    %v2517 = vld [vmem:[%s2514 + $0x10] sm:$0xff]
    %v2518 = vld [vmem:[%s2514 + $0x18] sm:$0xff]
    %v2520 = vsel %vm411, %v2491, 0
    %v2523 = vsel %vm411, %v2492, 0
    %v2526 = vsel %vm411, %v2493, 0
    %v2529 = vsel %vm411, %v2494, 0
    %v2532 = vsel %vm411, %v2495, 0
    %v2535 = vsel %vm411, %v2496, 0
    %v2538 = vsel %vm411, %v2497, 0
    %v2541 = vsel %vm411, %v2498, 0
    %v2544 = vsel %vm411, %v2499, 0
    %v2547 = vsel %vm411, %v2500, 0
    %v2550 = vsel %vm411, %v2501, 0
    %v2553 = vsel %vm411, %v2502, 0
    %v2556 = vsel %vm411, %v2503, 0
    %v2559 = vsel %vm411, %v2504, 0
    %v2562 = vsel %vm411, %v2505, 0
    %v2565 = vsel %vm411, %v2506, 0
    %v2568 = vsel %vm411, %v2507, 0
    %v2571 = vsel %vm411, %v2508, 0
    %v2574 = vsel %vm411, %v2509, 0
    %v2577 = vsel %vm411, %v2510, 0
    %v2580 = vsel %vm411, %v2511, 0
    %v2583 = vsel %vm411, %v2512, 0
    %v2586 = vsel %vm411, %v2513, 0
    %2588 = vmatprep.subr.mxu0 0.0
    %2589 = vmatpush1.msra.mxu0 0.0
    %2590 = vmatprep.subr.mxu0 0.0
    %2591 = vmatpush1.msra.mxu0 0.0
    %2592 = vmatprep.subr.mxu0 0.0
    %2593 = vmatpush1.msra.mxu0 0.0
    %2594 = vmatprep.subr.mxu0 0.0
    %2595 = vmatpush1.msra.mxu0 0.0
    %2596 = vmatprep.subr.mxu0 0.0
    %2597 = vmatpush1.msra.mxu0 0.0
    %2598 = vmatprep.subr.mxu0 0.0
    %2599 = vmatpush1.msra.mxu0 0.0
    %2600 = vmatprep.subr.mxu0 0.0
    %2601 = vmatpush1.msra.mxu0 0.0
    %2602 = vmatprep.subr.mxu0 0.0
    %2603 = vmatpush1.msra.mxu0 0.0
    %2604 = vmatprep.subr.mxu0 0.0
    %2605 = vmatpush1.msra.mxu0 0.0
    %2606 = vmatprep.subr.mxu0 0.0
    %2607 = vmatpush1.msra.mxu0 0.0
    %2608 = vmatprep.subr.mxu0 0.0
    %2609 = vmatpush1.msra.mxu0 0.0
    %2610 = vmatprep.subr.mxu0 0.0
    %2611 = vmatpush1.msra.mxu0 0.0
    %2612 = vmatprep.subr.mxu0 0.0
    %2613 = vmatpush1.msra.mxu0 %v2518
    %2614 = vmatprep.subr.mxu0 0.0
    %2615 = vmatpush1.msra.mxu0 %v2517
    %2616 = vmatprep.subr.mxu0 0.0
    %2617 = vmatpush1.msra.mxu0 %v2516
    %2618 = vmatprep.subr.mxu0 0.0
    %2619 = vmatpush1.msra.mxu0 %v2515
    %2620 = vmatprep.subr.mxu0 0.0
    %2621 = vmatpush2.msra.mxu0 0.0
    %2622 = vmatprep.subr.mxu0 0.0
    %2623 = vmatpush2.msra.mxu0 0.0
    %2624 = vmatprep.subr.mxu0 0.0
    %2625 = vmatpush2.msra.mxu0 0.0
    %2626 = vmatprep.subr.mxu0 0.0
    %2627 = vmatpush2.msra.mxu0 0.0
    %2628 = vmatprep.subr.mxu0 0.0
    %2629 = vmatpush2.msra.mxu0 0.0
    %2630 = vmatprep.subr.mxu0 0.0
    %2631 = vmatpush2.msra.mxu0 0.0
    %2632 = vmatprep.subr.mxu0 0.0
    %2633 = vmatpush2.msra.mxu0 0.0
    %2634 = vmatprep.subr.mxu0 0.0
    %2635 = vmatpush2.msra.mxu0 0.0
    %2636 = vmatprep.subr.mxu0 0.0
    %2637 = vmatpush2.msra.mxu0 0.0
    %2638 = vmatprep.subr.mxu0 0.0
    %2639 = vmatpush2.msra.mxu0 0.0
    %2640 = vmatprep.subr.mxu0 0.0
    %2641 = vmatpush2.msra.mxu0 0.0
    %2642 = vmatprep.subr.mxu0 0.0
    %2643 = vmatpush2.msra.mxu0 0.0
    %2644 = vmatprep.subr.mxu0 0.0
    %2645 = vmatpush2.msra.mxu0 0.0
    %2646 = vmatprep.subr.mxu0 0.0
    %2647 = vmatpush2.msra.mxu0 0.0
    %2648 = vmatprep.subr.mxu0 0.0
    %2649 = vmatpush2.msra.mxu0 0.0
    %2650 = vmatprep.subr.mxu0 0.0
    %2651 = vmatpush2.msra.mxu0 0.0
    %2652 = vmatprep.mubr.f32.mxu0 0.0
    %2653 = vmatmul.mubr.f32.gmra.mxu0 %v2520
    %v2654 = vpop.f32.mrf.mxu0
    %v2655 = vadd.f32 0.0, %v2654
    %v2656 = vpop.f32.mrf.mxu0
    %2657 = vmatprep.mubr.f32.mxu0 0.0
    %2658 = vmatmul.mubr.f32.gmra.mxu0 %v2523
    %v2659 = vpop.f32.mrf.mxu0
    %v2660 = vadd.f32 0.0, %v2659
    %v2661 = vpop.f32.mrf.mxu0
    %2662 = vmatprep.mubr.f32.mxu0 0.0
    %2663 = vmatmul.mubr.f32.gmra.mxu0 %v2526
    %v2664 = vpop.f32.mrf.mxu0
    %v2665 = vadd.f32 0.0, %v2664
    %v2666 = vpop.f32.mrf.mxu0
    %2667 = vmatprep.mubr.f32.mxu0 0.0
    %2668 = vmatmul.mubr.f32.gmra.mxu0 %v2529
    %v2669 = vpop.f32.mrf.mxu0
    %v2670 = vadd.f32 0.0, %v2669
    %v2671 = vpop.f32.mrf.mxu0
    %2672 = vmatprep.mubr.f32.mxu0 0.0
    %2673 = vmatmul.mubr.f32.gmra.mxu0 %v2532
    %v2674 = vpop.f32.mrf.mxu0
    %v2675 = vadd.f32 0.0, %v2674
    %v2676 = vpop.f32.mrf.mxu0
    %2677 = vmatprep.mubr.f32.mxu0 0.0
    %2678 = vmatmul.mubr.f32.gmra.mxu0 %v2535
    %v2679 = vpop.f32.mrf.mxu0
    %v2680 = vadd.f32 0.0, %v2679
    %v2681 = vpop.f32.mrf.mxu0
    %2682 = vmatprep.mubr.f32.mxu0 0.0
    %2683 = vmatmul.mubr.f32.gmra.mxu0 %v2538
    %v2684 = vpop.f32.mrf.mxu0
    %v2685 = vadd.f32 0.0, %v2684
    %v2686 = vpop.f32.mrf.mxu0
    %2687 = vmatprep.mubr.f32.mxu0 0.0
    %2688 = vmatmul.mubr.f32.gmra.mxu0 %v2541
    %v2689 = vpop.f32.mrf.mxu0
    %v2690 = vadd.f32 0.0, %v2689
    %v2691 = vpop.f32.mrf.mxu0
    %2692 = vmatprep.mubr.f32.mxu0 0.0
    %2693 = vmatmul.mubr.f32.gmra.mxu0 %v2544
    %v2694 = vpop.f32.mrf.mxu0
    %v2695 = vadd.f32 0.0, %v2694
    %v2696 = vpop.f32.mrf.mxu0
    %2697 = vmatprep.mubr.f32.mxu0 0.0
    %2698 = vmatmul.mubr.f32.gmra.mxu0 %v2547
    %v2699 = vpop.f32.mrf.mxu0
    %v2700 = vadd.f32 0.0, %v2699
    %v2701 = vpop.f32.mrf.mxu0
    %2702 = vmatprep.mubr.f32.mxu0 0.0
    %2703 = vmatmul.mubr.f32.gmra.mxu0 %v2550
    %v2704 = vpop.f32.mrf.mxu0
    %v2705 = vadd.f32 0.0, %v2704
    %v2706 = vpop.f32.mrf.mxu0
    %2707 = vmatprep.mubr.f32.mxu0 0.0
    %2708 = vmatmul.mubr.f32.gmra.mxu0 %v2553
    %v2709 = vpop.f32.mrf.mxu0
    %v2710 = vadd.f32 0.0, %v2709
    %v2711 = vpop.f32.mrf.mxu0
    %2712 = vmatprep.mubr.f32.mxu0 0.0
    %2713 = vmatmul.mubr.f32.gmra.mxu0 %v2556
    %v2714 = vpop.f32.mrf.mxu0
    %v2715 = vadd.f32 0.0, %v2714
    %v2716 = vpop.f32.mrf.mxu0
    %2717 = vmatprep.mubr.f32.mxu0 0.0
    %2718 = vmatmul.mubr.f32.gmra.mxu0 %v2559
    %v2719 = vpop.f32.mrf.mxu0
    %v2720 = vadd.f32 0.0, %v2719
    %v2721 = vpop.f32.mrf.mxu0
    %2722 = vmatprep.mubr.f32.mxu0 0.0
    %2723 = vmatmul.mubr.f32.gmra.mxu0 %v2562
    %v2724 = vpop.f32.mrf.mxu0
    %v2725 = vadd.f32 0.0, %v2724
    %v2726 = vpop.f32.mrf.mxu0
    %2727 = vmatprep.mubr.f32.mxu0 0.0
    %2728 = vmatmul.mubr.f32.gmra.mxu0 %v2565
    %v2729 = vpop.f32.mrf.mxu0
    %v2730 = vadd.f32 0.0, %v2729
    %v2731 = vpop.f32.mrf.mxu0
    %2732 = vmatprep.mubr.f32.mxu0 0.0
    %2733 = vmatmul.mubr.f32.gmra.mxu0 %v2568
    %v2734 = vpop.f32.mrf.mxu0
    %v2735 = vadd.f32 0.0, %v2734
    %v2736 = vpop.f32.mrf.mxu0
    %2737 = vmatprep.mubr.f32.mxu0 0.0
    %2738 = vmatmul.mubr.f32.gmra.mxu0 %v2571
    %v2739 = vpop.f32.mrf.mxu0
    %v2740 = vadd.f32 0.0, %v2739
    %v2741 = vpop.f32.mrf.mxu0
    %2742 = vmatprep.mubr.f32.mxu0 0.0
    %2743 = vmatmul.mubr.f32.gmra.mxu0 %v2574
    %v2744 = vpop.f32.mrf.mxu0
    %v2745 = vadd.f32 0.0, %v2744
    %v2746 = vpop.f32.mrf.mxu0
    %2747 = vmatprep.mubr.f32.mxu0 0.0
    %2748 = vmatmul.mubr.f32.gmra.mxu0 %v2577
    %v2749 = vpop.f32.mrf.mxu0
    %v2750 = vadd.f32 0.0, %v2749
    %v2751 = vpop.f32.mrf.mxu0
    %2752 = vmatprep.mubr.f32.mxu0 0.0
    %2753 = vmatmul.mubr.f32.gmra.mxu0 %v2580
    %v2754 = vpop.f32.mrf.mxu0
    %v2755 = vadd.f32 0.0, %v2754
    %v2756 = vpop.f32.mrf.mxu0
    %2757 = vmatprep.mubr.f32.mxu0 0.0
    %2758 = vmatmul.mubr.f32.gmra.mxu0 %v2583
    %v2759 = vpop.f32.mrf.mxu0
    %v2760 = vadd.f32 0.0, %v2759
    %v2761 = vpop.f32.mrf.mxu0
    %2762 = vmatprep.mubr.f32.mxu0 0.0
    %2763 = vmatmul.mubr.f32.gmra.mxu0 %v2586
    %v2764 = vpop.f32.mrf.mxu0
    %v2765 = vadd.f32 0.0, %v2764
    %v2766 = vpop.f32.mrf.mxu0
    %2767 = vdwg.mxu0
    %v2768 = vadd.f32 %v2468, %v2655
    %v2769 = vadd.f32 %v2469, %v2660
    %v2770 = vadd.f32 %v2470, %v2665
    %v2771 = vadd.f32 %v2471, %v2670
    %v2772 = vadd.f32 %v2472, %v2675
    %v2773 = vadd.f32 %v2473, %v2680
    %v2774 = vadd.f32 %v2474, %v2685
    %v2775 = vadd.f32 %v2475, %v2690
    %v2776 = vadd.f32 %v2476, %v2695
    %v2777 = vadd.f32 %v2477, %v2700
    %v2778 = vadd.f32 %v2478, %v2705
    %v2779 = vadd.f32 %v2479, %v2710
    %v2780 = vadd.f32 %v2480, %v2715
    %v2781 = vadd.f32 %v2481, %v2720
    %v2782 = vadd.f32 %v2482, %v2725
    %v2783 = vadd.f32 %v2483, %v2730
    %v2784 = vadd.f32 %v2484, %v2735
    %v2785 = vadd.f32 %v2485, %v2740
    %v2786 = vadd.f32 %v2486, %v2745
    %v2787 = vadd.f32 %v2487, %v2750
    %v2788 = vadd.f32 %v2488, %v2755
    %v2789 = vadd.f32 %v2489, %v2760
    %v2790 = vadd.f32 %v2490, %v2765
    %v2791 = vld [vmem:[#allocation2 + $0x10] sm:$0xff]
    %v2792 = vld [vmem:[#allocation2 + $0x18] sm:$0xff]
    %v2793 = vld [vmem:[#allocation2 + $0x20] sm:$0xff]
    %v2794 = vld [vmem:[#allocation2 + $0x28] sm:$0xff]
    %v2795 = vld [vmem:[#allocation2 + $0x30] sm:$0xff]
    %v2796 = vld [vmem:[#allocation2 + $0x38] sm:$0xff]
    %v2797 = vld [vmem:[#allocation2 + $0x40] sm:$0xff]
    %v2798 = vld [vmem:[#allocation2 + $0x48] sm:$0xff]
    %v2799 = vld [vmem:[#allocation2 + $0x50] sm:$0xff]
    %v2800 = vld [vmem:[#allocation2 + $0x58] sm:$0xff]
    %v2801 = vld [vmem:[#allocation2 + $0x60] sm:$0xff]
    %v2802 = vld [vmem:[#allocation2 + $0x68] sm:$0xff]
    %v2803 = vld [vmem:[#allocation2 + $0x70] sm:$0xff]
    %v2804 = vld [vmem:[#allocation2 + $0x78] sm:$0xff]
    %v2805 = vld [vmem:[#allocation2 + $0x80] sm:$0xff]
    %v2806 = vld [vmem:[#allocation2 + $0x88] sm:$0xff]
    %v2807 = vld [vmem:[#allocation2 + $0x90] sm:$0xff]
    %v2808 = vld [vmem:[#allocation2 + $0x98] sm:$0xff]
    %v2809 = vld [vmem:[#allocation2 + $0xa0] sm:$0xff]
    %v2810 = vld [vmem:[#allocation2 + $0xa8] sm:$0xff]
    %v2811 = vld [vmem:[#allocation2 + $0xb0] sm:$0xff]
    %v2812 = vld [vmem:[#allocation2 + $0xb8] sm:$0xff]
    %v2813 = vld [vmem:[#allocation2 + $0xc0] sm:$0xf]
    %s2814 = scalar_lea.vmem %s3, 256
    %v2815 = vld [vmem:[%s2814] sm:$0xff]
    %v2816 = vld [vmem:[%s2814 + $0x8] sm:$0xff]
    %v2817 = vld [vmem:[%s2814 + $0x10] sm:$0xff]
    %v2818 = vld [vmem:[%s2814 + $0x18] sm:$0xff]
    %v2820 = vsel %vm411, %v2791, 0
    %v2823 = vsel %vm411, %v2792, 0
    %v2826 = vsel %vm411, %v2793, 0
    %v2829 = vsel %vm411, %v2794, 0
    %v2832 = vsel %vm411, %v2795, 0
    %v2835 = vsel %vm411, %v2796, 0
    %v2838 = vsel %vm411, %v2797, 0
    %v2841 = vsel %vm411, %v2798, 0
    %v2844 = vsel %vm411, %v2799, 0
    %v2847 = vsel %vm411, %v2800, 0
    %v2850 = vsel %vm411, %v2801, 0
    %v2853 = vsel %vm411, %v2802, 0
    %v2856 = vsel %vm411, %v2803, 0
    %v2859 = vsel %vm411, %v2804, 0
    %v2862 = vsel %vm411, %v2805, 0
    %v2865 = vsel %vm411, %v2806, 0
    %v2868 = vsel %vm411, %v2807, 0
    %v2871 = vsel %vm411, %v2808, 0
    %v2874 = vsel %vm411, %v2809, 0
    %v2877 = vsel %vm411, %v2810, 0
    %v2880 = vsel %vm411, %v2811, 0
    %v2883 = vsel %vm411, %v2812, 0
    %v2886 = vsel %vm411, %v2813, 0
    %2888 = vmatprep.subr.mxu0 0.0
    %2889 = vmatpush1.msra.mxu0 0.0
    %2890 = vmatprep.subr.mxu0 0.0
    %2891 = vmatpush1.msra.mxu0 0.0
    %2892 = vmatprep.subr.mxu0 0.0
    %2893 = vmatpush1.msra.mxu0 0.0
    %2894 = vmatprep.subr.mxu0 0.0
    %2895 = vmatpush1.msra.mxu0 0.0
    %2896 = vmatprep.subr.mxu0 0.0
    %2897 = vmatpush1.msra.mxu0 0.0
    %2898 = vmatprep.subr.mxu0 0.0
    %2899 = vmatpush1.msra.mxu0 0.0
    %2900 = vmatprep.subr.mxu0 0.0
    %2901 = vmatpush1.msra.mxu0 0.0
    %2902 = vmatprep.subr.mxu0 0.0
    %2903 = vmatpush1.msra.mxu0 0.0
    %2904 = vmatprep.subr.mxu0 0.0
    %2905 = vmatpush1.msra.mxu0 0.0
    %2906 = vmatprep.subr.mxu0 0.0
    %2907 = vmatpush1.msra.mxu0 0.0
    %2908 = vmatprep.subr.mxu0 0.0
    %2909 = vmatpush1.msra.mxu0 0.0
    %2910 = vmatprep.subr.mxu0 0.0
    %2911 = vmatpush1.msra.mxu0 0.0
    %2912 = vmatprep.subr.mxu0 0.0
    %2913 = vmatpush1.msra.mxu0 %v2818
    %2914 = vmatprep.subr.mxu0 0.0
    %2915 = vmatpush1.msra.mxu0 %v2817
    %2916 = vmatprep.subr.mxu0 0.0
    %2917 = vmatpush1.msra.mxu0 %v2816
    %2918 = vmatprep.subr.mxu0 0.0
    %2919 = vmatpush1.msra.mxu0 %v2815
    %2920 = vmatprep.subr.mxu0 0.0
    %2921 = vmatpush2.msra.mxu0 0.0
    %2922 = vmatprep.subr.mxu0 0.0
    %2923 = vmatpush2.msra.mxu0 0.0
    %2924 = vmatprep.subr.mxu0 0.0
    %2925 = vmatpush2.msra.mxu0 0.0
    %2926 = vmatprep.subr.mxu0 0.0
    %2927 = vmatpush2.msra.mxu0 0.0
    %2928 = vmatprep.subr.mxu0 0.0
    %2929 = vmatpush2.msra.mxu0 0.0
    %2930 = vmatprep.subr.mxu0 0.0
    %2931 = vmatpush2.msra.mxu0 0.0
    %2932 = vmatprep.subr.mxu0 0.0
    %2933 = vmatpush2.msra.mxu0 0.0
    %2934 = vmatprep.subr.mxu0 0.0
    %2935 = vmatpush2.msra.mxu0 0.0
    %2936 = vmatprep.subr.mxu0 0.0
    %2937 = vmatpush2.msra.mxu0 0.0
    %2938 = vmatprep.subr.mxu0 0.0
    %2939 = vmatpush2.msra.mxu0 0.0
    %2940 = vmatprep.subr.mxu0 0.0
    %2941 = vmatpush2.msra.mxu0 0.0
    %2942 = vmatprep.subr.mxu0 0.0
    %2943 = vmatpush2.msra.mxu0 0.0
    %2944 = vmatprep.subr.mxu0 0.0
    %2945 = vmatpush2.msra.mxu0 0.0
    %2946 = vmatprep.subr.mxu0 0.0
    %2947 = vmatpush2.msra.mxu0 0.0
    %2948 = vmatprep.subr.mxu0 0.0
    %2949 = vmatpush2.msra.mxu0 0.0
    %2950 = vmatprep.subr.mxu0 0.0
    %2951 = vmatpush2.msra.mxu0 0.0
    %2952 = vmatprep.mubr.f32.mxu0 0.0
    %2953 = vmatmul.mubr.f32.gmra.mxu0 %v2820
    %v2954 = vpop.f32.mrf.mxu0
    %v2955 = vadd.f32 0.0, %v2954
    %v2956 = vpop.f32.mrf.mxu0
    %2957 = vmatprep.mubr.f32.mxu0 0.0
    %2958 = vmatmul.mubr.f32.gmra.mxu0 %v2823
    %v2959 = vpop.f32.mrf.mxu0
    %v2960 = vadd.f32 0.0, %v2959
    %v2961 = vpop.f32.mrf.mxu0
    %2962 = vmatprep.mubr.f32.mxu0 0.0
    %2963 = vmatmul.mubr.f32.gmra.mxu0 %v2826
    %v2964 = vpop.f32.mrf.mxu0
    %v2965 = vadd.f32 0.0, %v2964
    %v2966 = vpop.f32.mrf.mxu0
    %2967 = vmatprep.mubr.f32.mxu0 0.0
    %2968 = vmatmul.mubr.f32.gmra.mxu0 %v2829
    %v2969 = vpop.f32.mrf.mxu0
    %v2970 = vadd.f32 0.0, %v2969
    %v2971 = vpop.f32.mrf.mxu0
    %2972 = vmatprep.mubr.f32.mxu0 0.0
    %2973 = vmatmul.mubr.f32.gmra.mxu0 %v2832
    %v2974 = vpop.f32.mrf.mxu0
    %v2975 = vadd.f32 0.0, %v2974
    %v2976 = vpop.f32.mrf.mxu0
    %2977 = vmatprep.mubr.f32.mxu0 0.0
    %2978 = vmatmul.mubr.f32.gmra.mxu0 %v2835
    %v2979 = vpop.f32.mrf.mxu0
    %v2980 = vadd.f32 0.0, %v2979
    %v2981 = vpop.f32.mrf.mxu0
    %2982 = vmatprep.mubr.f32.mxu0 0.0
    %2983 = vmatmul.mubr.f32.gmra.mxu0 %v2838
    %v2984 = vpop.f32.mrf.mxu0
    %v2985 = vadd.f32 0.0, %v2984
    %v2986 = vpop.f32.mrf.mxu0
    %2987 = vmatprep.mubr.f32.mxu0 0.0
    %2988 = vmatmul.mubr.f32.gmra.mxu0 %v2841
    %v2989 = vpop.f32.mrf.mxu0
    %v2990 = vadd.f32 0.0, %v2989
    %v2991 = vpop.f32.mrf.mxu0
    %2992 = vmatprep.mubr.f32.mxu0 0.0
    %2993 = vmatmul.mubr.f32.gmra.mxu0 %v2844
    %v2994 = vpop.f32.mrf.mxu0
    %v2995 = vadd.f32 0.0, %v2994
    %v2996 = vpop.f32.mrf.mxu0
    %2997 = vmatprep.mubr.f32.mxu0 0.0
    %2998 = vmatmul.mubr.f32.gmra.mxu0 %v2847
    %v2999 = vpop.f32.mrf.mxu0
    %v3000 = vadd.f32 0.0, %v2999
    %v3001 = vpop.f32.mrf.mxu0
    %3002 = vmatprep.mubr.f32.mxu0 0.0
    %3003 = vmatmul.mubr.f32.gmra.mxu0 %v2850
    %v3004 = vpop.f32.mrf.mxu0
    %v3005 = vadd.f32 0.0, %v3004
    %v3006 = vpop.f32.mrf.mxu0
    %3007 = vmatprep.mubr.f32.mxu0 0.0
    %3008 = vmatmul.mubr.f32.gmra.mxu0 %v2853
    %v3009 = vpop.f32.mrf.mxu0
    %v3010 = vadd.f32 0.0, %v3009
    %v3011 = vpop.f32.mrf.mxu0
    %3012 = vmatprep.mubr.f32.mxu0 0.0
    %3013 = vmatmul.mubr.f32.gmra.mxu0 %v2856
    %v3014 = vpop.f32.mrf.mxu0
    %v3015 = vadd.f32 0.0, %v3014
    %v3016 = vpop.f32.mrf.mxu0
    %3017 = vmatprep.mubr.f32.mxu0 0.0
    %3018 = vmatmul.mubr.f32.gmra.mxu0 %v2859
    %v3019 = vpop.f32.mrf.mxu0
    %v3020 = vadd.f32 0.0, %v3019
    %v3021 = vpop.f32.mrf.mxu0
    %3022 = vmatprep.mubr.f32.mxu0 0.0
    %3023 = vmatmul.mubr.f32.gmra.mxu0 %v2862
    %v3024 = vpop.f32.mrf.mxu0
    %v3025 = vadd.f32 0.0, %v3024
    %v3026 = vpop.f32.mrf.mxu0
    %3027 = vmatprep.mubr.f32.mxu0 0.0
    %3028 = vmatmul.mubr.f32.gmra.mxu0 %v2865
    %v3029 = vpop.f32.mrf.mxu0
    %v3030 = vadd.f32 0.0, %v3029
    %v3031 = vpop.f32.mrf.mxu0
    %3032 = vmatprep.mubr.f32.mxu0 0.0
    %3033 = vmatmul.mubr.f32.gmra.mxu0 %v2868
    %v3034 = vpop.f32.mrf.mxu0
    %v3035 = vadd.f32 0.0, %v3034
    %v3036 = vpop.f32.mrf.mxu0
    %3037 = vmatprep.mubr.f32.mxu0 0.0
    %3038 = vmatmul.mubr.f32.gmra.mxu0 %v2871
    %v3039 = vpop.f32.mrf.mxu0
    %v3040 = vadd.f32 0.0, %v3039
    %v3041 = vpop.f32.mrf.mxu0
    %3042 = vmatprep.mubr.f32.mxu0 0.0
    %3043 = vmatmul.mubr.f32.gmra.mxu0 %v2874
    %v3044 = vpop.f32.mrf.mxu0
    %v3045 = vadd.f32 0.0, %v3044
    %v3046 = vpop.f32.mrf.mxu0
    %3047 = vmatprep.mubr.f32.mxu0 0.0
    %3048 = vmatmul.mubr.f32.gmra.mxu0 %v2877
    %v3049 = vpop.f32.mrf.mxu0
    %v3050 = vadd.f32 0.0, %v3049
    %v3051 = vpop.f32.mrf.mxu0
    %3052 = vmatprep.mubr.f32.mxu0 0.0
    %3053 = vmatmul.mubr.f32.gmra.mxu0 %v2880
    %v3054 = vpop.f32.mrf.mxu0
    %v3055 = vadd.f32 0.0, %v3054
    %v3056 = vpop.f32.mrf.mxu0
    %3057 = vmatprep.mubr.f32.mxu0 0.0
    %3058 = vmatmul.mubr.f32.gmra.mxu0 %v2883
    %v3059 = vpop.f32.mrf.mxu0
    %v3060 = vadd.f32 0.0, %v3059
    %v3061 = vpop.f32.mrf.mxu0
    %3062 = vmatprep.mubr.f32.mxu0 0.0
    %3063 = vmatmul.mubr.f32.gmra.mxu0 %v2886
    %v3064 = vpop.f32.mrf.mxu0
    %v3065 = vadd.f32 0.0, %v3064
    %v3066 = vpop.f32.mrf.mxu0
    %3067 = vdwg.mxu0
    %v3068 = vadd.f32 %v2768, %v2955
    %v3069 = vadd.f32 %v2769, %v2960
    %v3070 = vadd.f32 %v2770, %v2965
    %v3071 = vadd.f32 %v2771, %v2970
    %v3072 = vadd.f32 %v2772, %v2975
    %v3073 = vadd.f32 %v2773, %v2980
    %v3074 = vadd.f32 %v2774, %v2985
    %v3075 = vadd.f32 %v2775, %v2990
    %v3076 = vadd.f32 %v2776, %v2995
    %v3077 = vadd.f32 %v2777, %v3000
    %v3078 = vadd.f32 %v2778, %v3005
    %v3079 = vadd.f32 %v2779, %v3010
    %v3080 = vadd.f32 %v2780, %v3015
    %v3081 = vadd.f32 %v2781, %v3020
    %v3082 = vadd.f32 %v2782, %v3025
    %v3083 = vadd.f32 %v2783, %v3030
    %v3084 = vadd.f32 %v2784, %v3035
    %v3085 = vadd.f32 %v2785, %v3040
    %v3086 = vadd.f32 %v2786, %v3045
    %v3087 = vadd.f32 %v2787, %v3050
    %v3088 = vadd.f32 %v2788, %v3055
    %v3089 = vadd.f32 %v2789, %v3060
    %v3090 = vadd.f32 %v2790, %v3065
    %3091 = vst.msk [vmem:[#allocation3] sm:$0xff] %vm411, %v3068
    %3092 = vst.msk [vmem:[#allocation3 + $0x8] sm:$0xff] %vm411, %v3069
    %3093 = vst.msk [vmem:[#allocation3 + $0x10] sm:$0xff] %vm411, %v3070
    %3094 = vst.msk [vmem:[#allocation3 + $0x18] sm:$0xff] %vm411, %v3071
    %3095 = vst.msk [vmem:[#allocation3 + $0x20] sm:$0xff] %vm411, %v3072
    %3096 = vst.msk [vmem:[#allocation3 + $0x28] sm:$0xff] %vm411, %v3073
    %3097 = vst.msk [vmem:[#allocation3 + $0x30] sm:$0xff] %vm411, %v3074
    %3098 = vst.msk [vmem:[#allocation3 + $0x38] sm:$0xff] %vm411, %v3075
    %3099 = vst.msk [vmem:[#allocation3 + $0x40] sm:$0xff] %vm411, %v3076
    %3100 = vst.msk [vmem:[#allocation3 + $0x48] sm:$0xff] %vm411, %v3077
    %3101 = vst.msk [vmem:[#allocation3 + $0x50] sm:$0xff] %vm411, %v3078
    %3102 = vst.msk [vmem:[#allocation3 + $0x58] sm:$0xff] %vm411, %v3079
    %3103 = vst.msk [vmem:[#allocation3 + $0x60] sm:$0xff] %vm411, %v3080
    %3104 = vst.msk [vmem:[#allocation3 + $0x68] sm:$0xff] %vm411, %v3081
    %3105 = vst.msk [vmem:[#allocation3 + $0x70] sm:$0xff] %vm411, %v3082
    %3106 = vst.msk [vmem:[#allocation3 + $0x78] sm:$0xff] %vm411, %v3083
    %3107 = vst.msk [vmem:[#allocation3 + $0x80] sm:$0xff] %vm411, %v3084
    %3108 = vst.msk [vmem:[#allocation3 + $0x88] sm:$0xff] %vm411, %v3085
    %3109 = vst.msk [vmem:[#allocation3 + $0x90] sm:$0xff] %vm411, %v3086
    %3110 = vst.msk [vmem:[#allocation3 + $0x98] sm:$0xff] %vm411, %v3087
    %3111 = vst.msk [vmem:[#allocation3 + $0xa0] sm:$0xff] %vm411, %v3088
    %3112 = vst.msk [vmem:[#allocation3 + $0xa8] sm:$0xff] %vm411, %v3089
    %3113 = vst.msk [vmem:[#allocation3 + $0xb0] sm:$0xf] %vm436, %v3090
    %v3114 = vld [vmem:[%s4] sm:$0x1]
    %v3115 = vld [vmem:[#allocation3] ss:$49 sm:$0xf]
    %v3117 = vlaneseq
    %v3118 = vshrl.u32 %v3117, 7
    %v3119 = vsub.s32 0, %v3118
    %v3120 = vrot.slane %v3114, %v3119
    %v3122 = vadd.f32 %v3115, %v3120
    %v3123 = vmax.f32 %v3122, 0.0
    %v3124 = vld [vmem:[#allocation4] sm:$0xff]
    %v3125 = vld [vmem:[#allocation4 + $0x8] sm:$0xff]
    %v3126 = vld [vmem:[#allocation4 + $0x10] sm:$0xff]
    %v3127 = vld [vmem:[#allocation4 + $0x18] sm:$0xff]
    %s3128 = scalar_lea.vmem [#allocation3], 1
    %v3129 = vld [vmem:[%s3128] ss:$49 sm:$0xf]
    %v3130 = vadd.f32 %v3129, %v3120
    %v3131 = vmax.f32 %v3130, 0.0
    %s3132 = scalar_lea.vmem [#allocation4], 32
    %v3133 = vld [vmem:[%s3132] sm:$0xff]
    %v3134 = vld [vmem:[%s3132 + $0x8] sm:$0xff]
    %v3135 = vld [vmem:[%s3132 + $0x10] sm:$0xff]
    %v3136 = vld [vmem:[%s3132 + $0x18] sm:$0xff]
    %v3138 = vsel %vm411, %v3131, 0
    %3140 = vmatprep.subr.mxu0 0.0
    %3141 = vmatpush1.msra.mxu0 0.0
    %3142 = vmatprep.subr.mxu0 0.0
    %3143 = vmatpush1.msra.mxu0 0.0
    %3144 = vmatprep.subr.mxu0 0.0
    %3145 = vmatpush1.msra.mxu0 0.0
    %3146 = vmatprep.subr.mxu0 0.0
    %3147 = vmatpush1.msra.mxu0 0.0
    %3148 = vmatprep.subr.mxu0 0.0
    %3149 = vmatpush1.msra.mxu0 0.0
    %3150 = vmatprep.subr.mxu0 0.0
    %3151 = vmatpush1.msra.mxu0 0.0
    %3152 = vmatprep.subr.mxu0 0.0
    %3153 = vmatpush1.msra.mxu0 0.0
    %3154 = vmatprep.subr.mxu0 0.0
    %3155 = vmatpush1.msra.mxu0 0.0
    %3156 = vmatprep.subr.mxu0 0.0
    %3157 = vmatpush1.msra.mxu0 0.0
    %3158 = vmatprep.subr.mxu0 0.0
    %3159 = vmatpush1.msra.mxu0 0.0
    %3160 = vmatprep.subr.mxu0 0.0
    %3161 = vmatpush1.msra.mxu0 0.0
    %3162 = vmatprep.subr.mxu0 0.0
    %3163 = vmatpush1.msra.mxu0 0.0
    %3164 = vmatprep.subr.mxu0 0.0
    %3165 = vmatpush1.msra.mxu0 %v3136
    %3166 = vmatprep.subr.mxu0 0.0
    %3167 = vmatpush1.msra.mxu0 %v3135
    %3168 = vmatprep.subr.mxu0 0.0
    %3169 = vmatpush1.msra.mxu0 %v3134
    %3170 = vmatprep.subr.mxu0 0.0
    %3171 = vmatpush1.msra.mxu0 %v3133
    %3172 = vmatprep.subr.mxu0 0.0
    %3173 = vmatpush2.msra.mxu0 0.0
    %3174 = vmatprep.subr.mxu0 0.0
    %3175 = vmatpush2.msra.mxu0 0.0
    %3176 = vmatprep.subr.mxu0 0.0
    %3177 = vmatpush2.msra.mxu0 0.0
    %3178 = vmatprep.subr.mxu0 0.0
    %3179 = vmatpush2.msra.mxu0 0.0
    %3180 = vmatprep.subr.mxu0 0.0
    %3181 = vmatpush2.msra.mxu0 0.0
    %3182 = vmatprep.subr.mxu0 0.0
    %3183 = vmatpush2.msra.mxu0 0.0
    %3184 = vmatprep.subr.mxu0 0.0
    %3185 = vmatpush2.msra.mxu0 0.0
    %3186 = vmatprep.subr.mxu0 0.0
    %3187 = vmatpush2.msra.mxu0 0.0
    %3188 = vmatprep.subr.mxu0 0.0
    %3189 = vmatpush2.msra.mxu0 0.0
    %3190 = vmatprep.subr.mxu0 0.0
    %3191 = vmatpush2.msra.mxu0 0.0
    %3192 = vmatprep.subr.mxu0 0.0
    %3193 = vmatpush2.msra.mxu0 0.0
    %3194 = vmatprep.subr.mxu0 0.0
    %3195 = vmatpush2.msra.mxu0 0.0
    %3196 = vmatprep.subr.mxu0 0.0
    %3197 = vmatpush2.msra.mxu0 0.0
    %3198 = vmatprep.subr.mxu0 0.0
    %3199 = vmatpush2.msra.mxu0 0.0
    %3200 = vmatprep.subr.mxu0 0.0
    %3201 = vmatpush2.msra.mxu0 0.0
    %3202 = vmatprep.subr.mxu0 0.0
    %3203 = vmatpush2.msra.mxu0 0.0
    %3204 = vmatprep.mubr.f32.mxu0 0.0
    %3205 = vmatmul.mubr.f32.gmra.mxu0 %v3138
    %v3206 = vpop.f32.mrf.mxu0
    %v3207 = vadd.f32 0.0, %v3206
    %v3208 = vpop.f32.mrf.mxu0
    %3209 = vdwg.mxu0
    %v3211 = vsel %vm411, %v3123, 0
    %3213 = vmatprep.subr.mxu0 0.0
    %3214 = vmatpush1.msra.mxu0 0.0
    %3215 = vmatprep.subr.mxu0 0.0
    %3216 = vmatpush1.msra.mxu0 0.0
    %3217 = vmatprep.subr.mxu0 0.0
    %3218 = vmatpush1.msra.mxu0 0.0
    %3219 = vmatprep.subr.mxu0 0.0
    %3220 = vmatpush1.msra.mxu0 0.0
    %3221 = vmatprep.subr.mxu0 0.0
    %3222 = vmatpush1.msra.mxu0 0.0
    %3223 = vmatprep.subr.mxu0 0.0
    %3224 = vmatpush1.msra.mxu0 0.0
    %3225 = vmatprep.subr.mxu0 0.0
    %3226 = vmatpush1.msra.mxu0 0.0
    %3227 = vmatprep.subr.mxu0 0.0
    %3228 = vmatpush1.msra.mxu0 0.0
    %3229 = vmatprep.subr.mxu0 0.0
    %3230 = vmatpush1.msra.mxu0 0.0
    %3231 = vmatprep.subr.mxu0 0.0
    %3232 = vmatpush1.msra.mxu0 0.0
    %3233 = vmatprep.subr.mxu0 0.0
    %3234 = vmatpush1.msra.mxu0 0.0
    %3235 = vmatprep.subr.mxu0 0.0
    %3236 = vmatpush1.msra.mxu0 0.0
    %3237 = vmatprep.subr.mxu0 0.0
    %3238 = vmatpush1.msra.mxu0 %v3127
    %3239 = vmatprep.subr.mxu0 0.0
    %3240 = vmatpush1.msra.mxu0 %v3126
    %3241 = vmatprep.subr.mxu0 0.0
    %3242 = vmatpush1.msra.mxu0 %v3125
    %3243 = vmatprep.subr.mxu0 0.0
    %3244 = vmatpush1.msra.mxu0 %v3124
    %3245 = vmatprep.subr.mxu0 0.0
    %3246 = vmatpush2.msra.mxu0 0.0
    %3247 = vmatprep.subr.mxu0 0.0
    %3248 = vmatpush2.msra.mxu0 0.0
    %3249 = vmatprep.subr.mxu0 0.0
    %3250 = vmatpush2.msra.mxu0 0.0
    %3251 = vmatprep.subr.mxu0 0.0
    %3252 = vmatpush2.msra.mxu0 0.0
    %3253 = vmatprep.subr.mxu0 0.0
    %3254 = vmatpush2.msra.mxu0 0.0
    %3255 = vmatprep.subr.mxu0 0.0
    %3256 = vmatpush2.msra.mxu0 0.0
    %3257 = vmatprep.subr.mxu0 0.0
    %3258 = vmatpush2.msra.mxu0 0.0
    %3259 = vmatprep.subr.mxu0 0.0
    %3260 = vmatpush2.msra.mxu0 0.0
    %3261 = vmatprep.subr.mxu0 0.0
    %3262 = vmatpush2.msra.mxu0 0.0
    %3263 = vmatprep.subr.mxu0 0.0
    %3264 = vmatpush2.msra.mxu0 0.0
    %3265 = vmatprep.subr.mxu0 0.0
    %3266 = vmatpush2.msra.mxu0 0.0
    %3267 = vmatprep.subr.mxu0 0.0
    %3268 = vmatpush2.msra.mxu0 0.0
    %3269 = vmatprep.subr.mxu0 0.0
    %3270 = vmatpush2.msra.mxu0 0.0
    %3271 = vmatprep.subr.mxu0 0.0
    %3272 = vmatpush2.msra.mxu0 0.0
    %3273 = vmatprep.subr.mxu0 0.0
    %3274 = vmatpush2.msra.mxu0 0.0
    %3275 = vmatprep.subr.mxu0 0.0
    %3276 = vmatpush2.msra.mxu0 0.0
    %3277 = vmatprep.mubr.f32.mxu0 0.0
    %3278 = vmatmul.mubr.f32.gmra.mxu0 %v3211
    %v3279 = vpop.f32.mrf.mxu0
    %v3280 = vadd.f32 %v3207, %v3279
    %v3281 = vpop.f32.mrf.mxu0
    %3282 = vdwg.mxu0
    %s3283 = scalar_lea.vmem [#allocation3], 2
    %v3284 = vld [vmem:[%s3283] ss:$49 sm:$0xf]
    %v3285 = vadd.f32 %v3284, %v3120
    %v3286 = vmax.f32 %v3285, 0.0
    %s3287 = scalar_lea.vmem [#allocation4], 64
    %v3288 = vld [vmem:[%s3287] sm:$0xff]
    %v3289 = vld [vmem:[%s3287 + $0x8] sm:$0xff]
    %v3290 = vld [vmem:[%s3287 + $0x10] sm:$0xff]
    %v3291 = vld [vmem:[%s3287 + $0x18] sm:$0xff]
    %v3293 = vsel %vm411, %v3286, 0
    %3295 = vmatprep.subr.mxu0 0.0
    %3296 = vmatpush1.msra.mxu0 0.0
    %3297 = vmatprep.subr.mxu0 0.0
    %3298 = vmatpush1.msra.mxu0 0.0
    %3299 = vmatprep.subr.mxu0 0.0
    %3300 = vmatpush1.msra.mxu0 0.0
    %3301 = vmatprep.subr.mxu0 0.0
    %3302 = vmatpush1.msra.mxu0 0.0
    %3303 = vmatprep.subr.mxu0 0.0
    %3304 = vmatpush1.msra.mxu0 0.0
    %3305 = vmatprep.subr.mxu0 0.0
    %3306 = vmatpush1.msra.mxu0 0.0
    %3307 = vmatprep.subr.mxu0 0.0
    %3308 = vmatpush1.msra.mxu0 0.0
    %3309 = vmatprep.subr.mxu0 0.0
    %3310 = vmatpush1.msra.mxu0 0.0
    %3311 = vmatprep.subr.mxu0 0.0
    %3312 = vmatpush1.msra.mxu0 0.0
    %3313 = vmatprep.subr.mxu0 0.0
    %3314 = vmatpush1.msra.mxu0 0.0
    %3315 = vmatprep.subr.mxu0 0.0
    %3316 = vmatpush1.msra.mxu0 0.0
    %3317 = vmatprep.subr.mxu0 0.0
    %3318 = vmatpush1.msra.mxu0 0.0
    %3319 = vmatprep.subr.mxu0 0.0
    %3320 = vmatpush1.msra.mxu0 %v3291
    %3321 = vmatprep.subr.mxu0 0.0
    %3322 = vmatpush1.msra.mxu0 %v3290
    %3323 = vmatprep.subr.mxu0 0.0
    %3324 = vmatpush1.msra.mxu0 %v3289
    %3325 = vmatprep.subr.mxu0 0.0
    %3326 = vmatpush1.msra.mxu0 %v3288
    %3327 = vmatprep.subr.mxu0 0.0
    %3328 = vmatpush2.msra.mxu0 0.0
    %3329 = vmatprep.subr.mxu0 0.0
    %3330 = vmatpush2.msra.mxu0 0.0
    %3331 = vmatprep.subr.mxu0 0.0
    %3332 = vmatpush2.msra.mxu0 0.0
    %3333 = vmatprep.subr.mxu0 0.0
    %3334 = vmatpush2.msra.mxu0 0.0
    %3335 = vmatprep.subr.mxu0 0.0
    %3336 = vmatpush2.msra.mxu0 0.0
    %3337 = vmatprep.subr.mxu0 0.0
    %3338 = vmatpush2.msra.mxu0 0.0
    %3339 = vmatprep.subr.mxu0 0.0
    %3340 = vmatpush2.msra.mxu0 0.0
    %3341 = vmatprep.subr.mxu0 0.0
    %3342 = vmatpush2.msra.mxu0 0.0
    %3343 = vmatprep.subr.mxu0 0.0
    %3344 = vmatpush2.msra.mxu0 0.0
    %3345 = vmatprep.subr.mxu0 0.0
    %3346 = vmatpush2.msra.mxu0 0.0
    %3347 = vmatprep.subr.mxu0 0.0
    %3348 = vmatpush2.msra.mxu0 0.0
    %3349 = vmatprep.subr.mxu0 0.0
    %3350 = vmatpush2.msra.mxu0 0.0
    %3351 = vmatprep.subr.mxu0 0.0
    %3352 = vmatpush2.msra.mxu0 0.0
    %3353 = vmatprep.subr.mxu0 0.0
    %3354 = vmatpush2.msra.mxu0 0.0
    %3355 = vmatprep.subr.mxu0 0.0
    %3356 = vmatpush2.msra.mxu0 0.0
    %3357 = vmatprep.subr.mxu0 0.0
    %3358 = vmatpush2.msra.mxu0 0.0
    %3359 = vmatprep.mubr.f32.mxu0 0.0
    %3360 = vmatmul.mubr.f32.gmra.mxu0 %v3293
    %v3361 = vpop.f32.mrf.mxu0
    %v3362 = vadd.f32 0.0, %v3361
    %v3363 = vpop.f32.mrf.mxu0
    %3364 = vdwg.mxu0
    %v3365 = vadd.f32 %v3280, %v3362
    %s3366 = scalar_lea.vmem [#allocation3], 3
    %v3367 = vld [vmem:[%s3366] ss:$49 sm:$0xf]
    %v3368 = vadd.f32 %v3367, %v3120
    %v3369 = vmax.f32 %v3368, 0.0
    %s3370 = scalar_lea.vmem [#allocation4], 96
    %v3371 = vld [vmem:[%s3370] sm:$0xff]
    %v3372 = vld [vmem:[%s3370 + $0x8] sm:$0xff]
    %v3373 = vld [vmem:[%s3370 + $0x10] sm:$0xff]
    %v3374 = vld [vmem:[%s3370 + $0x18] sm:$0xff]
    %v3376 = vsel %vm411, %v3369, 0
    %3378 = vmatprep.subr.mxu0 0.0
    %3379 = vmatpush1.msra.mxu0 0.0
    %3380 = vmatprep.subr.mxu0 0.0
    %3381 = vmatpush1.msra.mxu0 0.0
    %3382 = vmatprep.subr.mxu0 0.0
    %3383 = vmatpush1.msra.mxu0 0.0
    %3384 = vmatprep.subr.mxu0 0.0
    %3385 = vmatpush1.msra.mxu0 0.0
    %3386 = vmatprep.subr.mxu0 0.0
    %3387 = vmatpush1.msra.mxu0 0.0
    %3388 = vmatprep.subr.mxu0 0.0
    %3389 = vmatpush1.msra.mxu0 0.0
    %3390 = vmatprep.subr.mxu0 0.0
    %3391 = vmatpush1.msra.mxu0 0.0
    %3392 = vmatprep.subr.mxu0 0.0
    %3393 = vmatpush1.msra.mxu0 0.0
    %3394 = vmatprep.subr.mxu0 0.0
    %3395 = vmatpush1.msra.mxu0 0.0
    %3396 = vmatprep.subr.mxu0 0.0
    %3397 = vmatpush1.msra.mxu0 0.0
    %3398 = vmatprep.subr.mxu0 0.0
    %3399 = vmatpush1.msra.mxu0 0.0
    %3400 = vmatprep.subr.mxu0 0.0
    %3401 = vmatpush1.msra.mxu0 0.0
    %3402 = vmatprep.subr.mxu0 0.0
    %3403 = vmatpush1.msra.mxu0 %v3374
    %3404 = vmatprep.subr.mxu0 0.0
    %3405 = vmatpush1.msra.mxu0 %v3373
    %3406 = vmatprep.subr.mxu0 0.0
    %3407 = vmatpush1.msra.mxu0 %v3372
    %3408 = vmatprep.subr.mxu0 0.0
    %3409 = vmatpush1.msra.mxu0 %v3371
    %3410 = vmatprep.subr.mxu0 0.0
    %3411 = vmatpush2.msra.mxu0 0.0
    %3412 = vmatprep.subr.mxu0 0.0
    %3413 = vmatpush2.msra.mxu0 0.0
    %3414 = vmatprep.subr.mxu0 0.0
    %3415 = vmatpush2.msra.mxu0 0.0
    %3416 = vmatprep.subr.mxu0 0.0
    %3417 = vmatpush2.msra.mxu0 0.0
    %3418 = vmatprep.subr.mxu0 0.0
    %3419 = vmatpush2.msra.mxu0 0.0
    %3420 = vmatprep.subr.mxu0 0.0
    %3421 = vmatpush2.msra.mxu0 0.0
    %3422 = vmatprep.subr.mxu0 0.0
    %3423 = vmatpush2.msra.mxu0 0.0
    %3424 = vmatprep.subr.mxu0 0.0
    %3425 = vmatpush2.msra.mxu0 0.0
    %3426 = vmatprep.subr.mxu0 0.0
    %3427 = vmatpush2.msra.mxu0 0.0
    %3428 = vmatprep.subr.mxu0 0.0
    %3429 = vmatpush2.msra.mxu0 0.0
    %3430 = vmatprep.subr.mxu0 0.0
    %3431 = vmatpush2.msra.mxu0 0.0
    %3432 = vmatprep.subr.mxu0 0.0
    %3433 = vmatpush2.msra.mxu0 0.0
    %3434 = vmatprep.subr.mxu0 0.0
    %3435 = vmatpush2.msra.mxu0 0.0
    %3436 = vmatprep.subr.mxu0 0.0
    %3437 = vmatpush2.msra.mxu0 0.0
    %3438 = vmatprep.subr.mxu0 0.0
    %3439 = vmatpush2.msra.mxu0 0.0
    %3440 = vmatprep.subr.mxu0 0.0
    %3441 = vmatpush2.msra.mxu0 0.0
    %3442 = vmatprep.mubr.f32.mxu0 0.0
    %3443 = vmatmul.mubr.f32.gmra.mxu0 %v3376
    %v3444 = vpop.f32.mrf.mxu0
    %v3445 = vadd.f32 0.0, %v3444
    %v3446 = vpop.f32.mrf.mxu0
    %3447 = vdwg.mxu0
    %v3448 = vadd.f32 %v3365, %v3445
    %s3449 = scalar_lea.vmem [#allocation3], 4
    %v3450 = vld [vmem:[%s3449] ss:$49 sm:$0xf]
    %v3451 = vadd.f32 %v3450, %v3120
    %v3452 = vmax.f32 %v3451, 0.0
    %s3453 = scalar_lea.vmem [#allocation4], 128
    %v3454 = vld [vmem:[%s3453] sm:$0xff]
    %v3455 = vld [vmem:[%s3453 + $0x8] sm:$0xff]
    %v3456 = vld [vmem:[%s3453 + $0x10] sm:$0xff]
    %v3457 = vld [vmem:[%s3453 + $0x18] sm:$0xff]
    %v3459 = vsel %vm411, %v3452, 0
    %3461 = vmatprep.subr.mxu0 0.0
    %3462 = vmatpush1.msra.mxu0 0.0
    %3463 = vmatprep.subr.mxu0 0.0
    %3464 = vmatpush1.msra.mxu0 0.0
    %3465 = vmatprep.subr.mxu0 0.0
    %3466 = vmatpush1.msra.mxu0 0.0
    %3467 = vmatprep.subr.mxu0 0.0
    %3468 = vmatpush1.msra.mxu0 0.0
    %3469 = vmatprep.subr.mxu0 0.0
    %3470 = vmatpush1.msra.mxu0 0.0
    %3471 = vmatprep.subr.mxu0 0.0
    %3472 = vmatpush1.msra.mxu0 0.0
    %3473 = vmatprep.subr.mxu0 0.0
    %3474 = vmatpush1.msra.mxu0 0.0
    %3475 = vmatprep.subr.mxu0 0.0
    %3476 = vmatpush1.msra.mxu0 0.0
    %3477 = vmatprep.subr.mxu0 0.0
    %3478 = vmatpush1.msra.mxu0 0.0
    %3479 = vmatprep.subr.mxu0 0.0
    %3480 = vmatpush1.msra.mxu0 0.0
    %3481 = vmatprep.subr.mxu0 0.0
    %3482 = vmatpush1.msra.mxu0 0.0
    %3483 = vmatprep.subr.mxu0 0.0
    %3484 = vmatpush1.msra.mxu0 0.0
    %3485 = vmatprep.subr.mxu0 0.0
    %3486 = vmatpush1.msra.mxu0 %v3457
    %3487 = vmatprep.subr.mxu0 0.0
    %3488 = vmatpush1.msra.mxu0 %v3456
    %3489 = vmatprep.subr.mxu0 0.0
    %3490 = vmatpush1.msra.mxu0 %v3455
    %3491 = vmatprep.subr.mxu0 0.0
    %3492 = vmatpush1.msra.mxu0 %v3454
    %3493 = vmatprep.subr.mxu0 0.0
    %3494 = vmatpush2.msra.mxu0 0.0
    %3495 = vmatprep.subr.mxu0 0.0
    %3496 = vmatpush2.msra.mxu0 0.0
    %3497 = vmatprep.subr.mxu0 0.0
    %3498 = vmatpush2.msra.mxu0 0.0
    %3499 = vmatprep.subr.mxu0 0.0
    %3500 = vmatpush2.msra.mxu0 0.0
    %3501 = vmatprep.subr.mxu0 0.0
    %3502 = vmatpush2.msra.mxu0 0.0
    %3503 = vmatprep.subr.mxu0 0.0
    %3504 = vmatpush2.msra.mxu0 0.0
    %3505 = vmatprep.subr.mxu0 0.0
    %3506 = vmatpush2.msra.mxu0 0.0
    %3507 = vmatprep.subr.mxu0 0.0
    %3508 = vmatpush2.msra.mxu0 0.0
    %3509 = vmatprep.subr.mxu0 0.0
    %3510 = vmatpush2.msra.mxu0 0.0
    %3511 = vmatprep.subr.mxu0 0.0
    %3512 = vmatpush2.msra.mxu0 0.0
    %3513 = vmatprep.subr.mxu0 0.0
    %3514 = vmatpush2.msra.mxu0 0.0
    %3515 = vmatprep.subr.mxu0 0.0
    %3516 = vmatpush2.msra.mxu0 0.0
    %3517 = vmatprep.subr.mxu0 0.0
    %3518 = vmatpush2.msra.mxu0 0.0
    %3519 = vmatprep.subr.mxu0 0.0
    %3520 = vmatpush2.msra.mxu0 0.0
    %3521 = vmatprep.subr.mxu0 0.0
    %3522 = vmatpush2.msra.mxu0 0.0
    %3523 = vmatprep.subr.mxu0 0.0
    %3524 = vmatpush2.msra.mxu0 0.0
    %3525 = vmatprep.mubr.f32.mxu0 0.0
    %3526 = vmatmul.mubr.f32.gmra.mxu0 %v3459
    %v3527 = vpop.f32.mrf.mxu0
    %v3528 = vadd.f32 0.0, %v3527
    %v3529 = vpop.f32.mrf.mxu0
    %3530 = vdwg.mxu0
    %v3531 = vadd.f32 %v3448, %v3528
    %s3532 = scalar_lea.vmem [#allocation3], 7
    %v3533 = vld [vmem:[%s3532] ss:$49 sm:$0xf]
    %v3534 = vadd.f32 %v3533, %v3120
    %v3535 = vmax.f32 %v3534, 0.0
    %s3536 = scalar_lea.vmem [#allocation4], 160
    %v3537 = vld [vmem:[%s3536] sm:$0xff]
    %v3538 = vld [vmem:[%s3536 + $0x8] sm:$0xff]
    %v3539 = vld [vmem:[%s3536 + $0x10] sm:$0xff]
    %v3540 = vld [vmem:[%s3536 + $0x18] sm:$0xff]
    %v3542 = vsel %vm411, %v3535, 0
    %3544 = vmatprep.subr.mxu0 0.0
    %3545 = vmatpush1.msra.mxu0 0.0
    %3546 = vmatprep.subr.mxu0 0.0
    %3547 = vmatpush1.msra.mxu0 0.0
    %3548 = vmatprep.subr.mxu0 0.0
    %3549 = vmatpush1.msra.mxu0 0.0
    %3550 = vmatprep.subr.mxu0 0.0
    %3551 = vmatpush1.msra.mxu0 0.0
    %3552 = vmatprep.subr.mxu0 0.0
    %3553 = vmatpush1.msra.mxu0 0.0
    %3554 = vmatprep.subr.mxu0 0.0
    %3555 = vmatpush1.msra.mxu0 0.0
    %3556 = vmatprep.subr.mxu0 0.0
    %3557 = vmatpush1.msra.mxu0 0.0
    %3558 = vmatprep.subr.mxu0 0.0
    %3559 = vmatpush1.msra.mxu0 0.0
    %3560 = vmatprep.subr.mxu0 0.0
    %3561 = vmatpush1.msra.mxu0 0.0
    %3562 = vmatprep.subr.mxu0 0.0
    %3563 = vmatpush1.msra.mxu0 0.0
    %3564 = vmatprep.subr.mxu0 0.0
    %3565 = vmatpush1.msra.mxu0 0.0
    %3566 = vmatprep.subr.mxu0 0.0
    %3567 = vmatpush1.msra.mxu0 0.0
    %3568 = vmatprep.subr.mxu0 0.0
    %3569 = vmatpush1.msra.mxu0 %v3540
    %3570 = vmatprep.subr.mxu0 0.0
    %3571 = vmatpush1.msra.mxu0 %v3539
    %3572 = vmatprep.subr.mxu0 0.0
    %3573 = vmatpush1.msra.mxu0 %v3538
    %3574 = vmatprep.subr.mxu0 0.0
    %3575 = vmatpush1.msra.mxu0 %v3537
    %3576 = vmatprep.subr.mxu0 0.0
    %3577 = vmatpush2.msra.mxu0 0.0
    %3578 = vmatprep.subr.mxu0 0.0
    %3579 = vmatpush2.msra.mxu0 0.0
    %3580 = vmatprep.subr.mxu0 0.0
    %3581 = vmatpush2.msra.mxu0 0.0
    %3582 = vmatprep.subr.mxu0 0.0
    %3583 = vmatpush2.msra.mxu0 0.0
    %3584 = vmatprep.subr.mxu0 0.0
    %3585 = vmatpush2.msra.mxu0 0.0
    %3586 = vmatprep.subr.mxu0 0.0
    %3587 = vmatpush2.msra.mxu0 0.0
    %3588 = vmatprep.subr.mxu0 0.0
    %3589 = vmatpush2.msra.mxu0 0.0
    %3590 = vmatprep.subr.mxu0 0.0
    %3591 = vmatpush2.msra.mxu0 0.0
    %3592 = vmatprep.subr.mxu0 0.0
    %3593 = vmatpush2.msra.mxu0 0.0
    %3594 = vmatprep.subr.mxu0 0.0
    %3595 = vmatpush2.msra.mxu0 0.0
    %3596 = vmatprep.subr.mxu0 0.0
    %3597 = vmatpush2.msra.mxu0 0.0
    %3598 = vmatprep.subr.mxu0 0.0
    %3599 = vmatpush2.msra.mxu0 0.0
    %3600 = vmatprep.subr.mxu0 0.0
    %3601 = vmatpush2.msra.mxu0 0.0
    %3602 = vmatprep.subr.mxu0 0.0
    %3603 = vmatpush2.msra.mxu0 0.0
    %3604 = vmatprep.subr.mxu0 0.0
    %3605 = vmatpush2.msra.mxu0 0.0
    %3606 = vmatprep.subr.mxu0 0.0
    %3607 = vmatpush2.msra.mxu0 0.0
    %3608 = vmatprep.mubr.f32.mxu0 0.0
    %3609 = vmatmul.mubr.f32.gmra.mxu0 %v3542
    %v3610 = vpop.f32.mrf.mxu0
    %v3611 = vadd.f32 0.0, %v3610
    %v3612 = vpop.f32.mrf.mxu0
    %3613 = vdwg.mxu0
    %v3614 = vadd.f32 %v3531, %v3611
    %s3615 = scalar_lea.vmem [#allocation3], 8
    %v3616 = vld [vmem:[%s3615] ss:$49 sm:$0xf]
    %v3617 = vadd.f32 %v3616, %v3120
    %v3618 = vmax.f32 %v3617, 0.0
    %s3619 = scalar_lea.vmem [#allocation4], 192
    %v3620 = vld [vmem:[%s3619] sm:$0xff]
    %v3621 = vld [vmem:[%s3619 + $0x8] sm:$0xff]
    %v3622 = vld [vmem:[%s3619 + $0x10] sm:$0xff]
    %v3623 = vld [vmem:[%s3619 + $0x18] sm:$0xff]
    %v3625 = vsel %vm411, %v3618, 0
    %3627 = vmatprep.subr.mxu0 0.0
    %3628 = vmatpush1.msra.mxu0 0.0
    %3629 = vmatprep.subr.mxu0 0.0
    %3630 = vmatpush1.msra.mxu0 0.0
    %3631 = vmatprep.subr.mxu0 0.0
    %3632 = vmatpush1.msra.mxu0 0.0
    %3633 = vmatprep.subr.mxu0 0.0
    %3634 = vmatpush1.msra.mxu0 0.0
    %3635 = vmatprep.subr.mxu0 0.0
    %3636 = vmatpush1.msra.mxu0 0.0
    %3637 = vmatprep.subr.mxu0 0.0
    %3638 = vmatpush1.msra.mxu0 0.0
    %3639 = vmatprep.subr.mxu0 0.0
    %3640 = vmatpush1.msra.mxu0 0.0
    %3641 = vmatprep.subr.mxu0 0.0
    %3642 = vmatpush1.msra.mxu0 0.0
    %3643 = vmatprep.subr.mxu0 0.0
    %3644 = vmatpush1.msra.mxu0 0.0
    %3645 = vmatprep.subr.mxu0 0.0
    %3646 = vmatpush1.msra.mxu0 0.0
    %3647 = vmatprep.subr.mxu0 0.0
    %3648 = vmatpush1.msra.mxu0 0.0
    %3649 = vmatprep.subr.mxu0 0.0
    %3650 = vmatpush1.msra.mxu0 0.0
    %3651 = vmatprep.subr.mxu0 0.0
    %3652 = vmatpush1.msra.mxu0 %v3623
    %3653 = vmatprep.subr.mxu0 0.0
    %3654 = vmatpush1.msra.mxu0 %v3622
    %3655 = vmatprep.subr.mxu0 0.0
    %3656 = vmatpush1.msra.mxu0 %v3621
    %3657 = vmatprep.subr.mxu0 0.0
    %3658 = vmatpush1.msra.mxu0 %v3620
    %3659 = vmatprep.subr.mxu0 0.0
    %3660 = vmatpush2.msra.mxu0 0.0
    %3661 = vmatprep.subr.mxu0 0.0
    %3662 = vmatpush2.msra.mxu0 0.0
    %3663 = vmatprep.subr.mxu0 0.0
    %3664 = vmatpush2.msra.mxu0 0.0
    %3665 = vmatprep.subr.mxu0 0.0
    %3666 = vmatpush2.msra.mxu0 0.0
    %3667 = vmatprep.subr.mxu0 0.0
    %3668 = vmatpush2.msra.mxu0 0.0
    %3669 = vmatprep.subr.mxu0 0.0
    %3670 = vmatpush2.msra.mxu0 0.0
    %3671 = vmatprep.subr.mxu0 0.0
    %3672 = vmatpush2.msra.mxu0 0.0
    %3673 = vmatprep.subr.mxu0 0.0
    %3674 = vmatpush2.msra.mxu0 0.0
    %3675 = vmatprep.subr.mxu0 0.0
    %3676 = vmatpush2.msra.mxu0 0.0
    %3677 = vmatprep.subr.mxu0 0.0
    %3678 = vmatpush2.msra.mxu0 0.0
    %3679 = vmatprep.subr.mxu0 0.0
    %3680 = vmatpush2.msra.mxu0 0.0
    %3681 = vmatprep.subr.mxu0 0.0
    %3682 = vmatpush2.msra.mxu0 0.0
    %3683 = vmatprep.subr.mxu0 0.0
    %3684 = vmatpush2.msra.mxu0 0.0
    %3685 = vmatprep.subr.mxu0 0.0
    %3686 = vmatpush2.msra.mxu0 0.0
    %3687 = vmatprep.subr.mxu0 0.0
    %3688 = vmatpush2.msra.mxu0 0.0
    %3689 = vmatprep.subr.mxu0 0.0
    %3690 = vmatpush2.msra.mxu0 0.0
    %3691 = vmatprep.mubr.f32.mxu0 0.0
    %3692 = vmatmul.mubr.f32.gmra.mxu0 %v3625
    %v3693 = vpop.f32.mrf.mxu0
    %v3694 = vadd.f32 0.0, %v3693
    %v3695 = vpop.f32.mrf.mxu0
    %3696 = vdwg.mxu0
    %v3697 = vadd.f32 %v3614, %v3694
    %s3698 = scalar_lea.vmem [#allocation3], 9
    %v3699 = vld [vmem:[%s3698] ss:$49 sm:$0xf]
    %v3700 = vadd.f32 %v3699, %v3120
    %v3701 = vmax.f32 %v3700, 0.0
    %s3702 = scalar_lea.vmem [#allocation4], 224
    %v3703 = vld [vmem:[%s3702] sm:$0xff]
    %v3704 = vld [vmem:[%s3702 + $0x8] sm:$0xff]
    %v3705 = vld [vmem:[%s3702 + $0x10] sm:$0xff]
    %v3706 = vld [vmem:[%s3702 + $0x18] sm:$0xff]
    %v3708 = vsel %vm411, %v3701, 0
    %3710 = vmatprep.subr.mxu0 0.0
    %3711 = vmatpush1.msra.mxu0 0.0
    %3712 = vmatprep.subr.mxu0 0.0
    %3713 = vmatpush1.msra.mxu0 0.0
    %3714 = vmatprep.subr.mxu0 0.0
    %3715 = vmatpush1.msra.mxu0 0.0
    %3716 = vmatprep.subr.mxu0 0.0
    %3717 = vmatpush1.msra.mxu0 0.0
    %3718 = vmatprep.subr.mxu0 0.0
    %3719 = vmatpush1.msra.mxu0 0.0
    %3720 = vmatprep.subr.mxu0 0.0
    %3721 = vmatpush1.msra.mxu0 0.0
    %3722 = vmatprep.subr.mxu0 0.0
    %3723 = vmatpush1.msra.mxu0 0.0
    %3724 = vmatprep.subr.mxu0 0.0
    %3725 = vmatpush1.msra.mxu0 0.0
    %3726 = vmatprep.subr.mxu0 0.0
    %3727 = vmatpush1.msra.mxu0 0.0
    %3728 = vmatprep.subr.mxu0 0.0
    %3729 = vmatpush1.msra.mxu0 0.0
    %3730 = vmatprep.subr.mxu0 0.0
    %3731 = vmatpush1.msra.mxu0 0.0
    %3732 = vmatprep.subr.mxu0 0.0
    %3733 = vmatpush1.msra.mxu0 0.0
    %3734 = vmatprep.subr.mxu0 0.0
    %3735 = vmatpush1.msra.mxu0 %v3706
    %3736 = vmatprep.subr.mxu0 0.0
    %3737 = vmatpush1.msra.mxu0 %v3705
    %3738 = vmatprep.subr.mxu0 0.0
    %3739 = vmatpush1.msra.mxu0 %v3704
    %3740 = vmatprep.subr.mxu0 0.0
    %3741 = vmatpush1.msra.mxu0 %v3703
    %3742 = vmatprep.subr.mxu0 0.0
    %3743 = vmatpush2.msra.mxu0 0.0
    %3744 = vmatprep.subr.mxu0 0.0
    %3745 = vmatpush2.msra.mxu0 0.0
    %3746 = vmatprep.subr.mxu0 0.0
    %3747 = vmatpush2.msra.mxu0 0.0
    %3748 = vmatprep.subr.mxu0 0.0
    %3749 = vmatpush2.msra.mxu0 0.0
    %3750 = vmatprep.subr.mxu0 0.0
    %3751 = vmatpush2.msra.mxu0 0.0
    %3752 = vmatprep.subr.mxu0 0.0
    %3753 = vmatpush2.msra.mxu0 0.0
    %3754 = vmatprep.subr.mxu0 0.0
    %3755 = vmatpush2.msra.mxu0 0.0
    %3756 = vmatprep.subr.mxu0 0.0
    %3757 = vmatpush2.msra.mxu0 0.0
    %3758 = vmatprep.subr.mxu0 0.0
    %3759 = vmatpush2.msra.mxu0 0.0
    %3760 = vmatprep.subr.mxu0 0.0
    %3761 = vmatpush2.msra.mxu0 0.0
    %3762 = vmatprep.subr.mxu0 0.0
    %3763 = vmatpush2.msra.mxu0 0.0
    %3764 = vmatprep.subr.mxu0 0.0
    %3765 = vmatpush2.msra.mxu0 0.0
    %3766 = vmatprep.subr.mxu0 0.0
    %3767 = vmatpush2.msra.mxu0 0.0
    %3768 = vmatprep.subr.mxu0 0.0
    %3769 = vmatpush2.msra.mxu0 0.0
    %3770 = vmatprep.subr.mxu0 0.0
    %3771 = vmatpush2.msra.mxu0 0.0
    %3772 = vmatprep.subr.mxu0 0.0
    %3773 = vmatpush2.msra.mxu0 0.0
    %3774 = vmatprep.mubr.f32.mxu0 0.0
    %3775 = vmatmul.mubr.f32.gmra.mxu0 %v3708
    %v3776 = vpop.f32.mrf.mxu0
    %v3777 = vadd.f32 0.0, %v3776
    %v3778 = vpop.f32.mrf.mxu0
    %3779 = vdwg.mxu0
    %v3780 = vadd.f32 %v3697, %v3777
    %s3781 = scalar_lea.vmem [#allocation3], 10
    %v3782 = vld [vmem:[%s3781] ss:$49 sm:$0xf]
    %v3783 = vadd.f32 %v3782, %v3120
    %v3784 = vmax.f32 %v3783, 0.0
    %s3785 = scalar_lea.vmem [#allocation4], 256
    %v3786 = vld [vmem:[%s3785] sm:$0xff]
    %v3787 = vld [vmem:[%s3785 + $0x8] sm:$0xff]
    %v3788 = vld [vmem:[%s3785 + $0x10] sm:$0xff]
    %v3789 = vld [vmem:[%s3785 + $0x18] sm:$0xff]
    %v3791 = vsel %vm411, %v3784, 0
    %3793 = vmatprep.subr.mxu0 0.0
    %3794 = vmatpush1.msra.mxu0 0.0
    %3795 = vmatprep.subr.mxu0 0.0
    %3796 = vmatpush1.msra.mxu0 0.0
    %3797 = vmatprep.subr.mxu0 0.0
    %3798 = vmatpush1.msra.mxu0 0.0
    %3799 = vmatprep.subr.mxu0 0.0
    %3800 = vmatpush1.msra.mxu0 0.0
    %3801 = vmatprep.subr.mxu0 0.0
    %3802 = vmatpush1.msra.mxu0 0.0
    %3803 = vmatprep.subr.mxu0 0.0
    %3804 = vmatpush1.msra.mxu0 0.0
    %3805 = vmatprep.subr.mxu0 0.0
    %3806 = vmatpush1.msra.mxu0 0.0
    %3807 = vmatprep.subr.mxu0 0.0
    %3808 = vmatpush1.msra.mxu0 0.0
    %3809 = vmatprep.subr.mxu0 0.0
    %3810 = vmatpush1.msra.mxu0 0.0
    %3811 = vmatprep.subr.mxu0 0.0
    %3812 = vmatpush1.msra.mxu0 0.0
    %3813 = vmatprep.subr.mxu0 0.0
    %3814 = vmatpush1.msra.mxu0 0.0
    %3815 = vmatprep.subr.mxu0 0.0
    %3816 = vmatpush1.msra.mxu0 0.0
    %3817 = vmatprep.subr.mxu0 0.0
    %3818 = vmatpush1.msra.mxu0 %v3789
    %3819 = vmatprep.subr.mxu0 0.0
    %3820 = vmatpush1.msra.mxu0 %v3788
    %3821 = vmatprep.subr.mxu0 0.0
    %3822 = vmatpush1.msra.mxu0 %v3787
    %3823 = vmatprep.subr.mxu0 0.0
    %3824 = vmatpush1.msra.mxu0 %v3786
    %3825 = vmatprep.subr.mxu0 0.0
    %3826 = vmatpush2.msra.mxu0 0.0
    %3827 = vmatprep.subr.mxu0 0.0
    %3828 = vmatpush2.msra.mxu0 0.0
    %3829 = vmatprep.subr.mxu0 0.0
    %3830 = vmatpush2.msra.mxu0 0.0
    %3831 = vmatprep.subr.mxu0 0.0
    %3832 = vmatpush2.msra.mxu0 0.0
    %3833 = vmatprep.subr.mxu0 0.0
    %3834 = vmatpush2.msra.mxu0 0.0
    %3835 = vmatprep.subr.mxu0 0.0
    %3836 = vmatpush2.msra.mxu0 0.0
    %3837 = vmatprep.subr.mxu0 0.0
    %3838 = vmatpush2.msra.mxu0 0.0
    %3839 = vmatprep.subr.mxu0 0.0
    %3840 = vmatpush2.msra.mxu0 0.0
    %3841 = vmatprep.subr.mxu0 0.0
    %3842 = vmatpush2.msra.mxu0 0.0
    %3843 = vmatprep.subr.mxu0 0.0
    %3844 = vmatpush2.msra.mxu0 0.0
    %3845 = vmatprep.subr.mxu0 0.0
    %3846 = vmatpush2.msra.mxu0 0.0
    %3847 = vmatprep.subr.mxu0 0.0
    %3848 = vmatpush2.msra.mxu0 0.0
    %3849 = vmatprep.subr.mxu0 0.0
    %3850 = vmatpush2.msra.mxu0 0.0
    %3851 = vmatprep.subr.mxu0 0.0
    %3852 = vmatpush2.msra.mxu0 0.0
    %3853 = vmatprep.subr.mxu0 0.0
    %3854 = vmatpush2.msra.mxu0 0.0
    %3855 = vmatprep.subr.mxu0 0.0
    %3856 = vmatpush2.msra.mxu0 0.0
    %3857 = vmatprep.mubr.f32.mxu0 0.0
    %3858 = vmatmul.mubr.f32.gmra.mxu0 %v3791
    %v3859 = vpop.f32.mrf.mxu0
    %v3860 = vadd.f32 0.0, %v3859
    %v3861 = vpop.f32.mrf.mxu0
    %3862 = vdwg.mxu0
    %v3863 = vadd.f32 %v3780, %v3860
    %s3864 = scalar_lea.vmem [#allocation3], 11
    %v3865 = vld [vmem:[%s3864] ss:$49 sm:$0xf]
    %v3866 = vadd.f32 %v3865, %v3120
    %v3867 = vmax.f32 %v3866, 0.0
    %s3868 = scalar_lea.vmem [#allocation4], 288
    %v3869 = vld [vmem:[%s3868] sm:$0xff]
    %v3870 = vld [vmem:[%s3868 + $0x8] sm:$0xff]
    %v3871 = vld [vmem:[%s3868 + $0x10] sm:$0xff]
    %v3872 = vld [vmem:[%s3868 + $0x18] sm:$0xff]
    %v3874 = vsel %vm411, %v3867, 0
    %3876 = vmatprep.subr.mxu0 0.0
    %3877 = vmatpush1.msra.mxu0 0.0
    %3878 = vmatprep.subr.mxu0 0.0
    %3879 = vmatpush1.msra.mxu0 0.0
    %3880 = vmatprep.subr.mxu0 0.0
    %3881 = vmatpush1.msra.mxu0 0.0
    %3882 = vmatprep.subr.mxu0 0.0
    %3883 = vmatpush1.msra.mxu0 0.0
    %3884 = vmatprep.subr.mxu0 0.0
    %3885 = vmatpush1.msra.mxu0 0.0
    %3886 = vmatprep.subr.mxu0 0.0
    %3887 = vmatpush1.msra.mxu0 0.0
    %3888 = vmatprep.subr.mxu0 0.0
    %3889 = vmatpush1.msra.mxu0 0.0
    %3890 = vmatprep.subr.mxu0 0.0
    %3891 = vmatpush1.msra.mxu0 0.0
    %3892 = vmatprep.subr.mxu0 0.0
    %3893 = vmatpush1.msra.mxu0 0.0
    %3894 = vmatprep.subr.mxu0 0.0
    %3895 = vmatpush1.msra.mxu0 0.0
    %3896 = vmatprep.subr.mxu0 0.0
    %3897 = vmatpush1.msra.mxu0 0.0
    %3898 = vmatprep.subr.mxu0 0.0
    %3899 = vmatpush1.msra.mxu0 0.0
    %3900 = vmatprep.subr.mxu0 0.0
    %3901 = vmatpush1.msra.mxu0 %v3872
    %3902 = vmatprep.subr.mxu0 0.0
    %3903 = vmatpush1.msra.mxu0 %v3871
    %3904 = vmatprep.subr.mxu0 0.0
    %3905 = vmatpush1.msra.mxu0 %v3870
    %3906 = vmatprep.subr.mxu0 0.0
    %3907 = vmatpush1.msra.mxu0 %v3869
    %3908 = vmatprep.subr.mxu0 0.0
    %3909 = vmatpush2.msra.mxu0 0.0
    %3910 = vmatprep.subr.mxu0 0.0
    %3911 = vmatpush2.msra.mxu0 0.0
    %3912 = vmatprep.subr.mxu0 0.0
    %3913 = vmatpush2.msra.mxu0 0.0
    %3914 = vmatprep.subr.mxu0 0.0
    %3915 = vmatpush2.msra.mxu0 0.0
    %3916 = vmatprep.subr.mxu0 0.0
    %3917 = vmatpush2.msra.mxu0 0.0
    %3918 = vmatprep.subr.mxu0 0.0
    %3919 = vmatpush2.msra.mxu0 0.0
    %3920 = vmatprep.subr.mxu0 0.0
    %3921 = vmatpush2.msra.mxu0 0.0
    %3922 = vmatprep.subr.mxu0 0.0
    %3923 = vmatpush2.msra.mxu0 0.0
    %3924 = vmatprep.subr.mxu0 0.0
    %3925 = vmatpush2.msra.mxu0 0.0
    %3926 = vmatprep.subr.mxu0 0.0
    %3927 = vmatpush2.msra.mxu0 0.0
    %3928 = vmatprep.subr.mxu0 0.0
    %3929 = vmatpush2.msra.mxu0 0.0
    %3930 = vmatprep.subr.mxu0 0.0
    %3931 = vmatpush2.msra.mxu0 0.0
    %3932 = vmatprep.subr.mxu0 0.0
    %3933 = vmatpush2.msra.mxu0 0.0
    %3934 = vmatprep.subr.mxu0 0.0
    %3935 = vmatpush2.msra.mxu0 0.0
    %3936 = vmatprep.subr.mxu0 0.0
    %3937 = vmatpush2.msra.mxu0 0.0
    %3938 = vmatprep.subr.mxu0 0.0
    %3939 = vmatpush2.msra.mxu0 0.0
    %3940 = vmatprep.mubr.f32.mxu0 0.0
    %3941 = vmatmul.mubr.f32.gmra.mxu0 %v3874
    %v3942 = vpop.f32.mrf.mxu0
    %v3943 = vadd.f32 0.0, %v3942
    %v3944 = vpop.f32.mrf.mxu0
    %3945 = vdwg.mxu0
    %v3946 = vadd.f32 %v3863, %v3943
    %s3947 = scalar_lea.vmem [#allocation3], 14
    %v3948 = vld [vmem:[%s3947] ss:$49 sm:$0xf]
    %v3949 = vadd.f32 %v3948, %v3120
    %v3950 = vmax.f32 %v3949, 0.0
    %s3951 = scalar_lea.vmem [#allocation4], 320
    %v3952 = vld [vmem:[%s3951] sm:$0xff]
    %v3953 = vld [vmem:[%s3951 + $0x8] sm:$0xff]
    %v3954 = vld [vmem:[%s3951 + $0x10] sm:$0xff]
    %v3955 = vld [vmem:[%s3951 + $0x18] sm:$0xff]
    %v3957 = vsel %vm411, %v3950, 0
    %3959 = vmatprep.subr.mxu0 0.0
    %3960 = vmatpush1.msra.mxu0 0.0
    %3961 = vmatprep.subr.mxu0 0.0
    %3962 = vmatpush1.msra.mxu0 0.0
    %3963 = vmatprep.subr.mxu0 0.0
    %3964 = vmatpush1.msra.mxu0 0.0
    %3965 = vmatprep.subr.mxu0 0.0
    %3966 = vmatpush1.msra.mxu0 0.0
    %3967 = vmatprep.subr.mxu0 0.0
    %3968 = vmatpush1.msra.mxu0 0.0
    %3969 = vmatprep.subr.mxu0 0.0
    %3970 = vmatpush1.msra.mxu0 0.0
    %3971 = vmatprep.subr.mxu0 0.0
    %3972 = vmatpush1.msra.mxu0 0.0
    %3973 = vmatprep.subr.mxu0 0.0
    %3974 = vmatpush1.msra.mxu0 0.0
    %3975 = vmatprep.subr.mxu0 0.0
    %3976 = vmatpush1.msra.mxu0 0.0
    %3977 = vmatprep.subr.mxu0 0.0
    %3978 = vmatpush1.msra.mxu0 0.0
    %3979 = vmatprep.subr.mxu0 0.0
    %3980 = vmatpush1.msra.mxu0 0.0
    %3981 = vmatprep.subr.mxu0 0.0
    %3982 = vmatpush1.msra.mxu0 0.0
    %3983 = vmatprep.subr.mxu0 0.0
    %3984 = vmatpush1.msra.mxu0 %v3955
    %3985 = vmatprep.subr.mxu0 0.0
    %3986 = vmatpush1.msra.mxu0 %v3954
    %3987 = vmatprep.subr.mxu0 0.0
    %3988 = vmatpush1.msra.mxu0 %v3953
    %3989 = vmatprep.subr.mxu0 0.0
    %3990 = vmatpush1.msra.mxu0 %v3952
    %3991 = vmatprep.subr.mxu0 0.0
    %3992 = vmatpush2.msra.mxu0 0.0
    %3993 = vmatprep.subr.mxu0 0.0
    %3994 = vmatpush2.msra.mxu0 0.0
    %3995 = vmatprep.subr.mxu0 0.0
    %3996 = vmatpush2.msra.mxu0 0.0
    %3997 = vmatprep.subr.mxu0 0.0
    %3998 = vmatpush2.msra.mxu0 0.0
    %3999 = vmatprep.subr.mxu0 0.0
    %4000 = vmatpush2.msra.mxu0 0.0
    %4001 = vmatprep.subr.mxu0 0.0
    %4002 = vmatpush2.msra.mxu0 0.0
    %4003 = vmatprep.subr.mxu0 0.0
    %4004 = vmatpush2.msra.mxu0 0.0
    %4005 = vmatprep.subr.mxu0 0.0
    %4006 = vmatpush2.msra.mxu0 0.0
    %4007 = vmatprep.subr.mxu0 0.0
    %4008 = vmatpush2.msra.mxu0 0.0
    %4009 = vmatprep.subr.mxu0 0.0
    %4010 = vmatpush2.msra.mxu0 0.0
    %4011 = vmatprep.subr.mxu0 0.0
    %4012 = vmatpush2.msra.mxu0 0.0
    %4013 = vmatprep.subr.mxu0 0.0
    %4014 = vmatpush2.msra.mxu0 0.0
    %4015 = vmatprep.subr.mxu0 0.0
    %4016 = vmatpush2.msra.mxu0 0.0
    %4017 = vmatprep.subr.mxu0 0.0
    %4018 = vmatpush2.msra.mxu0 0.0
    %4019 = vmatprep.subr.mxu0 0.0
    %4020 = vmatpush2.msra.mxu0 0.0
    %4021 = vmatprep.subr.mxu0 0.0
    %4022 = vmatpush2.msra.mxu0 0.0
    %4023 = vmatprep.mubr.f32.mxu0 0.0
    %4024 = vmatmul.mubr.f32.gmra.mxu0 %v3957
    %v4025 = vpop.f32.mrf.mxu0
    %v4026 = vadd.f32 0.0, %v4025
    %v4027 = vpop.f32.mrf.mxu0
    %4028 = vdwg.mxu0
    %v4029 = vadd.f32 %v3946, %v4026
    %s4030 = scalar_lea.vmem [#allocation3], 15
    %v4031 = vld [vmem:[%s4030] ss:$49 sm:$0xf]
    %v4032 = vadd.f32 %v4031, %v3120
    %v4033 = vmax.f32 %v4032, 0.0
    %s4034 = scalar_lea.vmem [#allocation4], 352
    %v4035 = vld [vmem:[%s4034] sm:$0xff]
    %v4036 = vld [vmem:[%s4034 + $0x8] sm:$0xff]
    %v4037 = vld [vmem:[%s4034 + $0x10] sm:$0xff]
    %v4038 = vld [vmem:[%s4034 + $0x18] sm:$0xff]
    %v4040 = vsel %vm411, %v4033, 0
    %4042 = vmatprep.subr.mxu0 0.0
    %4043 = vmatpush1.msra.mxu0 0.0
    %4044 = vmatprep.subr.mxu0 0.0
    %4045 = vmatpush1.msra.mxu0 0.0
    %4046 = vmatprep.subr.mxu0 0.0
    %4047 = vmatpush1.msra.mxu0 0.0
    %4048 = vmatprep.subr.mxu0 0.0
    %4049 = vmatpush1.msra.mxu0 0.0
    %4050 = vmatprep.subr.mxu0 0.0
    %4051 = vmatpush1.msra.mxu0 0.0
    %4052 = vmatprep.subr.mxu0 0.0
    %4053 = vmatpush1.msra.mxu0 0.0
    %4054 = vmatprep.subr.mxu0 0.0
    %4055 = vmatpush1.msra.mxu0 0.0
    %4056 = vmatprep.subr.mxu0 0.0
    %4057 = vmatpush1.msra.mxu0 0.0
    %4058 = vmatprep.subr.mxu0 0.0
    %4059 = vmatpush1.msra.mxu0 0.0
    %4060 = vmatprep.subr.mxu0 0.0
    %4061 = vmatpush1.msra.mxu0 0.0
    %4062 = vmatprep.subr.mxu0 0.0
    %4063 = vmatpush1.msra.mxu0 0.0
    %4064 = vmatprep.subr.mxu0 0.0
    %4065 = vmatpush1.msra.mxu0 0.0
    %4066 = vmatprep.subr.mxu0 0.0
    %4067 = vmatpush1.msra.mxu0 %v4038
    %4068 = vmatprep.subr.mxu0 0.0
    %4069 = vmatpush1.msra.mxu0 %v4037
    %4070 = vmatprep.subr.mxu0 0.0
    %4071 = vmatpush1.msra.mxu0 %v4036
    %4072 = vmatprep.subr.mxu0 0.0
    %4073 = vmatpush1.msra.mxu0 %v4035
    %4074 = vmatprep.subr.mxu0 0.0
    %4075 = vmatpush2.msra.mxu0 0.0
    %4076 = vmatprep.subr.mxu0 0.0
    %4077 = vmatpush2.msra.mxu0 0.0
    %4078 = vmatprep.subr.mxu0 0.0
    %4079 = vmatpush2.msra.mxu0 0.0
    %4080 = vmatprep.subr.mxu0 0.0
    %4081 = vmatpush2.msra.mxu0 0.0
    %4082 = vmatprep.subr.mxu0 0.0
    %4083 = vmatpush2.msra.mxu0 0.0
    %4084 = vmatprep.subr.mxu0 0.0
    %4085 = vmatpush2.msra.mxu0 0.0
    %4086 = vmatprep.subr.mxu0 0.0
    %4087 = vmatpush2.msra.mxu0 0.0
    %4088 = vmatprep.subr.mxu0 0.0
    %4089 = vmatpush2.msra.mxu0 0.0
    %4090 = vmatprep.subr.mxu0 0.0
    %4091 = vmatpush2.msra.mxu0 0.0
    %4092 = vmatprep.subr.mxu0 0.0
    %4093 = vmatpush2.msra.mxu0 0.0
    %4094 = vmatprep.subr.mxu0 0.0
    %4095 = vmatpush2.msra.mxu0 0.0
    %4096 = vmatprep.subr.mxu0 0.0
    %4097 = vmatpush2.msra.mxu0 0.0
    %4098 = vmatprep.subr.mxu0 0.0
    %4099 = vmatpush2.msra.mxu0 0.0
    %4100 = vmatprep.subr.mxu0 0.0
    %4101 = vmatpush2.msra.mxu0 0.0
    %4102 = vmatprep.subr.mxu0 0.0
    %4103 = vmatpush2.msra.mxu0 0.0
    %4104 = vmatprep.subr.mxu0 0.0
    %4105 = vmatpush2.msra.mxu0 0.0
    %4106 = vmatprep.mubr.f32.mxu0 0.0
    %4107 = vmatmul.mubr.f32.gmra.mxu0 %v4040
    %v4108 = vpop.f32.mrf.mxu0
    %v4109 = vadd.f32 0.0, %v4108
    %v4110 = vpop.f32.mrf.mxu0
    %4111 = vdwg.mxu0
    %v4112 = vadd.f32 %v4029, %v4109
    %s4113 = scalar_lea.vmem [#allocation3], 16
    %v4114 = vld [vmem:[%s4113] ss:$49 sm:$0xf]
    %v4115 = vadd.f32 %v4114, %v3120
    %v4116 = vmax.f32 %v4115, 0.0
    %s4117 = scalar_lea.vmem [#allocation4], 384
    %v4118 = vld [vmem:[%s4117] sm:$0xff]
    %v4119 = vld [vmem:[%s4117 + $0x8] sm:$0xff]
    %v4120 = vld [vmem:[%s4117 + $0x10] sm:$0xff]
    %v4121 = vld [vmem:[%s4117 + $0x18] sm:$0xff]
    %v4123 = vsel %vm411, %v4116, 0
    %4125 = vmatprep.subr.mxu0 0.0
    %4126 = vmatpush1.msra.mxu0 0.0
    %4127 = vmatprep.subr.mxu0 0.0
    %4128 = vmatpush1.msra.mxu0 0.0
    %4129 = vmatprep.subr.mxu0 0.0
    %4130 = vmatpush1.msra.mxu0 0.0
    %4131 = vmatprep.subr.mxu0 0.0
    %4132 = vmatpush1.msra.mxu0 0.0
    %4133 = vmatprep.subr.mxu0 0.0
    %4134 = vmatpush1.msra.mxu0 0.0
    %4135 = vmatprep.subr.mxu0 0.0
    %4136 = vmatpush1.msra.mxu0 0.0
    %4137 = vmatprep.subr.mxu0 0.0
    %4138 = vmatpush1.msra.mxu0 0.0
    %4139 = vmatprep.subr.mxu0 0.0
    %4140 = vmatpush1.msra.mxu0 0.0
    %4141 = vmatprep.subr.mxu0 0.0
    %4142 = vmatpush1.msra.mxu0 0.0
    %4143 = vmatprep.subr.mxu0 0.0
    %4144 = vmatpush1.msra.mxu0 0.0
    %4145 = vmatprep.subr.mxu0 0.0
    %4146 = vmatpush1.msra.mxu0 0.0
    %4147 = vmatprep.subr.mxu0 0.0
    %4148 = vmatpush1.msra.mxu0 0.0
    %4149 = vmatprep.subr.mxu0 0.0
    %4150 = vmatpush1.msra.mxu0 %v4121
    %4151 = vmatprep.subr.mxu0 0.0
    %4152 = vmatpush1.msra.mxu0 %v4120
    %4153 = vmatprep.subr.mxu0 0.0
    %4154 = vmatpush1.msra.mxu0 %v4119
    %4155 = vmatprep.subr.mxu0 0.0
    %4156 = vmatpush1.msra.mxu0 %v4118
    %4157 = vmatprep.subr.mxu0 0.0
    %4158 = vmatpush2.msra.mxu0 0.0
    %4159 = vmatprep.subr.mxu0 0.0
    %4160 = vmatpush2.msra.mxu0 0.0
    %4161 = vmatprep.subr.mxu0 0.0
    %4162 = vmatpush2.msra.mxu0 0.0
    %4163 = vmatprep.subr.mxu0 0.0
    %4164 = vmatpush2.msra.mxu0 0.0
    %4165 = vmatprep.subr.mxu0 0.0
    %4166 = vmatpush2.msra.mxu0 0.0
    %4167 = vmatprep.subr.mxu0 0.0
    %4168 = vmatpush2.msra.mxu0 0.0
    %4169 = vmatprep.subr.mxu0 0.0
    %4170 = vmatpush2.msra.mxu0 0.0
    %4171 = vmatprep.subr.mxu0 0.0
    %4172 = vmatpush2.msra.mxu0 0.0
    %4173 = vmatprep.subr.mxu0 0.0
    %4174 = vmatpush2.msra.mxu0 0.0
    %4175 = vmatprep.subr.mxu0 0.0
    %4176 = vmatpush2.msra.mxu0 0.0
    %4177 = vmatprep.subr.mxu0 0.0
    %4178 = vmatpush2.msra.mxu0 0.0
    %4179 = vmatprep.subr.mxu0 0.0
    %4180 = vmatpush2.msra.mxu0 0.0
    %4181 = vmatprep.subr.mxu0 0.0
    %4182 = vmatpush2.msra.mxu0 0.0
    %4183 = vmatprep.subr.mxu0 0.0
    %4184 = vmatpush2.msra.mxu0 0.0
    %4185 = vmatprep.subr.mxu0 0.0
    %4186 = vmatpush2.msra.mxu0 0.0
    %4187 = vmatprep.subr.mxu0 0.0
    %4188 = vmatpush2.msra.mxu0 0.0
    %4189 = vmatprep.mubr.f32.mxu0 0.0
    %4190 = vmatmul.mubr.f32.gmra.mxu0 %v4123
    %v4191 = vpop.f32.mrf.mxu0
    %v4192 = vadd.f32 0.0, %v4191
    %v4193 = vpop.f32.mrf.mxu0
    %4194 = vdwg.mxu0
    %v4195 = vadd.f32 %v4112, %v4192
    %s4196 = scalar_lea.vmem [#allocation3], 17
    %v4197 = vld [vmem:[%s4196] ss:$49 sm:$0xf]
    %v4198 = vadd.f32 %v4197, %v3120
    %v4199 = vmax.f32 %v4198, 0.0
    %s4200 = scalar_lea.vmem [#allocation4], 416
    %v4201 = vld [vmem:[%s4200] sm:$0xff]
    %v4202 = vld [vmem:[%s4200 + $0x8] sm:$0xff]
    %v4203 = vld [vmem:[%s4200 + $0x10] sm:$0xff]
    %v4204 = vld [vmem:[%s4200 + $0x18] sm:$0xff]
    %v4206 = vsel %vm411, %v4199, 0
    %4208 = vmatprep.subr.mxu0 0.0
    %4209 = vmatpush1.msra.mxu0 0.0
    %4210 = vmatprep.subr.mxu0 0.0
    %4211 = vmatpush1.msra.mxu0 0.0
    %4212 = vmatprep.subr.mxu0 0.0
    %4213 = vmatpush1.msra.mxu0 0.0
    %4214 = vmatprep.subr.mxu0 0.0
    %4215 = vmatpush1.msra.mxu0 0.0
    %4216 = vmatprep.subr.mxu0 0.0
    %4217 = vmatpush1.msra.mxu0 0.0
    %4218 = vmatprep.subr.mxu0 0.0
    %4219 = vmatpush1.msra.mxu0 0.0
    %4220 = vmatprep.subr.mxu0 0.0
    %4221 = vmatpush1.msra.mxu0 0.0
    %4222 = vmatprep.subr.mxu0 0.0
    %4223 = vmatpush1.msra.mxu0 0.0
    %4224 = vmatprep.subr.mxu0 0.0
    %4225 = vmatpush1.msra.mxu0 0.0
    %4226 = vmatprep.subr.mxu0 0.0
    %4227 = vmatpush1.msra.mxu0 0.0
    %4228 = vmatprep.subr.mxu0 0.0
    %4229 = vmatpush1.msra.mxu0 0.0
    %4230 = vmatprep.subr.mxu0 0.0
    %4231 = vmatpush1.msra.mxu0 0.0
    %4232 = vmatprep.subr.mxu0 0.0
    %4233 = vmatpush1.msra.mxu0 %v4204
    %4234 = vmatprep.subr.mxu0 0.0
    %4235 = vmatpush1.msra.mxu0 %v4203
    %4236 = vmatprep.subr.mxu0 0.0
    %4237 = vmatpush1.msra.mxu0 %v4202
    %4238 = vmatprep.subr.mxu0 0.0
    %4239 = vmatpush1.msra.mxu0 %v4201
    %4240 = vmatprep.subr.mxu0 0.0
    %4241 = vmatpush2.msra.mxu0 0.0
    %4242 = vmatprep.subr.mxu0 0.0
    %4243 = vmatpush2.msra.mxu0 0.0
    %4244 = vmatprep.subr.mxu0 0.0
    %4245 = vmatpush2.msra.mxu0 0.0
    %4246 = vmatprep.subr.mxu0 0.0
    %4247 = vmatpush2.msra.mxu0 0.0
    %4248 = vmatprep.subr.mxu0 0.0
    %4249 = vmatpush2.msra.mxu0 0.0
    %4250 = vmatprep.subr.mxu0 0.0
    %4251 = vmatpush2.msra.mxu0 0.0
    %4252 = vmatprep.subr.mxu0 0.0
    %4253 = vmatpush2.msra.mxu0 0.0
    %4254 = vmatprep.subr.mxu0 0.0
    %4255 = vmatpush2.msra.mxu0 0.0
    %4256 = vmatprep.subr.mxu0 0.0
    %4257 = vmatpush2.msra.mxu0 0.0
    %4258 = vmatprep.subr.mxu0 0.0
    %4259 = vmatpush2.msra.mxu0 0.0
    %4260 = vmatprep.subr.mxu0 0.0
    %4261 = vmatpush2.msra.mxu0 0.0
    %4262 = vmatprep.subr.mxu0 0.0
    %4263 = vmatpush2.msra.mxu0 0.0
    %4264 = vmatprep.subr.mxu0 0.0
    %4265 = vmatpush2.msra.mxu0 0.0
    %4266 = vmatprep.subr.mxu0 0.0
    %4267 = vmatpush2.msra.mxu0 0.0
    %4268 = vmatprep.subr.mxu0 0.0
    %4269 = vmatpush2.msra.mxu0 0.0
    %4270 = vmatprep.subr.mxu0 0.0
    %4271 = vmatpush2.msra.mxu0 0.0
    %4272 = vmatprep.mubr.f32.mxu0 0.0
    %4273 = vmatmul.mubr.f32.gmra.mxu0 %v4206
    %v4274 = vpop.f32.mrf.mxu0
    %v4275 = vadd.f32 0.0, %v4274
    %v4276 = vpop.f32.mrf.mxu0
    %4277 = vdwg.mxu0
    %v4278 = vadd.f32 %v4195, %v4275
    %s4279 = scalar_lea.vmem [#allocation3], 18
    %v4280 = vld [vmem:[%s4279] ss:$49 sm:$0xf]
    %v4281 = vadd.f32 %v4280, %v3120
    %v4282 = vmax.f32 %v4281, 0.0
    %s4283 = scalar_lea.vmem [#allocation4], 448
    %v4284 = vld [vmem:[%s4283] sm:$0xff]
    %v4285 = vld [vmem:[%s4283 + $0x8] sm:$0xff]
    %v4286 = vld [vmem:[%s4283 + $0x10] sm:$0xff]
    %v4287 = vld [vmem:[%s4283 + $0x18] sm:$0xff]
    %v4289 = vsel %vm411, %v4282, 0
    %4291 = vmatprep.subr.mxu0 0.0
    %4292 = vmatpush1.msra.mxu0 0.0
    %4293 = vmatprep.subr.mxu0 0.0
    %4294 = vmatpush1.msra.mxu0 0.0
    %4295 = vmatprep.subr.mxu0 0.0
    %4296 = vmatpush1.msra.mxu0 0.0
    %4297 = vmatprep.subr.mxu0 0.0
    %4298 = vmatpush1.msra.mxu0 0.0
    %4299 = vmatprep.subr.mxu0 0.0
    %4300 = vmatpush1.msra.mxu0 0.0
    %4301 = vmatprep.subr.mxu0 0.0
    %4302 = vmatpush1.msra.mxu0 0.0
    %4303 = vmatprep.subr.mxu0 0.0
    %4304 = vmatpush1.msra.mxu0 0.0
    %4305 = vmatprep.subr.mxu0 0.0
    %4306 = vmatpush1.msra.mxu0 0.0
    %4307 = vmatprep.subr.mxu0 0.0
    %4308 = vmatpush1.msra.mxu0 0.0
    %4309 = vmatprep.subr.mxu0 0.0
    %4310 = vmatpush1.msra.mxu0 0.0
    %4311 = vmatprep.subr.mxu0 0.0
    %4312 = vmatpush1.msra.mxu0 0.0
    %4313 = vmatprep.subr.mxu0 0.0
    %4314 = vmatpush1.msra.mxu0 0.0
    %4315 = vmatprep.subr.mxu0 0.0
    %4316 = vmatpush1.msra.mxu0 %v4287
    %4317 = vmatprep.subr.mxu0 0.0
    %4318 = vmatpush1.msra.mxu0 %v4286
    %4319 = vmatprep.subr.mxu0 0.0
    %4320 = vmatpush1.msra.mxu0 %v4285
    %4321 = vmatprep.subr.mxu0 0.0
    %4322 = vmatpush1.msra.mxu0 %v4284
    %4323 = vmatprep.subr.mxu0 0.0
    %4324 = vmatpush2.msra.mxu0 0.0
    %4325 = vmatprep.subr.mxu0 0.0
    %4326 = vmatpush2.msra.mxu0 0.0
    %4327 = vmatprep.subr.mxu0 0.0
    %4328 = vmatpush2.msra.mxu0 0.0
    %4329 = vmatprep.subr.mxu0 0.0
    %4330 = vmatpush2.msra.mxu0 0.0
    %4331 = vmatprep.subr.mxu0 0.0
    %4332 = vmatpush2.msra.mxu0 0.0
    %4333 = vmatprep.subr.mxu0 0.0
    %4334 = vmatpush2.msra.mxu0 0.0
    %4335 = vmatprep.subr.mxu0 0.0
    %4336 = vmatpush2.msra.mxu0 0.0
    %4337 = vmatprep.subr.mxu0 0.0
    %4338 = vmatpush2.msra.mxu0 0.0
    %4339 = vmatprep.subr.mxu0 0.0
    %4340 = vmatpush2.msra.mxu0 0.0
    %4341 = vmatprep.subr.mxu0 0.0
    %4342 = vmatpush2.msra.mxu0 0.0
    %4343 = vmatprep.subr.mxu0 0.0
    %4344 = vmatpush2.msra.mxu0 0.0
    %4345 = vmatprep.subr.mxu0 0.0
    %4346 = vmatpush2.msra.mxu0 0.0
    %4347 = vmatprep.subr.mxu0 0.0
    %4348 = vmatpush2.msra.mxu0 0.0
    %4349 = vmatprep.subr.mxu0 0.0
    %4350 = vmatpush2.msra.mxu0 0.0
    %4351 = vmatprep.subr.mxu0 0.0
    %4352 = vmatpush2.msra.mxu0 0.0
    %4353 = vmatprep.subr.mxu0 0.0
    %4354 = vmatpush2.msra.mxu0 0.0
    %4355 = vmatprep.mubr.f32.mxu0 0.0
    %4356 = vmatmul.mubr.f32.gmra.mxu0 %v4289
    %v4357 = vpop.f32.mrf.mxu0
    %v4358 = vadd.f32 0.0, %v4357
    %v4359 = vpop.f32.mrf.mxu0
    %4360 = vdwg.mxu0
    %v4361 = vadd.f32 %v4278, %v4358
    %s4362 = scalar_lea.vmem [#allocation3], 21
    %v4363 = vld [vmem:[%s4362] ss:$49 sm:$0xf]
    %v4364 = vadd.f32 %v4363, %v3120
    %v4365 = vmax.f32 %v4364, 0.0
    %s4366 = scalar_lea.vmem [#allocation4], 480
    %v4367 = vld [vmem:[%s4366] sm:$0xff]
    %v4368 = vld [vmem:[%s4366 + $0x8] sm:$0xff]
    %v4369 = vld [vmem:[%s4366 + $0x10] sm:$0xff]
    %v4370 = vld [vmem:[%s4366 + $0x18] sm:$0xff]
    %v4372 = vsel %vm411, %v4365, 0
    %4374 = vmatprep.subr.mxu0 0.0
    %4375 = vmatpush1.msra.mxu0 0.0
    %4376 = vmatprep.subr.mxu0 0.0
    %4377 = vmatpush1.msra.mxu0 0.0
    %4378 = vmatprep.subr.mxu0 0.0
    %4379 = vmatpush1.msra.mxu0 0.0
    %4380 = vmatprep.subr.mxu0 0.0
    %4381 = vmatpush1.msra.mxu0 0.0
    %4382 = vmatprep.subr.mxu0 0.0
    %4383 = vmatpush1.msra.mxu0 0.0
    %4384 = vmatprep.subr.mxu0 0.0
    %4385 = vmatpush1.msra.mxu0 0.0
    %4386 = vmatprep.subr.mxu0 0.0
    %4387 = vmatpush1.msra.mxu0 0.0
    %4388 = vmatprep.subr.mxu0 0.0
    %4389 = vmatpush1.msra.mxu0 0.0
    %4390 = vmatprep.subr.mxu0 0.0
    %4391 = vmatpush1.msra.mxu0 0.0
    %4392 = vmatprep.subr.mxu0 0.0
    %4393 = vmatpush1.msra.mxu0 0.0
    %4394 = vmatprep.subr.mxu0 0.0
    %4395 = vmatpush1.msra.mxu0 0.0
    %4396 = vmatprep.subr.mxu0 0.0
    %4397 = vmatpush1.msra.mxu0 0.0
    %4398 = vmatprep.subr.mxu0 0.0
    %4399 = vmatpush1.msra.mxu0 %v4370
    %4400 = vmatprep.subr.mxu0 0.0
    %4401 = vmatpush1.msra.mxu0 %v4369
    %4402 = vmatprep.subr.mxu0 0.0
    %4403 = vmatpush1.msra.mxu0 %v4368
    %4404 = vmatprep.subr.mxu0 0.0
    %4405 = vmatpush1.msra.mxu0 %v4367
    %4406 = vmatprep.subr.mxu0 0.0
    %4407 = vmatpush2.msra.mxu0 0.0
    %4408 = vmatprep.subr.mxu0 0.0
    %4409 = vmatpush2.msra.mxu0 0.0
    %4410 = vmatprep.subr.mxu0 0.0
    %4411 = vmatpush2.msra.mxu0 0.0
    %4412 = vmatprep.subr.mxu0 0.0
    %4413 = vmatpush2.msra.mxu0 0.0
    %4414 = vmatprep.subr.mxu0 0.0
    %4415 = vmatpush2.msra.mxu0 0.0
    %4416 = vmatprep.subr.mxu0 0.0
    %4417 = vmatpush2.msra.mxu0 0.0
    %4418 = vmatprep.subr.mxu0 0.0
    %4419 = vmatpush2.msra.mxu0 0.0
    %4420 = vmatprep.subr.mxu0 0.0
    %4421 = vmatpush2.msra.mxu0 0.0
    %4422 = vmatprep.subr.mxu0 0.0
    %4423 = vmatpush2.msra.mxu0 0.0
    %4424 = vmatprep.subr.mxu0 0.0
    %4425 = vmatpush2.msra.mxu0 0.0
    %4426 = vmatprep.subr.mxu0 0.0
    %4427 = vmatpush2.msra.mxu0 0.0
    %4428 = vmatprep.subr.mxu0 0.0
    %4429 = vmatpush2.msra.mxu0 0.0
    %4430 = vmatprep.subr.mxu0 0.0
    %4431 = vmatpush2.msra.mxu0 0.0
    %4432 = vmatprep.subr.mxu0 0.0
    %4433 = vmatpush2.msra.mxu0 0.0
    %4434 = vmatprep.subr.mxu0 0.0
    %4435 = vmatpush2.msra.mxu0 0.0
    %4436 = vmatprep.subr.mxu0 0.0
    %4437 = vmatpush2.msra.mxu0 0.0
    %4438 = vmatprep.mubr.f32.mxu0 0.0
    %4439 = vmatmul.mubr.f32.gmra.mxu0 %v4372
    %v4440 = vpop.f32.mrf.mxu0
    %v4441 = vadd.f32 0.0, %v4440
    %v4442 = vpop.f32.mrf.mxu0
    %4443 = vdwg.mxu0
    %v4444 = vadd.f32 %v4361, %v4441
    %s4445 = scalar_lea.vmem [#allocation3], 22
    %v4446 = vld [vmem:[%s4445] ss:$49 sm:$0xf]
    %v4447 = vadd.f32 %v4446, %v3120
    %v4448 = vmax.f32 %v4447, 0.0
    %s4449 = scalar_lea.vmem [#allocation4], 512
    %v4450 = vld [vmem:[%s4449] sm:$0xff]
    %v4451 = vld [vmem:[%s4449 + $0x8] sm:$0xff]
    %v4452 = vld [vmem:[%s4449 + $0x10] sm:$0xff]
    %v4453 = vld [vmem:[%s4449 + $0x18] sm:$0xff]
    %v4455 = vsel %vm411, %v4448, 0
    %4457 = vmatprep.subr.mxu0 0.0
    %4458 = vmatpush1.msra.mxu0 0.0
    %4459 = vmatprep.subr.mxu0 0.0
    %4460 = vmatpush1.msra.mxu0 0.0
    %4461 = vmatprep.subr.mxu0 0.0
    %4462 = vmatpush1.msra.mxu0 0.0
    %4463 = vmatprep.subr.mxu0 0.0
    %4464 = vmatpush1.msra.mxu0 0.0
    %4465 = vmatprep.subr.mxu0 0.0
    %4466 = vmatpush1.msra.mxu0 0.0
    %4467 = vmatprep.subr.mxu0 0.0
    %4468 = vmatpush1.msra.mxu0 0.0
    %4469 = vmatprep.subr.mxu0 0.0
    %4470 = vmatpush1.msra.mxu0 0.0
    %4471 = vmatprep.subr.mxu0 0.0
    %4472 = vmatpush1.msra.mxu0 0.0
    %4473 = vmatprep.subr.mxu0 0.0
    %4474 = vmatpush1.msra.mxu0 0.0
    %4475 = vmatprep.subr.mxu0 0.0
    %4476 = vmatpush1.msra.mxu0 0.0
    %4477 = vmatprep.subr.mxu0 0.0
    %4478 = vmatpush1.msra.mxu0 0.0
    %4479 = vmatprep.subr.mxu0 0.0
    %4480 = vmatpush1.msra.mxu0 0.0
    %4481 = vmatprep.subr.mxu0 0.0
    %4482 = vmatpush1.msra.mxu0 %v4453
    %4483 = vmatprep.subr.mxu0 0.0
    %4484 = vmatpush1.msra.mxu0 %v4452
    %4485 = vmatprep.subr.mxu0 0.0
    %4486 = vmatpush1.msra.mxu0 %v4451
    %4487 = vmatprep.subr.mxu0 0.0
    %4488 = vmatpush1.msra.mxu0 %v4450
    %4489 = vmatprep.subr.mxu0 0.0
    %4490 = vmatpush2.msra.mxu0 0.0
    %4491 = vmatprep.subr.mxu0 0.0
    %4492 = vmatpush2.msra.mxu0 0.0
    %4493 = vmatprep.subr.mxu0 0.0
    %4494 = vmatpush2.msra.mxu0 0.0
    %4495 = vmatprep.subr.mxu0 0.0
    %4496 = vmatpush2.msra.mxu0 0.0
    %4497 = vmatprep.subr.mxu0 0.0
    %4498 = vmatpush2.msra.mxu0 0.0
    %4499 = vmatprep.subr.mxu0 0.0
    %4500 = vmatpush2.msra.mxu0 0.0
    %4501 = vmatprep.subr.mxu0 0.0
    %4502 = vmatpush2.msra.mxu0 0.0
    %4503 = vmatprep.subr.mxu0 0.0
    %4504 = vmatpush2.msra.mxu0 0.0
    %4505 = vmatprep.subr.mxu0 0.0
    %4506 = vmatpush2.msra.mxu0 0.0
    %4507 = vmatprep.subr.mxu0 0.0
    %4508 = vmatpush2.msra.mxu0 0.0
    %4509 = vmatprep.subr.mxu0 0.0
    %4510 = vmatpush2.msra.mxu0 0.0
    %4511 = vmatprep.subr.mxu0 0.0
    %4512 = vmatpush2.msra.mxu0 0.0
    %4513 = vmatprep.subr.mxu0 0.0
    %4514 = vmatpush2.msra.mxu0 0.0
    %4515 = vmatprep.subr.mxu0 0.0
    %4516 = vmatpush2.msra.mxu0 0.0
    %4517 = vmatprep.subr.mxu0 0.0
    %4518 = vmatpush2.msra.mxu0 0.0
    %4519 = vmatprep.subr.mxu0 0.0
    %4520 = vmatpush2.msra.mxu0 0.0
    %4521 = vmatprep.mubr.f32.mxu0 0.0
    %4522 = vmatmul.mubr.f32.gmra.mxu0 %v4455
    %v4523 = vpop.f32.mrf.mxu0
    %v4524 = vadd.f32 0.0, %v4523
    %v4525 = vpop.f32.mrf.mxu0
    %4526 = vdwg.mxu0
    %v4527 = vadd.f32 %v4444, %v4524
    %s4528 = scalar_lea.vmem [#allocation3], 23
    %v4529 = vld [vmem:[%s4528] ss:$49 sm:$0xf]
    %v4530 = vadd.f32 %v4529, %v3120
    %v4531 = vmax.f32 %v4530, 0.0
    %s4532 = scalar_lea.vmem [#allocation4], 544
    %v4533 = vld [vmem:[%s4532] sm:$0xff]
    %v4534 = vld [vmem:[%s4532 + $0x8] sm:$0xff]
    %v4535 = vld [vmem:[%s4532 + $0x10] sm:$0xff]
    %v4536 = vld [vmem:[%s4532 + $0x18] sm:$0xff]
    %v4538 = vsel %vm411, %v4531, 0
    %4540 = vmatprep.subr.mxu0 0.0
    %4541 = vmatpush1.msra.mxu0 0.0
    %4542 = vmatprep.subr.mxu0 0.0
    %4543 = vmatpush1.msra.mxu0 0.0
    %4544 = vmatprep.subr.mxu0 0.0
    %4545 = vmatpush1.msra.mxu0 0.0
    %4546 = vmatprep.subr.mxu0 0.0
    %4547 = vmatpush1.msra.mxu0 0.0
    %4548 = vmatprep.subr.mxu0 0.0
    %4549 = vmatpush1.msra.mxu0 0.0
    %4550 = vmatprep.subr.mxu0 0.0
    %4551 = vmatpush1.msra.mxu0 0.0
    %4552 = vmatprep.subr.mxu0 0.0
    %4553 = vmatpush1.msra.mxu0 0.0
    %4554 = vmatprep.subr.mxu0 0.0
    %4555 = vmatpush1.msra.mxu0 0.0
    %4556 = vmatprep.subr.mxu0 0.0
    %4557 = vmatpush1.msra.mxu0 0.0
    %4558 = vmatprep.subr.mxu0 0.0
    %4559 = vmatpush1.msra.mxu0 0.0
    %4560 = vmatprep.subr.mxu0 0.0
    %4561 = vmatpush1.msra.mxu0 0.0
    %4562 = vmatprep.subr.mxu0 0.0
    %4563 = vmatpush1.msra.mxu0 0.0
    %4564 = vmatprep.subr.mxu0 0.0
    %4565 = vmatpush1.msra.mxu0 %v4536
    %4566 = vmatprep.subr.mxu0 0.0
    %4567 = vmatpush1.msra.mxu0 %v4535
    %4568 = vmatprep.subr.mxu0 0.0
    %4569 = vmatpush1.msra.mxu0 %v4534
    %4570 = vmatprep.subr.mxu0 0.0
    %4571 = vmatpush1.msra.mxu0 %v4533
    %4572 = vmatprep.subr.mxu0 0.0
    %4573 = vmatpush2.msra.mxu0 0.0
    %4574 = vmatprep.subr.mxu0 0.0
    %4575 = vmatpush2.msra.mxu0 0.0
    %4576 = vmatprep.subr.mxu0 0.0
    %4577 = vmatpush2.msra.mxu0 0.0
    %4578 = vmatprep.subr.mxu0 0.0
    %4579 = vmatpush2.msra.mxu0 0.0
    %4580 = vmatprep.subr.mxu0 0.0
    %4581 = vmatpush2.msra.mxu0 0.0
    %4582 = vmatprep.subr.mxu0 0.0
    %4583 = vmatpush2.msra.mxu0 0.0
    %4584 = vmatprep.subr.mxu0 0.0
    %4585 = vmatpush2.msra.mxu0 0.0
    %4586 = vmatprep.subr.mxu0 0.0
    %4587 = vmatpush2.msra.mxu0 0.0
    %4588 = vmatprep.subr.mxu0 0.0
    %4589 = vmatpush2.msra.mxu0 0.0
    %4590 = vmatprep.subr.mxu0 0.0
    %4591 = vmatpush2.msra.mxu0 0.0
    %4592 = vmatprep.subr.mxu0 0.0
    %4593 = vmatpush2.msra.mxu0 0.0
    %4594 = vmatprep.subr.mxu0 0.0
    %4595 = vmatpush2.msra.mxu0 0.0
    %4596 = vmatprep.subr.mxu0 0.0
    %4597 = vmatpush2.msra.mxu0 0.0
    %4598 = vmatprep.subr.mxu0 0.0
    %4599 = vmatpush2.msra.mxu0 0.0
    %4600 = vmatprep.subr.mxu0 0.0
    %4601 = vmatpush2.msra.mxu0 0.0
    %4602 = vmatprep.subr.mxu0 0.0
    %4603 = vmatpush2.msra.mxu0 0.0
    %4604 = vmatprep.mubr.f32.mxu0 0.0
    %4605 = vmatmul.mubr.f32.gmra.mxu0 %v4538
    %v4606 = vpop.f32.mrf.mxu0
    %v4607 = vadd.f32 0.0, %v4606
    %v4608 = vpop.f32.mrf.mxu0
    %4609 = vdwg.mxu0
    %v4610 = vadd.f32 %v4527, %v4607
    %s4611 = scalar_lea.vmem [#allocation3], 24
    %v4612 = vld [vmem:[%s4611] ss:$49 sm:$0xf]
    %v4613 = vadd.f32 %v4612, %v3120
    %v4614 = vmax.f32 %v4613, 0.0
    %s4615 = scalar_lea.vmem [#allocation4], 576
    %v4616 = vld [vmem:[%s4615] sm:$0xff]
    %v4617 = vld [vmem:[%s4615 + $0x8] sm:$0xff]
    %v4618 = vld [vmem:[%s4615 + $0x10] sm:$0xff]
    %v4619 = vld [vmem:[%s4615 + $0x18] sm:$0xff]
    %v4621 = vsel %vm411, %v4614, 0
    %4623 = vmatprep.subr.mxu0 0.0
    %4624 = vmatpush1.msra.mxu0 0.0
    %4625 = vmatprep.subr.mxu0 0.0
    %4626 = vmatpush1.msra.mxu0 0.0
    %4627 = vmatprep.subr.mxu0 0.0
    %4628 = vmatpush1.msra.mxu0 0.0
    %4629 = vmatprep.subr.mxu0 0.0
    %4630 = vmatpush1.msra.mxu0 0.0
    %4631 = vmatprep.subr.mxu0 0.0
    %4632 = vmatpush1.msra.mxu0 0.0
    %4633 = vmatprep.subr.mxu0 0.0
    %4634 = vmatpush1.msra.mxu0 0.0
    %4635 = vmatprep.subr.mxu0 0.0
    %4636 = vmatpush1.msra.mxu0 0.0
    %4637 = vmatprep.subr.mxu0 0.0
    %4638 = vmatpush1.msra.mxu0 0.0
    %4639 = vmatprep.subr.mxu0 0.0
    %4640 = vmatpush1.msra.mxu0 0.0
    %4641 = vmatprep.subr.mxu0 0.0
    %4642 = vmatpush1.msra.mxu0 0.0
    %4643 = vmatprep.subr.mxu0 0.0
    %4644 = vmatpush1.msra.mxu0 0.0
    %4645 = vmatprep.subr.mxu0 0.0
    %4646 = vmatpush1.msra.mxu0 0.0
    %4647 = vmatprep.subr.mxu0 0.0
    %4648 = vmatpush1.msra.mxu0 %v4619
    %4649 = vmatprep.subr.mxu0 0.0
    %4650 = vmatpush1.msra.mxu0 %v4618
    %4651 = vmatprep.subr.mxu0 0.0
    %4652 = vmatpush1.msra.mxu0 %v4617
    %4653 = vmatprep.subr.mxu0 0.0
    %4654 = vmatpush1.msra.mxu0 %v4616
    %4655 = vmatprep.subr.mxu0 0.0
    %4656 = vmatpush2.msra.mxu0 0.0
    %4657 = vmatprep.subr.mxu0 0.0
    %4658 = vmatpush2.msra.mxu0 0.0
    %4659 = vmatprep.subr.mxu0 0.0
    %4660 = vmatpush2.msra.mxu0 0.0
    %4661 = vmatprep.subr.mxu0 0.0
    %4662 = vmatpush2.msra.mxu0 0.0
    %4663 = vmatprep.subr.mxu0 0.0
    %4664 = vmatpush2.msra.mxu0 0.0
    %4665 = vmatprep.subr.mxu0 0.0
    %4666 = vmatpush2.msra.mxu0 0.0
    %4667 = vmatprep.subr.mxu0 0.0
    %4668 = vmatpush2.msra.mxu0 0.0
    %4669 = vmatprep.subr.mxu0 0.0
    %4670 = vmatpush2.msra.mxu0 0.0
    %4671 = vmatprep.subr.mxu0 0.0
    %4672 = vmatpush2.msra.mxu0 0.0
    %4673 = vmatprep.subr.mxu0 0.0
    %4674 = vmatpush2.msra.mxu0 0.0
    %4675 = vmatprep.subr.mxu0 0.0
    %4676 = vmatpush2.msra.mxu0 0.0
    %4677 = vmatprep.subr.mxu0 0.0
    %4678 = vmatpush2.msra.mxu0 0.0
    %4679 = vmatprep.subr.mxu0 0.0
    %4680 = vmatpush2.msra.mxu0 0.0
    %4681 = vmatprep.subr.mxu0 0.0
    %4682 = vmatpush2.msra.mxu0 0.0
    %4683 = vmatprep.subr.mxu0 0.0
    %4684 = vmatpush2.msra.mxu0 0.0
    %4685 = vmatprep.subr.mxu0 0.0
    %4686 = vmatpush2.msra.mxu0 0.0
    %4687 = vmatprep.mubr.f32.mxu0 0.0
    %4688 = vmatmul.mubr.f32.gmra.mxu0 %v4621
    %v4689 = vpop.f32.mrf.mxu0
    %v4690 = vadd.f32 0.0, %v4689
    %v4691 = vpop.f32.mrf.mxu0
    %4692 = vdwg.mxu0
    %v4693 = vadd.f32 %v4610, %v4690
    %s4694 = scalar_lea.vmem [#allocation3], 25
    %v4695 = vld [vmem:[%s4694] ss:$49 sm:$0xf]
    %v4696 = vadd.f32 %v4695, %v3120
    %v4697 = vmax.f32 %v4696, 0.0
    %s4698 = scalar_lea.vmem [#allocation4], 608
    %v4699 = vld [vmem:[%s4698] sm:$0xff]
    %v4700 = vld [vmem:[%s4698 + $0x8] sm:$0xff]
    %v4701 = vld [vmem:[%s4698 + $0x10] sm:$0xff]
    %v4702 = vld [vmem:[%s4698 + $0x18] sm:$0xff]
    %v4704 = vsel %vm411, %v4697, 0
    %4706 = vmatprep.subr.mxu0 0.0
    %4707 = vmatpush1.msra.mxu0 0.0
    %4708 = vmatprep.subr.mxu0 0.0
    %4709 = vmatpush1.msra.mxu0 0.0
    %4710 = vmatprep.subr.mxu0 0.0
    %4711 = vmatpush1.msra.mxu0 0.0
    %4712 = vmatprep.subr.mxu0 0.0
    %4713 = vmatpush1.msra.mxu0 0.0
    %4714 = vmatprep.subr.mxu0 0.0
    %4715 = vmatpush1.msra.mxu0 0.0
    %4716 = vmatprep.subr.mxu0 0.0
    %4717 = vmatpush1.msra.mxu0 0.0
    %4718 = vmatprep.subr.mxu0 0.0
    %4719 = vmatpush1.msra.mxu0 0.0
    %4720 = vmatprep.subr.mxu0 0.0
    %4721 = vmatpush1.msra.mxu0 0.0
    %4722 = vmatprep.subr.mxu0 0.0
    %4723 = vmatpush1.msra.mxu0 0.0
    %4724 = vmatprep.subr.mxu0 0.0
    %4725 = vmatpush1.msra.mxu0 0.0
    %4726 = vmatprep.subr.mxu0 0.0
    %4727 = vmatpush1.msra.mxu0 0.0
    %4728 = vmatprep.subr.mxu0 0.0
    %4729 = vmatpush1.msra.mxu0 0.0
    %4730 = vmatprep.subr.mxu0 0.0
    %4731 = vmatpush1.msra.mxu0 %v4702
    %4732 = vmatprep.subr.mxu0 0.0
    %4733 = vmatpush1.msra.mxu0 %v4701
    %4734 = vmatprep.subr.mxu0 0.0
    %4735 = vmatpush1.msra.mxu0 %v4700
    %4736 = vmatprep.subr.mxu0 0.0
    %4737 = vmatpush1.msra.mxu0 %v4699
    %4738 = vmatprep.subr.mxu0 0.0
    %4739 = vmatpush2.msra.mxu0 0.0
    %4740 = vmatprep.subr.mxu0 0.0
    %4741 = vmatpush2.msra.mxu0 0.0
    %4742 = vmatprep.subr.mxu0 0.0
    %4743 = vmatpush2.msra.mxu0 0.0
    %4744 = vmatprep.subr.mxu0 0.0
    %4745 = vmatpush2.msra.mxu0 0.0
    %4746 = vmatprep.subr.mxu0 0.0
    %4747 = vmatpush2.msra.mxu0 0.0
    %4748 = vmatprep.subr.mxu0 0.0
    %4749 = vmatpush2.msra.mxu0 0.0
    %4750 = vmatprep.subr.mxu0 0.0
    %4751 = vmatpush2.msra.mxu0 0.0
    %4752 = vmatprep.subr.mxu0 0.0
    %4753 = vmatpush2.msra.mxu0 0.0
    %4754 = vmatprep.subr.mxu0 0.0
    %4755 = vmatpush2.msra.mxu0 0.0
    %4756 = vmatprep.subr.mxu0 0.0
    %4757 = vmatpush2.msra.mxu0 0.0
    %4758 = vmatprep.subr.mxu0 0.0
    %4759 = vmatpush2.msra.mxu0 0.0
    %4760 = vmatprep.subr.mxu0 0.0
    %4761 = vmatpush2.msra.mxu0 0.0
    %4762 = vmatprep.subr.mxu0 0.0
    %4763 = vmatpush2.msra.mxu0 0.0
    %4764 = vmatprep.subr.mxu0 0.0
    %4765 = vmatpush2.msra.mxu0 0.0
    %4766 = vmatprep.subr.mxu0 0.0
    %4767 = vmatpush2.msra.mxu0 0.0
    %4768 = vmatprep.subr.mxu0 0.0
    %4769 = vmatpush2.msra.mxu0 0.0
    %4770 = vmatprep.mubr.f32.mxu0 0.0
    %4771 = vmatmul.mubr.f32.gmra.mxu0 %v4704
    %v4772 = vpop.f32.mrf.mxu0
    %v4773 = vadd.f32 0.0, %v4772
    %v4774 = vpop.f32.mrf.mxu0
    %4775 = vdwg.mxu0
    %v4776 = vadd.f32 %v4693, %v4773
    %s4777 = scalar_lea.vmem [#allocation3], 28
    %v4778 = vld [vmem:[%s4777] ss:$49 sm:$0xf]
    %v4779 = vadd.f32 %v4778, %v3120
    %v4780 = vmax.f32 %v4779, 0.0
    %s4781 = scalar_lea.vmem [#allocation4], 640
    %v4782 = vld [vmem:[%s4781] sm:$0xff]
    %v4783 = vld [vmem:[%s4781 + $0x8] sm:$0xff]
    %v4784 = vld [vmem:[%s4781 + $0x10] sm:$0xff]
    %v4785 = vld [vmem:[%s4781 + $0x18] sm:$0xff]
    %v4787 = vsel %vm411, %v4780, 0
    %4789 = vmatprep.subr.mxu0 0.0
    %4790 = vmatpush1.msra.mxu0 0.0
    %4791 = vmatprep.subr.mxu0 0.0
    %4792 = vmatpush1.msra.mxu0 0.0
    %4793 = vmatprep.subr.mxu0 0.0
    %4794 = vmatpush1.msra.mxu0 0.0
    %4795 = vmatprep.subr.mxu0 0.0
    %4796 = vmatpush1.msra.mxu0 0.0
    %4797 = vmatprep.subr.mxu0 0.0
    %4798 = vmatpush1.msra.mxu0 0.0
    %4799 = vmatprep.subr.mxu0 0.0
    %4800 = vmatpush1.msra.mxu0 0.0
    %4801 = vmatprep.subr.mxu0 0.0
    %4802 = vmatpush1.msra.mxu0 0.0
    %4803 = vmatprep.subr.mxu0 0.0
    %4804 = vmatpush1.msra.mxu0 0.0
    %4805 = vmatprep.subr.mxu0 0.0
    %4806 = vmatpush1.msra.mxu0 0.0
    %4807 = vmatprep.subr.mxu0 0.0
    %4808 = vmatpush1.msra.mxu0 0.0
    %4809 = vmatprep.subr.mxu0 0.0
    %4810 = vmatpush1.msra.mxu0 0.0
    %4811 = vmatprep.subr.mxu0 0.0
    %4812 = vmatpush1.msra.mxu0 0.0
    %4813 = vmatprep.subr.mxu0 0.0
    %4814 = vmatpush1.msra.mxu0 %v4785
    %4815 = vmatprep.subr.mxu0 0.0
    %4816 = vmatpush1.msra.mxu0 %v4784
    %4817 = vmatprep.subr.mxu0 0.0
    %4818 = vmatpush1.msra.mxu0 %v4783
    %4819 = vmatprep.subr.mxu0 0.0
    %4820 = vmatpush1.msra.mxu0 %v4782
    %4821 = vmatprep.subr.mxu0 0.0
    %4822 = vmatpush2.msra.mxu0 0.0
    %4823 = vmatprep.subr.mxu0 0.0
    %4824 = vmatpush2.msra.mxu0 0.0
    %4825 = vmatprep.subr.mxu0 0.0
    %4826 = vmatpush2.msra.mxu0 0.0
    %4827 = vmatprep.subr.mxu0 0.0
    %4828 = vmatpush2.msra.mxu0 0.0
    %4829 = vmatprep.subr.mxu0 0.0
    %4830 = vmatpush2.msra.mxu0 0.0
    %4831 = vmatprep.subr.mxu0 0.0
    %4832 = vmatpush2.msra.mxu0 0.0
    %4833 = vmatprep.subr.mxu0 0.0
    %4834 = vmatpush2.msra.mxu0 0.0
    %4835 = vmatprep.subr.mxu0 0.0
    %4836 = vmatpush2.msra.mxu0 0.0
    %4837 = vmatprep.subr.mxu0 0.0
    %4838 = vmatpush2.msra.mxu0 0.0
    %4839 = vmatprep.subr.mxu0 0.0
    %4840 = vmatpush2.msra.mxu0 0.0
    %4841 = vmatprep.subr.mxu0 0.0
    %4842 = vmatpush2.msra.mxu0 0.0
    %4843 = vmatprep.subr.mxu0 0.0
    %4844 = vmatpush2.msra.mxu0 0.0
    %4845 = vmatprep.subr.mxu0 0.0
    %4846 = vmatpush2.msra.mxu0 0.0
    %4847 = vmatprep.subr.mxu0 0.0
    %4848 = vmatpush2.msra.mxu0 0.0
    %4849 = vmatprep.subr.mxu0 0.0
    %4850 = vmatpush2.msra.mxu0 0.0
    %4851 = vmatprep.subr.mxu0 0.0
    %4852 = vmatpush2.msra.mxu0 0.0
    %4853 = vmatprep.mubr.f32.mxu0 0.0
    %4854 = vmatmul.mubr.f32.gmra.mxu0 %v4787
    %v4855 = vpop.f32.mrf.mxu0
    %v4856 = vadd.f32 0.0, %v4855
    %v4857 = vpop.f32.mrf.mxu0
    %4858 = vdwg.mxu0
    %v4859 = vadd.f32 %v4776, %v4856
    %s4860 = scalar_lea.vmem [#allocation3], 29
    %v4861 = vld [vmem:[%s4860] ss:$49 sm:$0xf]
    %v4862 = vadd.f32 %v4861, %v3120
    %v4863 = vmax.f32 %v4862, 0.0
    %s4864 = scalar_lea.vmem [#allocation4], 672
    %v4865 = vld [vmem:[%s4864] sm:$0xff]
    %v4866 = vld [vmem:[%s4864 + $0x8] sm:$0xff]
    %v4867 = vld [vmem:[%s4864 + $0x10] sm:$0xff]
    %v4868 = vld [vmem:[%s4864 + $0x18] sm:$0xff]
    %v4870 = vsel %vm411, %v4863, 0
    %4872 = vmatprep.subr.mxu0 0.0
    %4873 = vmatpush1.msra.mxu0 0.0
    %4874 = vmatprep.subr.mxu0 0.0
    %4875 = vmatpush1.msra.mxu0 0.0
    %4876 = vmatprep.subr.mxu0 0.0
    %4877 = vmatpush1.msra.mxu0 0.0
    %4878 = vmatprep.subr.mxu0 0.0
    %4879 = vmatpush1.msra.mxu0 0.0
    %4880 = vmatprep.subr.mxu0 0.0
    %4881 = vmatpush1.msra.mxu0 0.0
    %4882 = vmatprep.subr.mxu0 0.0
    %4883 = vmatpush1.msra.mxu0 0.0
    %4884 = vmatprep.subr.mxu0 0.0
    %4885 = vmatpush1.msra.mxu0 0.0
    %4886 = vmatprep.subr.mxu0 0.0
    %4887 = vmatpush1.msra.mxu0 0.0
    %4888 = vmatprep.subr.mxu0 0.0
    %4889 = vmatpush1.msra.mxu0 0.0
    %4890 = vmatprep.subr.mxu0 0.0
    %4891 = vmatpush1.msra.mxu0 0.0
    %4892 = vmatprep.subr.mxu0 0.0
    %4893 = vmatpush1.msra.mxu0 0.0
    %4894 = vmatprep.subr.mxu0 0.0
    %4895 = vmatpush1.msra.mxu0 0.0
    %4896 = vmatprep.subr.mxu0 0.0
    %4897 = vmatpush1.msra.mxu0 %v4868
    %4898 = vmatprep.subr.mxu0 0.0
    %4899 = vmatpush1.msra.mxu0 %v4867
    %4900 = vmatprep.subr.mxu0 0.0
    %4901 = vmatpush1.msra.mxu0 %v4866
    %4902 = vmatprep.subr.mxu0 0.0
    %4903 = vmatpush1.msra.mxu0 %v4865
    %4904 = vmatprep.subr.mxu0 0.0
    %4905 = vmatpush2.msra.mxu0 0.0
    %4906 = vmatprep.subr.mxu0 0.0
    %4907 = vmatpush2.msra.mxu0 0.0
    %4908 = vmatprep.subr.mxu0 0.0
    %4909 = vmatpush2.msra.mxu0 0.0
    %4910 = vmatprep.subr.mxu0 0.0
    %4911 = vmatpush2.msra.mxu0 0.0
    %4912 = vmatprep.subr.mxu0 0.0
    %4913 = vmatpush2.msra.mxu0 0.0
    %4914 = vmatprep.subr.mxu0 0.0
    %4915 = vmatpush2.msra.mxu0 0.0
    %4916 = vmatprep.subr.mxu0 0.0
    %4917 = vmatpush2.msra.mxu0 0.0
    %4918 = vmatprep.subr.mxu0 0.0
    %4919 = vmatpush2.msra.mxu0 0.0
    %4920 = vmatprep.subr.mxu0 0.0
    %4921 = vmatpush2.msra.mxu0 0.0
    %4922 = vmatprep.subr.mxu0 0.0
    %4923 = vmatpush2.msra.mxu0 0.0
    %4924 = vmatprep.subr.mxu0 0.0
    %4925 = vmatpush2.msra.mxu0 0.0
    %4926 = vmatprep.subr.mxu0 0.0
    %4927 = vmatpush2.msra.mxu0 0.0
    %4928 = vmatprep.subr.mxu0 0.0
    %4929 = vmatpush2.msra.mxu0 0.0
    %4930 = vmatprep.subr.mxu0 0.0
    %4931 = vmatpush2.msra.mxu0 0.0
    %4932 = vmatprep.subr.mxu0 0.0
    %4933 = vmatpush2.msra.mxu0 0.0
    %4934 = vmatprep.subr.mxu0 0.0
    %4935 = vmatpush2.msra.mxu0 0.0
    %4936 = vmatprep.mubr.f32.mxu0 0.0
    %4937 = vmatmul.mubr.f32.gmra.mxu0 %v4870
    %v4938 = vpop.f32.mrf.mxu0
    %v4939 = vadd.f32 0.0, %v4938
    %v4940 = vpop.f32.mrf.mxu0
    %4941 = vdwg.mxu0
    %v4942 = vadd.f32 %v4859, %v4939
    %s4943 = scalar_lea.vmem [#allocation3], 30
    %v4944 = vld [vmem:[%s4943] ss:$49 sm:$0xf]
    %v4945 = vadd.f32 %v4944, %v3120
    %v4946 = vmax.f32 %v4945, 0.0
    %s4947 = scalar_lea.vmem [#allocation4], 704
    %v4948 = vld [vmem:[%s4947] sm:$0xff]
    %v4949 = vld [vmem:[%s4947 + $0x8] sm:$0xff]
    %v4950 = vld [vmem:[%s4947 + $0x10] sm:$0xff]
    %v4951 = vld [vmem:[%s4947 + $0x18] sm:$0xff]
    %v4953 = vsel %vm411, %v4946, 0
    %4955 = vmatprep.subr.mxu0 0.0
    %4956 = vmatpush1.msra.mxu0 0.0
    %4957 = vmatprep.subr.mxu0 0.0
    %4958 = vmatpush1.msra.mxu0 0.0
    %4959 = vmatprep.subr.mxu0 0.0
    %4960 = vmatpush1.msra.mxu0 0.0
    %4961 = vmatprep.subr.mxu0 0.0
    %4962 = vmatpush1.msra.mxu0 0.0
    %4963 = vmatprep.subr.mxu0 0.0
    %4964 = vmatpush1.msra.mxu0 0.0
    %4965 = vmatprep.subr.mxu0 0.0
    %4966 = vmatpush1.msra.mxu0 0.0
    %4967 = vmatprep.subr.mxu0 0.0
    %4968 = vmatpush1.msra.mxu0 0.0
    %4969 = vmatprep.subr.mxu0 0.0
    %4970 = vmatpush1.msra.mxu0 0.0
    %4971 = vmatprep.subr.mxu0 0.0
    %4972 = vmatpush1.msra.mxu0 0.0
    %4973 = vmatprep.subr.mxu0 0.0
    %4974 = vmatpush1.msra.mxu0 0.0
    %4975 = vmatprep.subr.mxu0 0.0
    %4976 = vmatpush1.msra.mxu0 0.0
    %4977 = vmatprep.subr.mxu0 0.0
    %4978 = vmatpush1.msra.mxu0 0.0
    %4979 = vmatprep.subr.mxu0 0.0
    %4980 = vmatpush1.msra.mxu0 %v4951
    %4981 = vmatprep.subr.mxu0 0.0
    %4982 = vmatpush1.msra.mxu0 %v4950
    %4983 = vmatprep.subr.mxu0 0.0
    %4984 = vmatpush1.msra.mxu0 %v4949
    %4985 = vmatprep.subr.mxu0 0.0
    %4986 = vmatpush1.msra.mxu0 %v4948
    %4987 = vmatprep.subr.mxu0 0.0
    %4988 = vmatpush2.msra.mxu0 0.0
    %4989 = vmatprep.subr.mxu0 0.0
    %4990 = vmatpush2.msra.mxu0 0.0
    %4991 = vmatprep.subr.mxu0 0.0
    %4992 = vmatpush2.msra.mxu0 0.0
    %4993 = vmatprep.subr.mxu0 0.0
    %4994 = vmatpush2.msra.mxu0 0.0
    %4995 = vmatprep.subr.mxu0 0.0
    %4996 = vmatpush2.msra.mxu0 0.0
    %4997 = vmatprep.subr.mxu0 0.0
    %4998 = vmatpush2.msra.mxu0 0.0
    %4999 = vmatprep.subr.mxu0 0.0
    %5000 = vmatpush2.msra.mxu0 0.0
    %5001 = vmatprep.subr.mxu0 0.0
    %5002 = vmatpush2.msra.mxu0 0.0
    %5003 = vmatprep.subr.mxu0 0.0
    %5004 = vmatpush2.msra.mxu0 0.0
    %5005 = vmatprep.subr.mxu0 0.0
    %5006 = vmatpush2.msra.mxu0 0.0
    %5007 = vmatprep.subr.mxu0 0.0
    %5008 = vmatpush2.msra.mxu0 0.0
    %5009 = vmatprep.subr.mxu0 0.0
    %5010 = vmatpush2.msra.mxu0 0.0
    %5011 = vmatprep.subr.mxu0 0.0
    %5012 = vmatpush2.msra.mxu0 0.0
    %5013 = vmatprep.subr.mxu0 0.0
    %5014 = vmatpush2.msra.mxu0 0.0
    %5015 = vmatprep.subr.mxu0 0.0
    %5016 = vmatpush2.msra.mxu0 0.0
    %5017 = vmatprep.subr.mxu0 0.0
    %5018 = vmatpush2.msra.mxu0 0.0
    %5019 = vmatprep.mubr.f32.mxu0 0.0
    %5020 = vmatmul.mubr.f32.gmra.mxu0 %v4953
    %v5021 = vpop.f32.mrf.mxu0
    %v5022 = vadd.f32 0.0, %v5021
    %v5023 = vpop.f32.mrf.mxu0
    %5024 = vdwg.mxu0
    %v5025 = vadd.f32 %v4942, %v5022
    %s5026 = scalar_lea.vmem [#allocation3], 31
    %v5027 = vld [vmem:[%s5026] ss:$49 sm:$0xf]
    %v5028 = vadd.f32 %v5027, %v3120
    %v5029 = vmax.f32 %v5028, 0.0
    %s5030 = scalar_lea.vmem [#allocation4], 736
    %v5031 = vld [vmem:[%s5030] sm:$0xff]
    %v5032 = vld [vmem:[%s5030 + $0x8] sm:$0xff]
    %v5033 = vld [vmem:[%s5030 + $0x10] sm:$0xff]
    %v5034 = vld [vmem:[%s5030 + $0x18] sm:$0xff]
    %v5036 = vsel %vm411, %v5029, 0
    %5038 = vmatprep.subr.mxu0 0.0
    %5039 = vmatpush1.msra.mxu0 0.0
    %5040 = vmatprep.subr.mxu0 0.0
    %5041 = vmatpush1.msra.mxu0 0.0
    %5042 = vmatprep.subr.mxu0 0.0
    %5043 = vmatpush1.msra.mxu0 0.0
    %5044 = vmatprep.subr.mxu0 0.0
    %5045 = vmatpush1.msra.mxu0 0.0
    %5046 = vmatprep.subr.mxu0 0.0
    %5047 = vmatpush1.msra.mxu0 0.0
    %5048 = vmatprep.subr.mxu0 0.0
    %5049 = vmatpush1.msra.mxu0 0.0
    %5050 = vmatprep.subr.mxu0 0.0
    %5051 = vmatpush1.msra.mxu0 0.0
    %5052 = vmatprep.subr.mxu0 0.0
    %5053 = vmatpush1.msra.mxu0 0.0
    %5054 = vmatprep.subr.mxu0 0.0
    %5055 = vmatpush1.msra.mxu0 0.0
    %5056 = vmatprep.subr.mxu0 0.0
    %5057 = vmatpush1.msra.mxu0 0.0
    %5058 = vmatprep.subr.mxu0 0.0
    %5059 = vmatpush1.msra.mxu0 0.0
    %5060 = vmatprep.subr.mxu0 0.0
    %5061 = vmatpush1.msra.mxu0 0.0
    %5062 = vmatprep.subr.mxu0 0.0
    %5063 = vmatpush1.msra.mxu0 %v5034
    %5064 = vmatprep.subr.mxu0 0.0
    %5065 = vmatpush1.msra.mxu0 %v5033
    %5066 = vmatprep.subr.mxu0 0.0
    %5067 = vmatpush1.msra.mxu0 %v5032
    %5068 = vmatprep.subr.mxu0 0.0
    %5069 = vmatpush1.msra.mxu0 %v5031
    %5070 = vmatprep.subr.mxu0 0.0
    %5071 = vmatpush2.msra.mxu0 0.0
    %5072 = vmatprep.subr.mxu0 0.0
    %5073 = vmatpush2.msra.mxu0 0.0
    %5074 = vmatprep.subr.mxu0 0.0
    %5075 = vmatpush2.msra.mxu0 0.0
    %5076 = vmatprep.subr.mxu0 0.0
    %5077 = vmatpush2.msra.mxu0 0.0
    %5078 = vmatprep.subr.mxu0 0.0
    %5079 = vmatpush2.msra.mxu0 0.0
    %5080 = vmatprep.subr.mxu0 0.0
    %5081 = vmatpush2.msra.mxu0 0.0
    %5082 = vmatprep.subr.mxu0 0.0
    %5083 = vmatpush2.msra.mxu0 0.0
    %5084 = vmatprep.subr.mxu0 0.0
    %5085 = vmatpush2.msra.mxu0 0.0
    %5086 = vmatprep.subr.mxu0 0.0
    %5087 = vmatpush2.msra.mxu0 0.0
    %5088 = vmatprep.subr.mxu0 0.0
    %5089 = vmatpush2.msra.mxu0 0.0
    %5090 = vmatprep.subr.mxu0 0.0
    %5091 = vmatpush2.msra.mxu0 0.0
    %5092 = vmatprep.subr.mxu0 0.0
    %5093 = vmatpush2.msra.mxu0 0.0
    %5094 = vmatprep.subr.mxu0 0.0
    %5095 = vmatpush2.msra.mxu0 0.0
    %5096 = vmatprep.subr.mxu0 0.0
    %5097 = vmatpush2.msra.mxu0 0.0
    %5098 = vmatprep.subr.mxu0 0.0
    %5099 = vmatpush2.msra.mxu0 0.0
    %5100 = vmatprep.subr.mxu0 0.0
    %5101 = vmatpush2.msra.mxu0 0.0
    %5102 = vmatprep.mubr.f32.mxu0 0.0
    %5103 = vmatmul.mubr.f32.gmra.mxu0 %v5036
    %v5104 = vpop.f32.mrf.mxu0
    %v5105 = vadd.f32 0.0, %v5104
    %v5106 = vpop.f32.mrf.mxu0
    %5107 = vdwg.mxu0
    %v5108 = vadd.f32 %v5025, %v5105
    %s5109 = scalar_lea.vmem [#allocation3], 32
    %v5110 = vld [vmem:[%s5109] ss:$49 sm:$0xf]
    %v5111 = vadd.f32 %v5110, %v3120
    %v5112 = vmax.f32 %v5111, 0.0
    %s5113 = scalar_lea.vmem [#allocation4], 768
    %v5114 = vld [vmem:[%s5113] sm:$0xff]
    %v5115 = vld [vmem:[%s5113 + $0x8] sm:$0xff]
    %v5116 = vld [vmem:[%s5113 + $0x10] sm:$0xff]
    %v5117 = vld [vmem:[%s5113 + $0x18] sm:$0xff]
    %v5119 = vsel %vm411, %v5112, 0
    %5121 = vmatprep.subr.mxu0 0.0
    %5122 = vmatpush1.msra.mxu0 0.0
    %5123 = vmatprep.subr.mxu0 0.0
    %5124 = vmatpush1.msra.mxu0 0.0
    %5125 = vmatprep.subr.mxu0 0.0
    %5126 = vmatpush1.msra.mxu0 0.0
    %5127 = vmatprep.subr.mxu0 0.0
    %5128 = vmatpush1.msra.mxu0 0.0
    %5129 = vmatprep.subr.mxu0 0.0
    %5130 = vmatpush1.msra.mxu0 0.0
    %5131 = vmatprep.subr.mxu0 0.0
    %5132 = vmatpush1.msra.mxu0 0.0
    %5133 = vmatprep.subr.mxu0 0.0
    %5134 = vmatpush1.msra.mxu0 0.0
    %5135 = vmatprep.subr.mxu0 0.0
    %5136 = vmatpush1.msra.mxu0 0.0
    %5137 = vmatprep.subr.mxu0 0.0
    %5138 = vmatpush1.msra.mxu0 0.0
    %5139 = vmatprep.subr.mxu0 0.0
    %5140 = vmatpush1.msra.mxu0 0.0
    %5141 = vmatprep.subr.mxu0 0.0
    %5142 = vmatpush1.msra.mxu0 0.0
    %5143 = vmatprep.subr.mxu0 0.0
    %5144 = vmatpush1.msra.mxu0 0.0
    %5145 = vmatprep.subr.mxu0 0.0
    %5146 = vmatpush1.msra.mxu0 %v5117
    %5147 = vmatprep.subr.mxu0 0.0
    %5148 = vmatpush1.msra.mxu0 %v5116
    %5149 = vmatprep.subr.mxu0 0.0
    %5150 = vmatpush1.msra.mxu0 %v5115
    %5151 = vmatprep.subr.mxu0 0.0
    %5152 = vmatpush1.msra.mxu0 %v5114
    %5153 = vmatprep.subr.mxu0 0.0
    %5154 = vmatpush2.msra.mxu0 0.0
    %5155 = vmatprep.subr.mxu0 0.0
    %5156 = vmatpush2.msra.mxu0 0.0
    %5157 = vmatprep.subr.mxu0 0.0
    %5158 = vmatpush2.msra.mxu0 0.0
    %5159 = vmatprep.subr.mxu0 0.0
    %5160 = vmatpush2.msra.mxu0 0.0
    %5161 = vmatprep.subr.mxu0 0.0
    %5162 = vmatpush2.msra.mxu0 0.0
    %5163 = vmatprep.subr.mxu0 0.0
    %5164 = vmatpush2.msra.mxu0 0.0
    %5165 = vmatprep.subr.mxu0 0.0
    %5166 = vmatpush2.msra.mxu0 0.0
    %5167 = vmatprep.subr.mxu0 0.0
    %5168 = vmatpush2.msra.mxu0 0.0
    %5169 = vmatprep.subr.mxu0 0.0
    %5170 = vmatpush2.msra.mxu0 0.0
    %5171 = vmatprep.subr.mxu0 0.0
    %5172 = vmatpush2.msra.mxu0 0.0
    %5173 = vmatprep.subr.mxu0 0.0
    %5174 = vmatpush2.msra.mxu0 0.0
    %5175 = vmatprep.subr.mxu0 0.0
    %5176 = vmatpush2.msra.mxu0 0.0
    %5177 = vmatprep.subr.mxu0 0.0
    %5178 = vmatpush2.msra.mxu0 0.0
    %5179 = vmatprep.subr.mxu0 0.0
    %5180 = vmatpush2.msra.mxu0 0.0
    %5181 = vmatprep.subr.mxu0 0.0
    %5182 = vmatpush2.msra.mxu0 0.0
    %5183 = vmatprep.subr.mxu0 0.0
    %5184 = vmatpush2.msra.mxu0 0.0
    %5185 = vmatprep.mubr.f32.mxu0 0.0
    %5186 = vmatmul.mubr.f32.gmra.mxu0 %v5119
    %v5187 = vpop.f32.mrf.mxu0
    %v5188 = vadd.f32 0.0, %v5187
    %v5189 = vpop.f32.mrf.mxu0
    %5190 = vdwg.mxu0
    %v5191 = vadd.f32 %v5108, %v5188
    %v5192 = vld [vmem:[%s6] sm:$0x1]
    %v5194 = vlaneseq
    %v5195 = vshrl.u32 %v5194, 7
    %v5196 = vsub.s32 0, %v5195
    %v5197 = vrot.slane %v5192, %v5196
    %v5199 = vadd.f32 %v5191, %v5197
    %v5200 = vsel %vm436, %v5199, 0.0
    %5201 = vadd.xlane.f32.xlu0 %v5200
    %v5202 = vpop.xlane.xlu0 %5201
    %v5203 = vrcp.pop 32.0
    %v5204 = vmul.f32 %v5202, %v5203
    %v5205 = vsub.f32 %v5199, %v5204
    %v5206 = vmul.f32 %v5205, %v5205
    %v5207 = vsel %vm436, %v5206, 0.0
    %5208 = vadd.xlane.f32.xlu0 %v5207
    %v5209 = vpop.xlane.xlu0 %5208
    %v5210 = vmul.f32 %v5209, %v5203
    %v5211 = vadd.f32 %v5210, 1e-05
    %v5212 = vrsqrt.pop %v5211
    %v5213 = vmul.f32 %v5205, %v5212
    %v5214 = vld [vmem:[%s7] sm:$0x1]
    %v5216 = vlaneseq
    %v5217 = vshrl.u32 %v5216, 7
    %v5218 = vsub.s32 0, %v5217
    %v5219 = vrot.slane %v5214, %v5218
    %v5221 = vmul.f32 %v5213, %v5219
    %v5222 = vld [vmem:[%s8] sm:$0x1]
    %v5224 = vlaneseq
    %v5225 = vshrl.u32 %v5224, 7
    %v5226 = vsub.s32 0, %v5225
    %v5227 = vrot.slane %v5222, %v5226
    %v5229 = vadd.f32 %v5221, %v5227
    %v5230 = vtanh.pop %v5229
    %v5231 = vld [vmem:[%s9] sm:$0xf]
    %v5232 = vld [vmem:[%s10] sm:$0xff]
    %v5233 = vld [vmem:[%s10 + $0x8] sm:$0xff]
    %v5234 = vld [vmem:[%s10 + $0x10] sm:$0xff]
    %v5235 = vld [vmem:[%s10 + $0x18] sm:$0xff]
    %v5236 = vld [vmem:[%s11] sm:$0x1]
    %5238 = vset.pattern.permute.xlu0 0
    %5239 = vperm.xlu0 %5238, %v5231
    %v5240 = vpop.permute.xlu0 %5239
    %v5243 = vlaneseq
    %v5244 = vshrl.u32 %v5243, 7
    %v5245 = vsub.s32 0, %v5244
    %v5246 = vrot.slane %v5236, %v5245
    %v5248 = vmul.f32 %v5240, %v5246
    %v5250 = vsel %vm411, %v5230, 0
    %5252 = vmatprep.subr.mxu0 0.0
    %5253 = vmatpush1.msra.mxu0 0.0
    %5254 = vmatprep.subr.mxu0 0.0
    %5255 = vmatpush1.msra.mxu0 0.0
    %5256 = vmatprep.subr.mxu0 0.0
    %5257 = vmatpush1.msra.mxu0 0.0
    %5258 = vmatprep.subr.mxu0 0.0
    %5259 = vmatpush1.msra.mxu0 0.0
    %5260 = vmatprep.subr.mxu0 0.0
    %5261 = vmatpush1.msra.mxu0 0.0
    %5262 = vmatprep.subr.mxu0 0.0
    %5263 = vmatpush1.msra.mxu0 0.0
    %5264 = vmatprep.subr.mxu0 0.0
    %5265 = vmatpush1.msra.mxu0 0.0
    %5266 = vmatprep.subr.mxu0 0.0
    %5267 = vmatpush1.msra.mxu0 0.0
    %5268 = vmatprep.subr.mxu0 0.0
    %5269 = vmatpush1.msra.mxu0 0.0
    %5270 = vmatprep.subr.mxu0 0.0
    %5271 = vmatpush1.msra.mxu0 0.0
    %5272 = vmatprep.subr.mxu0 0.0
    %5273 = vmatpush1.msra.mxu0 0.0
    %5274 = vmatprep.subr.mxu0 0.0
    %5275 = vmatpush1.msra.mxu0 0.0
    %5276 = vmatprep.subr.mxu0 0.0
    %5277 = vmatpush1.msra.mxu0 %v5235
    %5278 = vmatprep.subr.mxu0 0.0
    %5279 = vmatpush1.msra.mxu0 %v5234
    %5280 = vmatprep.subr.mxu0 0.0
    %5281 = vmatpush1.msra.mxu0 %v5233
    %5282 = vmatprep.subr.mxu0 0.0
    %5283 = vmatpush1.msra.mxu0 %v5232
    %5284 = vmatprep.subr.mxu0 0.0
    %5285 = vmatpush2.msra.mxu0 0.0
    %5286 = vmatprep.subr.mxu0 0.0
    %5287 = vmatpush2.msra.mxu0 0.0
    %5288 = vmatprep.subr.mxu0 0.0
    %5289 = vmatpush2.msra.mxu0 0.0
    %5290 = vmatprep.subr.mxu0 0.0
    %5291 = vmatpush2.msra.mxu0 0.0
    %5292 = vmatprep.subr.mxu0 0.0
    %5293 = vmatpush2.msra.mxu0 0.0
    %5294 = vmatprep.subr.mxu0 0.0
    %5295 = vmatpush2.msra.mxu0 0.0
    %5296 = vmatprep.subr.mxu0 0.0
    %5297 = vmatpush2.msra.mxu0 0.0
    %5298 = vmatprep.subr.mxu0 0.0
    %5299 = vmatpush2.msra.mxu0 0.0
    %5300 = vmatprep.subr.mxu0 0.0
    %5301 = vmatpush2.msra.mxu0 0.0
    %5302 = vmatprep.subr.mxu0 0.0
    %5303 = vmatpush2.msra.mxu0 0.0
    %5304 = vmatprep.subr.mxu0 0.0
    %5305 = vmatpush2.msra.mxu0 0.0
    %5306 = vmatprep.subr.mxu0 0.0
    %5307 = vmatpush2.msra.mxu0 0.0
    %5308 = vmatprep.subr.mxu0 0.0
    %5309 = vmatpush2.msra.mxu0 0.0
    %5310 = vmatprep.subr.mxu0 0.0
    %5311 = vmatpush2.msra.mxu0 0.0
    %5312 = vmatprep.subr.mxu0 0.0
    %5313 = vmatpush2.msra.mxu0 0.0
    %5314 = vmatprep.subr.mxu0 0.0
    %5315 = vmatpush2.msra.mxu0 0.0
    %5316 = vmatprep.mubr.f32.mxu0 0.0
    %5317 = vmatmul.mubr.f32.gmra.mxu0 %v5250
    %v5318 = vpop.f32.mrf.mxu0
    %v5319 = vadd.f32 %v5248, %v5318
    %v5320 = vpop.f32.mrf.mxu0
    %5321 = vdwg.mxu0
    %v5322 = vld [vmem:[%s12] sm:$0x1]
    %v5324 = vlaneseq
    %v5325 = vshrl.u32 %v5324, 7
    %v5326 = vsub.s32 0, %v5325
    %v5327 = vrot.slane %v5322, %v5326
    %v5329 = vadd.f32 %v5319, %v5327
    %v5330 = vmax.f32 %v5329, 0.0
    %v5331 = vld [vmem:[#allocation7] sm:$0xff]
    %v5332 = vld [vmem:[#allocation7 + $0x8] sm:$0xff]
    %v5333 = vld [vmem:[#allocation7 + $0x10] sm:$0xff]
    %v5334 = vld [vmem:[#allocation7 + $0x18] sm:$0xff]
    %v5335 = vld [vmem:[%s14] sm:$0x1]
    %v5337 = vlaneseq
    %v5338 = vshrl.u32 %v5337, 7
    %v5339 = vsub.s32 0, %v5338
    %v5340 = vrot.slane %v5335, %v5339
    %v5343 = vsel %vm411, %v5330, 0
    %5345 = vmatprep.subr.mxu0 0.0
    %5346 = vmatpush1.msra.mxu0 0.0
    %5347 = vmatprep.subr.mxu0 0.0
    %5348 = vmatpush1.msra.mxu0 0.0
    %5349 = vmatprep.subr.mxu0 0.0
    %5350 = vmatpush1.msra.mxu0 0.0
    %5351 = vmatprep.subr.mxu0 0.0
    %5352 = vmatpush1.msra.mxu0 0.0
    %5353 = vmatprep.subr.mxu0 0.0
    %5354 = vmatpush1.msra.mxu0 0.0
    %5355 = vmatprep.subr.mxu0 0.0
    %5356 = vmatpush1.msra.mxu0 0.0
    %5357 = vmatprep.subr.mxu0 0.0
    %5358 = vmatpush1.msra.mxu0 0.0
    %5359 = vmatprep.subr.mxu0 0.0
    %5360 = vmatpush1.msra.mxu0 0.0
    %5361 = vmatprep.subr.mxu0 0.0
    %5362 = vmatpush1.msra.mxu0 0.0
    %5363 = vmatprep.subr.mxu0 0.0
    %5364 = vmatpush1.msra.mxu0 0.0
    %5365 = vmatprep.subr.mxu0 0.0
    %5366 = vmatpush1.msra.mxu0 0.0
    %5367 = vmatprep.subr.mxu0 0.0
    %5368 = vmatpush1.msra.mxu0 0.0
    %5369 = vmatprep.subr.mxu0 0.0
    %5370 = vmatpush1.msra.mxu0 %v5334
    %5371 = vmatprep.subr.mxu0 0.0
    %5372 = vmatpush1.msra.mxu0 %v5333
    %5373 = vmatprep.subr.mxu0 0.0
    %5374 = vmatpush1.msra.mxu0 %v5332
    %5375 = vmatprep.subr.mxu0 0.0
    %5376 = vmatpush1.msra.mxu0 %v5331
    %5377 = vmatprep.subr.mxu0 0.0
    %5378 = vmatpush2.msra.mxu0 0.0
    %5379 = vmatprep.subr.mxu0 0.0
    %5380 = vmatpush2.msra.mxu0 0.0
    %5381 = vmatprep.subr.mxu0 0.0
    %5382 = vmatpush2.msra.mxu0 0.0
    %5383 = vmatprep.subr.mxu0 0.0
    %5384 = vmatpush2.msra.mxu0 0.0
    %5385 = vmatprep.subr.mxu0 0.0
    %5386 = vmatpush2.msra.mxu0 0.0
    %5387 = vmatprep.subr.mxu0 0.0
    %5388 = vmatpush2.msra.mxu0 0.0
    %5389 = vmatprep.subr.mxu0 0.0
    %5390 = vmatpush2.msra.mxu0 0.0
    %5391 = vmatprep.subr.mxu0 0.0
    %5392 = vmatpush2.msra.mxu0 0.0
    %5393 = vmatprep.subr.mxu0 0.0
    %5394 = vmatpush2.msra.mxu0 0.0
    %5395 = vmatprep.subr.mxu0 0.0
    %5396 = vmatpush2.msra.mxu0 0.0
    %5397 = vmatprep.subr.mxu0 0.0
    %5398 = vmatpush2.msra.mxu0 0.0
    %5399 = vmatprep.subr.mxu0 0.0
    %5400 = vmatpush2.msra.mxu0 0.0
    %5401 = vmatprep.subr.mxu0 0.0
    %5402 = vmatpush2.msra.mxu0 0.0
    %5403 = vmatprep.subr.mxu0 0.0
    %5404 = vmatpush2.msra.mxu0 0.0
    %5405 = vmatprep.subr.mxu0 0.0
    %5406 = vmatpush2.msra.mxu0 0.0
    %5407 = vmatprep.subr.mxu0 0.0
    %5408 = vmatpush2.msra.mxu0 0.0
    %5409 = vmatprep.mubr.f32.mxu0 0.0
    %5410 = vmatmul.mubr.f32.gmra.mxu0 %v5343
    %v5411 = vpop.f32.mrf.mxu0
    %v5412 = vadd.f32 %v5340, %v5411
    %v5413 = vpop.f32.mrf.mxu0
    %5414 = vdwg.mxu0
    %5415 = vst.msk [vmem:[#allocation9] sm:$0xf] %vm436, %v5412
    %s5416 = scalar_lea.vmem %s10, 32
    %v5417 = vld [vmem:[%s5416] sm:$0xff]
    %v5418 = vld [vmem:[%s5416 + $0x8] sm:$0xff]
    %v5419 = vld [vmem:[%s5416 + $0x10] sm:$0xff]
    %v5420 = vld [vmem:[%s5416 + $0x18] sm:$0xff]
    %s5421 = scalar_lea.vmem %s11, 1
    %v5422 = vld [vmem:[%s5421] sm:$0x1]
    %v5424 = vlaneseq
    %v5425 = vshrl.u32 %v5424, 7
    %v5426 = vsub.s32 0, %v5425
    %v5427 = vrot.slane %v5422, %v5426
    %v5429 = vmul.f32 %v5240, %v5427
    %5430 = vmatprep.subr.mxu0 0.0
    %5431 = vmatpush1.msra.mxu0 0.0
    %5432 = vmatprep.subr.mxu0 0.0
    %5433 = vmatpush1.msra.mxu0 0.0
    %5434 = vmatprep.subr.mxu0 0.0
    %5435 = vmatpush1.msra.mxu0 0.0
    %5436 = vmatprep.subr.mxu0 0.0
    %5437 = vmatpush1.msra.mxu0 0.0
    %5438 = vmatprep.subr.mxu0 0.0
    %5439 = vmatpush1.msra.mxu0 0.0
    %5440 = vmatprep.subr.mxu0 0.0
    %5441 = vmatpush1.msra.mxu0 0.0
    %5442 = vmatprep.subr.mxu0 0.0
    %5443 = vmatpush1.msra.mxu0 0.0
    %5444 = vmatprep.subr.mxu0 0.0
    %5445 = vmatpush1.msra.mxu0 0.0
    %5446 = vmatprep.subr.mxu0 0.0
    %5447 = vmatpush1.msra.mxu0 0.0
    %5448 = vmatprep.subr.mxu0 0.0
    %5449 = vmatpush1.msra.mxu0 0.0
    %5450 = vmatprep.subr.mxu0 0.0
    %5451 = vmatpush1.msra.mxu0 0.0
    %5452 = vmatprep.subr.mxu0 0.0
    %5453 = vmatpush1.msra.mxu0 0.0
    %5454 = vmatprep.subr.mxu0 0.0
    %5455 = vmatpush1.msra.mxu0 %v5420
    %5456 = vmatprep.subr.mxu0 0.0
    %5457 = vmatpush1.msra.mxu0 %v5419
    %5458 = vmatprep.subr.mxu0 0.0
    %5459 = vmatpush1.msra.mxu0 %v5418
    %5460 = vmatprep.subr.mxu0 0.0
    %5461 = vmatpush1.msra.mxu0 %v5417
    %5462 = vmatprep.subr.mxu0 0.0
    %5463 = vmatpush2.msra.mxu0 0.0
    %5464 = vmatprep.subr.mxu0 0.0
    %5465 = vmatpush2.msra.mxu0 0.0
    %5466 = vmatprep.subr.mxu0 0.0
    %5467 = vmatpush2.msra.mxu0 0.0
    %5468 = vmatprep.subr.mxu0 0.0
    %5469 = vmatpush2.msra.mxu0 0.0
    %5470 = vmatprep.subr.mxu0 0.0
    %5471 = vmatpush2.msra.mxu0 0.0
    %5472 = vmatprep.subr.mxu0 0.0
    %5473 = vmatpush2.msra.mxu0 0.0
    %5474 = vmatprep.subr.mxu0 0.0
    %5475 = vmatpush2.msra.mxu0 0.0
    %5476 = vmatprep.subr.mxu0 0.0
    %5477 = vmatpush2.msra.mxu0 0.0
    %5478 = vmatprep.subr.mxu0 0.0
    %5479 = vmatpush2.msra.mxu0 0.0
    %5480 = vmatprep.subr.mxu0 0.0
    %5481 = vmatpush2.msra.mxu0 0.0
    %5482 = vmatprep.subr.mxu0 0.0
    %5483 = vmatpush2.msra.mxu0 0.0
    %5484 = vmatprep.subr.mxu0 0.0
    %5485 = vmatpush2.msra.mxu0 0.0
    %5486 = vmatprep.subr.mxu0 0.0
    %5487 = vmatpush2.msra.mxu0 0.0
    %5488 = vmatprep.subr.mxu0 0.0
    %5489 = vmatpush2.msra.mxu0 0.0
    %5490 = vmatprep.subr.mxu0 0.0
    %5491 = vmatpush2.msra.mxu0 0.0
    %5492 = vmatprep.subr.mxu0 0.0
    %5493 = vmatpush2.msra.mxu0 0.0
    %5494 = vmatprep.mubr.f32.mxu0 0.0
    %5495 = vmatmul.mubr.f32.gmra.mxu0 %v5250
    %v5496 = vpop.f32.mrf.mxu0
    %v5497 = vadd.f32 %v5429, %v5496
    %v5498 = vpop.f32.mrf.mxu0
    %5499 = vdwg.mxu0
    %s5500 = scalar_lea.vmem %s12, 1
    %v5501 = vld [vmem:[%s5500] sm:$0x1]
    %v5503 = vlaneseq
    %v5504 = vshrl.u32 %v5503, 7
    %v5505 = vsub.s32 0, %v5504
    %v5506 = vrot.slane %v5501, %v5505
    %v5508 = vadd.f32 %v5497, %v5506
    %v5509 = vmax.f32 %v5508, 0.0
    %s5510 = scalar_lea.vmem [#allocation7], 32
    %v5511 = vld [vmem:[%s5510] sm:$0xff]
    %v5512 = vld [vmem:[%s5510 + $0x8] sm:$0xff]
    %v5513 = vld [vmem:[%s5510 + $0x10] sm:$0xff]
    %v5514 = vld [vmem:[%s5510 + $0x18] sm:$0xff]
    %s5515 = scalar_lea.vmem %s14, 1
    %v5516 = vld [vmem:[%s5515] sm:$0x1]
    %v5518 = vlaneseq
    %v5519 = vshrl.u32 %v5518, 7
    %v5520 = vsub.s32 0, %v5519
    %v5521 = vrot.slane %v5516, %v5520
    %v5524 = vsel %vm411, %v5509, 0
    %5526 = vmatprep.subr.mxu0 0.0
    %5527 = vmatpush1.msra.mxu0 0.0
    %5528 = vmatprep.subr.mxu0 0.0
    %5529 = vmatpush1.msra.mxu0 0.0
    %5530 = vmatprep.subr.mxu0 0.0
    %5531 = vmatpush1.msra.mxu0 0.0
    %5532 = vmatprep.subr.mxu0 0.0
    %5533 = vmatpush1.msra.mxu0 0.0
    %5534 = vmatprep.subr.mxu0 0.0
    %5535 = vmatpush1.msra.mxu0 0.0
    %5536 = vmatprep.subr.mxu0 0.0
    %5537 = vmatpush1.msra.mxu0 0.0
    %5538 = vmatprep.subr.mxu0 0.0
    %5539 = vmatpush1.msra.mxu0 0.0
    %5540 = vmatprep.subr.mxu0 0.0
    %5541 = vmatpush1.msra.mxu0 0.0
    %5542 = vmatprep.subr.mxu0 0.0
    %5543 = vmatpush1.msra.mxu0 0.0
    %5544 = vmatprep.subr.mxu0 0.0
    %5545 = vmatpush1.msra.mxu0 0.0
    %5546 = vmatprep.subr.mxu0 0.0
    %5547 = vmatpush1.msra.mxu0 0.0
    %5548 = vmatprep.subr.mxu0 0.0
    %5549 = vmatpush1.msra.mxu0 0.0
    %5550 = vmatprep.subr.mxu0 0.0
    %5551 = vmatpush1.msra.mxu0 %v5514
    %5552 = vmatprep.subr.mxu0 0.0
    %5553 = vmatpush1.msra.mxu0 %v5513
    %5554 = vmatprep.subr.mxu0 0.0
    %5555 = vmatpush1.msra.mxu0 %v5512
    %5556 = vmatprep.subr.mxu0 0.0
    %5557 = vmatpush1.msra.mxu0 %v5511
    %5558 = vmatprep.subr.mxu0 0.0
    %5559 = vmatpush2.msra.mxu0 0.0
    %5560 = vmatprep.subr.mxu0 0.0
    %5561 = vmatpush2.msra.mxu0 0.0
    %5562 = vmatprep.subr.mxu0 0.0
    %5563 = vmatpush2.msra.mxu0 0.0
    %5564 = vmatprep.subr.mxu0 0.0
    %5565 = vmatpush2.msra.mxu0 0.0
    %5566 = vmatprep.subr.mxu0 0.0
    %5567 = vmatpush2.msra.mxu0 0.0
    %5568 = vmatprep.subr.mxu0 0.0
    %5569 = vmatpush2.msra.mxu0 0.0
    %5570 = vmatprep.subr.mxu0 0.0
    %5571 = vmatpush2.msra.mxu0 0.0
    %5572 = vmatprep.subr.mxu0 0.0
    %5573 = vmatpush2.msra.mxu0 0.0
    %5574 = vmatprep.subr.mxu0 0.0
    %5575 = vmatpush2.msra.mxu0 0.0
    %5576 = vmatprep.subr.mxu0 0.0
    %5577 = vmatpush2.msra.mxu0 0.0
    %5578 = vmatprep.subr.mxu0 0.0
    %5579 = vmatpush2.msra.mxu0 0.0
    %5580 = vmatprep.subr.mxu0 0.0
    %5581 = vmatpush2.msra.mxu0 0.0
    %5582 = vmatprep.subr.mxu0 0.0
    %5583 = vmatpush2.msra.mxu0 0.0
    %5584 = vmatprep.subr.mxu0 0.0
    %5585 = vmatpush2.msra.mxu0 0.0
    %5586 = vmatprep.subr.mxu0 0.0
    %5587 = vmatpush2.msra.mxu0 0.0
    %5588 = vmatprep.subr.mxu0 0.0
    %5589 = vmatpush2.msra.mxu0 0.0
    %5590 = vmatprep.mubr.f32.mxu0 0.0
    %5591 = vmatmul.mubr.f32.gmra.mxu0 %v5524
    %v5592 = vpop.f32.mrf.mxu0
    %v5593 = vadd.f32 %v5521, %v5592
    %v5594 = vpop.f32.mrf.mxu0
    %5595 = vdwg.mxu0
    %5596 = vst.msk [vmem:[#allocation9 + $0x4] sm:$0xf] %vm436, %v5593
    // Predicated region
    $region70: #{tpu_custom_call.1} parent=1 // pred_check
      _
    $region71: #{tpu_custom_call.1} parent=1 // pred_check_branch
      %5598 = sbr.rel (0) target = $region73
    $region72: #{tpu_custom_call.1} parent=1 // pred_region
      %s5600 = ssub.s32 128, 128
      %5601 = vsyncadd [#allocation6], %s5600
      %s5603 = sshll.u32 [#allocation9], 4
      %s5604 = int_to_ptr.vmem [resolvable:$true] %s5603
      %5606 = dma.vmem_to_hbm [thread:$0]  %s5604, 128, %s15, [#allocation6]
    $region73: #{tpu_custom_call.1} parent=1 // pred_fallthru
      _
    // Predicated region
    $region74: #{tpu_custom_call.1} parent=1 // pred_check
      _
    $region75: #{tpu_custom_call.1} parent=1 // pred_check_branch
      %5608 = sbr.rel (0) target = $region77
    $region76: #{tpu_custom_call.1} parent=1 // pred_region
      %5609 = dma.done [#allocation6], 128
    $region77: #{tpu_custom_call.1} parent=1 // pred_fallthru
      _
    %5610 = vsyncpa [#allocation5], 1
    %5611 = vsyncpa [#allocation8], 1
    %5612 = vsyncpa [#allocation6], 1

</llo_original>
